<compile_context>
chip_gen: v5e
topology: v5e:2x2
jax: 0.10.0
libtpu: 0.0.40
codegen_flags: <defaults>
</compile_context>

<pallas_src>
import math

import jax
import jax.numpy as jnp
from jax.experimental import pallas as pl
from jax.experimental.pallas import tpu as pltpu


# ---------------------------------------------------------------------------
# Pallas kernel
# ---------------------------------------------------------------------------
def _dual_attention_kernel(
    history_ref,    # (B, T)
    ds_ref,         # (B, N, T)
    attn_in_ref,    # (2*H1 + T + 1, T)   rows: [W_in | U_in | v_in^T]
    attn_t_ref,     # (2*H2 + H1 + 1, H1) rows: [W_t  | U_t  | v_t^T ]
    enc_ref,        # (N + H1 + 1, 4*H1)  rows: [w_ih^T | w_hh^T | b]
    dec_ref,        # (1 + H2 + 1, 4*H2)  rows: [w_ih^T | w_hh^T | b]
    yhat_ref,       # (H1 + 2, 1)         rows: [yhat_W | yhat_b]
    outp_ref,       # (H2 + 1, n_out)     rows: [out_W  | out_b ]
    pred_ref,       # out: (B, n_out)
):
    B, N, T = ds_ref.shape
    H1 = (attn_in_ref.shape[0] - T - 1) // 2
    H2 = (attn_t_ref.shape[0] - H1 - 1) // 2

    history = history_ref[...]                       # (B, T)
    ds = ds_ref[...]                                 # (B, N, T)

    # ---- unpack parameters (static slices of VMEM-resident values) ---------
    attn_in = attn_in_ref[...]
    W_in = attn_in[:2 * H1, :]                       # (2H1, T)
    U_in = attn_in[2 * H1:2 * H1 + T, :]             # (T, T)
    v_in = attn_in[2 * H1 + T:, :]                   # (1, T)

    attn_t = attn_t_ref[...]
    W_t = attn_t[:2 * H2, :]                         # (2H2, H1)
    U_t = attn_t[2 * H2:2 * H2 + H1, :]              # (H1, H1)
    v_t = attn_t[2 * H2 + H1:, :]                    # (1, H1)

    enc = enc_ref[...]
    enc_W = enc[:N + H1, :]                          # (N+H1, 4H1)
    enc_b = enc[N + H1:, :]                          # (1, 4H1)

    dec = dec_ref[...]
    dec_W = dec[:1 + H2, :]                          # (1+H2, 4H2)
    dec_b = dec[1 + H2:, :]                          # (1, 4H2)

    yhat = yhat_ref[...]
    yhat_W = yhat[:H1 + 1, :]                        # (H1+1, 1)
    yhat_b = yhat[H1 + 1:, :]                        # (1, 1)

    outp = outp_ref[...]
    out_W = outp[:H2, :]                             # (H2, n_out)
    out_b = outp[H2:, :]                             # (1, n_out)

    def softmax_last(x):
        m = jnp.max(x, axis=-1, keepdims=True)
        e = jnp.exp(x - m)
        return e * pl.reciprocal(jnp.sum(e, axis=-1, keepdims=True), approx=True)

    def lstm_step(xh, cx, W, b, H):
        # One fused MXU dot for all four gates; PyTorch gate order i, f, g, o
        # along the 4H lane axis.
        gates = jnp.dot(xh, W, preferred_element_type=jnp.float32) + b
        i_g = jax.nn.sigmoid(gates[:, :H])
        f_g = jax.nn.sigmoid(gates[:, H:2 * H])
        g_g = jnp.tanh(gates[:, 2 * H:3 * H])
        o_g = jax.nn.sigmoid(gates[:, 3 * H:])
        cx_new = f_g * cx + i_g * g_g
        hx_new = o_g * jnp.tanh(cx_new)
        return hx_new, cx_new

    # ---------------- stage 1: input attention + encoder LSTM ----------------
    # Loop-invariant attention term as one flat 2-D matmul (no batched einsum).
    iw_in = jnp.dot(ds.reshape(B * N, T), U_in,
                    preferred_element_type=jnp.float32).reshape(B, N, T)

    hx = jnp.zeros((B, H1), jnp.float32)
    cx = jnp.zeros((B, H1), jnp.float32)
    hid_list = []
    for step in range(T):
        hw = jnp.dot(jnp.concatenate([hx, cx], axis=-1), W_in,
                     preferred_element_type=jnp.float32)               # (B, T)
        logits = jnp.sum(jnp.tanh(iw_in + hw[:, None, :]) * v_in[None, :, :],
                         axis=-1)                                      # (B, N)
        w = softmax_last(logits)                                       # (B, N)
        x = w * ds[:, :, step]                                         # (B, N)
        hx, cx = lstm_step(jnp.concatenate([x, hx], axis=-1), cx,
                           enc_W, enc_b, H1)
        hid_list.append(hx)

    hid = jnp.stack(hid_list, axis=1)                                  # (B, T, H1)

    # ---------------- stage 2: temporal attention + decoder LSTM -------------
    iw_t = jnp.dot(hid.reshape(B * T, H1), U_t,
                   preferred_element_type=jnp.float32).reshape(B, T, H1)

    hx2 = jnp.zeros((B, H2), jnp.float32)
    cx2 = jnp.zeros((B, H2), jnp.float32)
    for step in range(T):
        hw = jnp.dot(jnp.concatenate([hx2, cx2], axis=-1), W_t,
                     preferred_element_type=jnp.float32)               # (B, H1)
        logits = jnp.sum(jnp.tanh(iw_t + hw[:, None, :]) * v_t[None, :, :],
                         axis=-1)                                      # (B, T)
        w = softmax_last(logits)                                       # (B, T)
        c_i = jnp.sum(w[:, :, None] * hid, axis=1)                     # (B, H1)
        y_in = jnp.concatenate([c_i, history[:, step:step + 1]], axis=-1)
        y_hat = (jnp.dot(y_in, yhat_W, preferred_element_type=jnp.float32)
                 + yhat_b)                                             # (B, 1)
        hx2, cx2 = lstm_step(jnp.concatenate([y_hat, hx2], axis=-1), cx2,
                             dec_W, dec_b, H2)

    pred_ref[...] = (jnp.dot(hx2, out_W, preferred_element_type=jnp.float32)
                     + out_b)


# ---------------------------------------------------------------------------
# Wrapper
# ---------------------------------------------------------------------------
def dual_attention_rnn(history, driving_series, kparams):
    B, T = history.shape
    n_out = kparams['out'].shape[1]

    args = (
        history, driving_series,
        kparams['attn_in'], kparams['attn_t'],
        kparams['enc'], kparams['dec'],
        kparams['yhat'], kparams['out'],
    )
    return pl.pallas_call(
        _dual_attention_kernel,
        out_shape=jax.ShapeDtypeStruct((B, n_out), jnp.float32),
        in_specs=[pl.BlockSpec(memory_space=pltpu.MemorySpace.VMEM)] * len(args),
        out_specs=pl.BlockSpec(memory_space=pltpu.MemorySpace.VMEM),
    )(*args)


# ---------------------------------------------------------------------------
# Deterministic parameter init (mirrors the PyTorch module's shapes/init style)
# ---------------------------------------------------------------------------
def init_raw_params(key, N, T, H1, H2, regression=False):
    ks = jax.random.split(key, 20)

    def u(k, shape, stdv):
        return jax.random.uniform(k, shape, jnp.float32, -stdv, stdv)

    s1, s2 = 1.0 / math.sqrt(H1), 1.0 / math.sqrt(H2)
    n_out = 1 if regression else 2
    sy, so = 1.0 / math.sqrt(H1 + 1), 1.0 / math.sqrt(H2)
    return dict(
        # input attention (hidden_size=H1, dimension=T)
        W_in=u(ks[0], (2 * H1, T), s1), U_in=u(ks[1], (T, T), s1), v_in=u(ks[2], (T, 1), s1),
        # temporal attention (hidden_size=H2, dimension=H1)
        W_t=u(ks[3], (2 * H2, H1), s2), U_t=u(ks[4], (H1, H1), s2), v_t=u(ks[5], (H1, 1), s2),
        # encoder LSTMCell(N, H1)
        enc_w_ih=u(ks[6], (4 * H1, N), s1), enc_w_hh=u(ks[7], (4 * H1, H1), s1),
        enc_b_ih=u(ks[8], (4 * H1,), s1), enc_b_hh=u(ks[9], (4 * H1,), s1),
        # decoder LSTMCell(1, H2)
        dec_w_ih=u(ks[10], (4 * H2, 1), s2), dec_w_hh=u(ks[11], (4 * H2, H2), s2),
        dec_b_ih=u(ks[12], (4 * H2,), s2), dec_b_hh=u(ks[13], (4 * H2,), s2),
        # decoder_y_hat: Linear(H1 + 1, 1)
        yhat_w=u(ks[14], (1, H1 + 1), sy), yhat_b=u(ks[15], (1,), sy),
        # output_linear: Linear(H2, n_out)
        out_w=u(ks[16], (n_out, H2), so), out_b=u(ks[17], (n_out,), so),
    )


def pack_kernel_params(raw):
    """Pack the 21 raw tensors into 6 kernel buffers (fused-gate layouts)."""
    def lstm_pack(w_ih, w_hh, b_ih, b_hh):
        # gates = concat([x, h]) @ [w_ih^T ; w_hh^T] + (b_ih + b_hh),
        # gate order i, f, g, o along the 4H (lane) axis.
        W = jnp.concatenate([w_ih.T, w_hh.T], axis=0)        # (in+H, 4H)
        b = (b_ih + b_hh).reshape(1, -1)                     # (1, 4H)
        return jnp.concatenate([W, b], axis=0)               # (in+H+1, 4H)

    attn_in = jnp.concatenate([raw['W_in'], raw['U_in'], raw['v_in'].T], axis=0)
    attn_t = jnp.concatenate([raw['W_t'], raw['U_t'], raw['v_t'].T], axis=0)
    enc = lstm_pack(raw['enc_w_ih'], raw['enc_w_hh'], raw['enc_b_ih'], raw['enc_b_hh'])
    dec = lstm_pack(raw['dec_w_ih'], raw['dec_w_hh'], raw['dec_b_ih'], raw['dec_b_hh'])
    yhat = jnp.concatenate([raw['yhat_w'].T, raw['yhat_b'].reshape(1, 1)], axis=0)
    out = jnp.concatenate([raw['out_w'].T, raw['out_b'].reshape(1, -1)], axis=0)
    return dict(attn_in=attn_in, attn_t=attn_t, enc=enc, dec=dec, yhat=yhat, out=out)


# ---------------------------------------------------------------------------
# Pure-JAX reference (direct transcription of the PyTorch forward)
# ---------------------------------------------------------------------------
def reference_forward(history, driving_series, raw, H1, H2):
    B, T = history.shape

    def attention(hx, cx, inp, W, U, v):
        hidden = jnp.concatenate([hx, cx], axis=-1)
        input_weight = jnp.einsum('bnd,de->bne', inp, U)
        hidden_weight = (hidden @ W)[:, None, :]
        logits = jnp.squeeze(jnp.tanh(input_weight + hidden_weight) @ v, -1)
        return jax.nn.softmax(logits, axis=-1)

    def lstm_cell(x, hx, cx, w_ih, w_hh, b_ih, b_hh):
        H = hx.shape[-1]
        gates = x @ w_ih.T + b_ih + hx @ w_hh.T + b_hh
        i = jax.nn.sigmoid(gates[:, :H])
        f = jax.nn.sigmoid(gates[:, H:2 * H])
        g = jnp.tanh(gates[:, 2 * H:3 * H])
        o = jax.nn.sigmoid(gates[:, 3 * H:])
        c = f * cx + i * g
        return o * jnp.tanh(c), c

    hx = jnp.zeros((B, H1), jnp.float32)
    cx = jnp.zeros((B, H1), jnp.float32)
    hidden_out = []
    for i in range(T):
        w = attention(hx, cx, driving_series, raw['W_in'], raw['U_in'], raw['v_in'])
        x = w * driving_series[:, :, i]
        hx, cx = lstm_cell(x, hx, cx, raw['enc_w_ih'], raw['enc_w_hh'],
                           raw['enc_b_ih'], raw['enc_b_hh'])
        hidden_out.append(hx)
    hidden_out = jnp.stack(hidden_out, axis=1)

    hx2 = jnp.zeros((B, H2), jnp.float32)
    cx2 = jnp.zeros((B, H2), jnp.float32)
    for i in range(T):
        w = attention(hx2, cx2, hidden_out, raw['W_t'], raw['U_t'], raw['v_t'])
        c_i = jnp.sum(w[:, :, None] * hidden_out, axis=1)
        y_i = jnp.concatenate([c_i, history[:, i:i + 1]], axis=-1)
        y_hat = y_i @ raw['yhat_w'].T + raw['yhat_b']
        hx2, cx2 = lstm_cell(y_hat, hx2, cx2, raw['dec_w_ih'], raw['dec_w_hh'],
                             raw['dec_b_ih'], raw['dec_b_hh'])
    return hx2 @ raw['out_w'].T + raw['out_b']


# ---------------------------------------------------------------------------
if __name__ == "__main__":
    B, N, T = 2, 4, 8           # batch, num_driving_series, window_size
    H1, H2 = 16, 16             # input_hidden_size, temporal_hidden_size

    key = jax.random.PRNGKey(0)
    k_hist, k_ds, k_par = jax.random.split(key, 3)
    history = jax.random.normal(k_hist, (B, T), jnp.float32)
    driving_series = jax.random.normal(k_ds, (B, N, T), jnp.float32)

    raw = init_raw_params(k_par, N, T, H1, H2, regression=False)
    kparams = pack_kernel_params(raw)

    pred = dual_attention_rnn(history, driving_series, kparams)
    pred = jax.block_until_ready(pred)

    ref = reference_forward(history, driving_series, raw, H1, H2)
    assert pred.shape == (B, 2)
    # Tolerance loosened slightly for pl.reciprocal(approx=True) in the softmax.
    assert jnp.allclose(pred, ref, atol=1e-2, rtol=1e-2), (pred, ref)

    print("KERNEL_OK")
</pallas_src>

<mosaic_0001>
module attributes {stable_mosaic.version = 11 : i64} {
  func.func @_dual_attention_kernel(%arg0: memref<2x8xf32, #tpu.memory_space<vmem>>, %arg1: memref<2x4x8xf32, #tpu.memory_space<vmem>>, %arg2: memref<41x8xf32, #tpu.memory_space<vmem>>, %arg3: memref<49x16xf32, #tpu.memory_space<vmem>>, %arg4: memref<21x64xf32, #tpu.memory_space<vmem>>, %arg5: memref<18x64xf32, #tpu.memory_space<vmem>>, %arg6: memref<18x1xf32, #tpu.memory_space<vmem>>, %arg7: memref<17x2xf32, #tpu.memory_space<vmem>>, %arg8: memref<2x2xf32, #tpu.memory_space<vmem>>) attributes {dimension_semantics = [], scalar_prefetch = 0 : i64, scratch_operands = 0 : i64, tpu.core_type = #tpu.core_type<tc>} {
    %c0 = arith.constant 0 : index
    %c0_0 = arith.constant 0 : index
    %0 = vector.load %arg0[%c0, %c0_0] : memref<2x8xf32, #tpu.memory_space<vmem>>, vector<2x8xf32>
    %c0_1 = arith.constant 0 : index
    %c0_2 = arith.constant 0 : index
    %c0_3 = arith.constant 0 : index
    %1 = vector.load %arg1[%c0_1, %c0_2, %c0_3] : memref<2x4x8xf32, #tpu.memory_space<vmem>>, vector<2x4x8xf32>
    %c0_4 = arith.constant 0 : index
    %c0_5 = arith.constant 0 : index
    %2 = vector.load %arg2[%c0_4, %c0_5] : memref<41x8xf32, #tpu.memory_space<vmem>>, vector<41x8xf32>
    %3 = vector.extract_strided_slice %2 {offsets = [0, 0], sizes = [32, 8], strides = [1, 1]} : vector<41x8xf32> to vector<32x8xf32>
    %4 = vector.extract_strided_slice %2 {offsets = [32, 0], sizes = [8, 8], strides = [1, 1]} : vector<41x8xf32> to vector<8x8xf32>
    %5 = vector.extract_strided_slice %2 {offsets = [40, 0], sizes = [1, 8], strides = [1, 1]} : vector<41x8xf32> to vector<1x8xf32>
    %c0_6 = arith.constant 0 : index
    %c0_7 = arith.constant 0 : index
    %6 = vector.load %arg3[%c0_6, %c0_7] : memref<49x16xf32, #tpu.memory_space<vmem>>, vector<49x16xf32>
    %7 = vector.extract_strided_slice %6 {offsets = [0, 0], sizes = [32, 16], strides = [1, 1]} : vector<49x16xf32> to vector<32x16xf32>
    %8 = vector.extract_strided_slice %6 {offsets = [32, 0], sizes = [16, 16], strides = [1, 1]} : vector<49x16xf32> to vector<16x16xf32>
    %9 = vector.extract_strided_slice %6 {offsets = [48, 0], sizes = [1, 16], strides = [1, 1]} : vector<49x16xf32> to vector<1x16xf32>
    %c0_8 = arith.constant 0 : index
    %c0_9 = arith.constant 0 : index
    %10 = vector.load %arg4[%c0_8, %c0_9] : memref<21x64xf32, #tpu.memory_space<vmem>>, vector<21x64xf32>
    %11 = vector.extract_strided_slice %10 {offsets = [0, 0], sizes = [20, 64], strides = [1, 1]} : vector<21x64xf32> to vector<20x64xf32>
    %12 = vector.extract_strided_slice %10 {offsets = [20, 0], sizes = [1, 64], strides = [1, 1]} : vector<21x64xf32> to vector<1x64xf32>
    %c0_10 = arith.constant 0 : index
    %c0_11 = arith.constant 0 : index
    %13 = vector.load %arg5[%c0_10, %c0_11] : memref<18x64xf32, #tpu.memory_space<vmem>>, vector<18x64xf32>
    %14 = vector.extract_strided_slice %13 {offsets = [0, 0], sizes = [17, 64], strides = [1, 1]} : vector<18x64xf32> to vector<17x64xf32>
    %15 = vector.extract_strided_slice %13 {offsets = [17, 0], sizes = [1, 64], strides = [1, 1]} : vector<18x64xf32> to vector<1x64xf32>
    %c0_12 = arith.constant 0 : index
    %c0_13 = arith.constant 0 : index
    %16 = vector.load %arg6[%c0_12, %c0_13] : memref<18x1xf32, #tpu.memory_space<vmem>>, vector<18x1xf32>
    %17 = vector.extract_strided_slice %16 {offsets = [0, 0], sizes = [17, 1], strides = [1, 1]} : vector<18x1xf32> to vector<17x1xf32>
    %18 = vector.extract_strided_slice %16 {offsets = [17, 0], sizes = [1, 1], strides = [1, 1]} : vector<18x1xf32> to vector<1x1xf32>
    %c0_14 = arith.constant 0 : index
    %c0_15 = arith.constant 0 : index
    %19 = vector.load %arg7[%c0_14, %c0_15] : memref<17x2xf32, #tpu.memory_space<vmem>>, vector<17x2xf32>
    %20 = vector.extract_strided_slice %19 {offsets = [0, 0], sizes = [16, 2], strides = [1, 1]} : vector<17x2xf32> to vector<16x2xf32>
    %21 = vector.extract_strided_slice %19 {offsets = [16, 0], sizes = [1, 2], strides = [1, 1]} : vector<17x2xf32> to vector<1x2xf32>
    %22 = vector.shape_cast %1 : vector<2x4x8xf32> to vector<8x8xf32>
    %cst = arith.constant dense<0.000000e+00> : vector<8x8xf32>
    %23 = tpu.matmul %22, %4, %cst {dimension_numbers = #tpu.dot_dimension_numbers<[1], [0], [0], [1], [0, 0, 1, 1], [], []>} : vector<8x8xf32>, vector<8x8xf32>, vector<8x8xf32> -> vector<8x8xf32>
    %24 = vector.shape_cast %23 : vector<8x8xf32> to vector<2x4x8xf32>
    %cst_16 = arith.constant 0.000000e+00 : f32
    %25 = vector.broadcast %cst_16 : f32 to vector<2x16xf32>
    %cst_17 = arith.constant 0.000000e+00 : f32
    %26 = vector.broadcast %cst_17 : f32 to vector<2x16xf32>
    %27 = tpu.concatenate %25, %26 in 1 : vector<2x16xf32>, vector<2x16xf32> -> vector<2x32xf32>
    %cst_18 = arith.constant dense<0.000000e+00> : vector<2x8xf32>
    %28 = tpu.matmul %27, %3, %cst_18 {dimension_numbers = #tpu.dot_dimension_numbers<[1], [0], [0], [1], [0, 0, 1, 1], [], []>} : vector<2x32xf32>, vector<32x8xf32>, vector<2x8xf32> -> vector<2x8xf32>
    %29 = vector.shape_cast %28 : vector<2x8xf32> to vector<2x1x8xf32>
    %30 = vector.broadcast %29 : vector<2x1x8xf32> to vector<2x4x8xf32>
    %31 = arith.addf %24, %30 : vector<2x4x8xf32>
    %32 = math.tanh %31 : vector<2x4x8xf32>
    %33 = vector.shape_cast %5 : vector<1x8xf32> to vector<1x1x8xf32>
    %34 = vector.broadcast %33 : vector<1x1x8xf32> to vector<2x4x8xf32>
    %35 = arith.mulf %32, %34 : vector<2x4x8xf32>
    %cst_19 = arith.constant dense<0.000000e+00> : vector<2x4xf32>
    %36 = vector.multi_reduction <add>, %35, %cst_19 [2] : vector<2x4x8xf32> to vector<2x4xf32>
    %cst_20 = arith.constant dense<0xFF800000> : vector<2xf32>
    %37 = vector.multi_reduction <maximumf>, %36, %cst_20 [1] : vector<2x4xf32> to vector<2xf32>
    %38 = vector.shape_cast %37 : vector<2xf32> to vector<2x1xf32>
    %39 = vector.broadcast %38 : vector<2x1xf32> to vector<2x4xf32>
    %40 = arith.subf %36, %39 : vector<2x4xf32>
    %41 = math.exp %40 : vector<2x4xf32>
    %cst_21 = arith.constant dense<0.000000e+00> : vector<2xf32>
    %42 = vector.multi_reduction <add>, %41, %cst_21 [1] : vector<2x4xf32> to vector<2xf32>
    %43 = vector.shape_cast %42 : vector<2xf32> to vector<2x1xf32>
    %44 = tpu.reciprocal %43 {approx = true} : vector<2x1xf32> -> vector<2x1xf32>
    %45 = vector.broadcast %44 : vector<2x1xf32> to vector<2x4xf32>
    %46 = arith.mulf %41, %45 : vector<2x4xf32>
    %47 = vector.extract_strided_slice %1 {offsets = [0, 0, 0], sizes = [2, 4, 1], strides = [1, 1, 1]} : vector<2x4x8xf32> to vector<2x4x1xf32>
    %48 = vector.shape_cast %47 : vector<2x4x1xf32> to vector<2x4xf32>
    %49 = arith.mulf %46, %48 : vector<2x4xf32>
    %50 = tpu.concatenate %49, %25 in 1 : vector<2x4xf32>, vector<2x16xf32> -> vector<2x20xf32>
    %cst_22 = arith.constant dense<0.000000e+00> : vector<2x64xf32>
    %51 = tpu.matmul %50, %11, %cst_22 {dimension_numbers = #tpu.dot_dimension_numbers<[1], [0], [0], [1], [0, 0, 1, 1], [], []>} : vector<2x20xf32>, vector<20x64xf32>, vector<2x64xf32> -> vector<2x64xf32>
    %52 = vector.broadcast %12 : vector<1x64xf32> to vector<2x64xf32>
    %53 = arith.addf %51, %52 : vector<2x64xf32>
    %54 = vector.extract_strided_slice %53 {offsets = [0, 0], sizes = [2, 16], strides = [1, 1]} : vector<2x64xf32> to vector<2x16xf32>
    %55 = arith.negf %54 : vector<2x16xf32>
    %56 = math.exp %55 : vector<2x16xf32>
    %cst_23 = arith.constant 1.000000e+00 : f32
    %57 = vector.broadcast %cst_23 : f32 to vector<2x16xf32>
    %58 = arith.addf %57, %56 : vector<2x16xf32>
    %59 = arith.divf %57, %58 : vector<2x16xf32>
    %60 = vector.extract_strided_slice %53 {offsets = [0, 16], sizes = [2, 16], strides = [1, 1]} : vector<2x64xf32> to vector<2x16xf32>
    %61 = arith.negf %60 : vector<2x16xf32>
    %62 = math.exp %61 : vector<2x16xf32>
    %cst_24 = arith.constant 1.000000e+00 : f32
    %63 = vector.broadcast %cst_24 : f32 to vector<2x16xf32>
    %64 = arith.addf %63, %62 : vector<2x16xf32>
    %65 = arith.divf %63, %64 : vector<2x16xf32>
    %66 = vector.extract_strided_slice %53 {offsets = [0, 32], sizes = [2, 16], strides = [1, 1]} : vector<2x64xf32> to vector<2x16xf32>
    %67 = math.tanh %66 : vector<2x16xf32>
    %68 = vector.extract_strided_slice %53 {offsets = [0, 48], sizes = [2, 16], strides = [1, 1]} : vector<2x64xf32> to vector<2x16xf32>
    %69 = arith.negf %68 : vector<2x16xf32>
    %70 = math.exp %69 : vector<2x16xf32>
    %cst_25 = arith.constant 1.000000e+00 : f32
    %71 = vector.broadcast %cst_25 : f32 to vector<2x16xf32>
    %72 = arith.addf %71, %70 : vector<2x16xf32>
    %73 = arith.divf %71, %72 : vector<2x16xf32>
    %74 = arith.mulf %65, %26 : vector<2x16xf32>
    %75 = arith.mulf %59, %67 : vector<2x16xf32>
    %76 = arith.addf %74, %75 : vector<2x16xf32>
    %77 = math.tanh %76 : vector<2x16xf32>
    %78 = arith.mulf %73, %77 : vector<2x16xf32>
    %79 = tpu.concatenate %78, %76 in 1 : vector<2x16xf32>, vector<2x16xf32> -> vector<2x32xf32>
    %cst_26 = arith.constant dense<0.000000e+00> : vector<2x8xf32>
    %80 = tpu.matmul %79, %3, %cst_26 {dimension_numbers = #tpu.dot_dimension_numbers<[1], [0], [0], [1], [0, 0, 1, 1], [], []>} : vector<2x32xf32>, vector<32x8xf32>, vector<2x8xf32> -> vector<2x8xf32>
    %81 = vector.shape_cast %80 : vector<2x8xf32> to vector<2x1x8xf32>
    %82 = vector.broadcast %81 : vector<2x1x8xf32> to vector<2x4x8xf32>
    %83 = arith.addf %24, %82 : vector<2x4x8xf32>
    %84 = math.tanh %83 : vector<2x4x8xf32>
    %85 = vector.shape_cast %5 : vector<1x8xf32> to vector<1x1x8xf32>
    %86 = vector.broadcast %85 : vector<1x1x8xf32> to vector<2x4x8xf32>
    %87 = arith.mulf %84, %86 : vector<2x4x8xf32>
    %cst_27 = arith.constant dense<0.000000e+00> : vector<2x4xf32>
    %88 = vector.multi_reduction <add>, %87, %cst_27 [2] : vector<2x4x8xf32> to vector<2x4xf32>
    %cst_28 = arith.constant dense<0xFF800000> : vector<2xf32>
    %89 = vector.multi_reduction <maximumf>, %88, %cst_28 [1] : vector<2x4xf32> to vector<2xf32>
    %90 = vector.shape_cast %89 : vector<2xf32> to vector<2x1xf32>
    %91 = vector.broadcast %90 : vector<2x1xf32> to vector<2x4xf32>
    %92 = arith.subf %88, %91 : vector<2x4xf32>
    %93 = math.exp %92 : vector<2x4xf32>
    %cst_29 = arith.constant dense<0.000000e+00> : vector<2xf32>
    %94 = vector.multi_reduction <add>, %93, %cst_29 [1] : vector<2x4xf32> to vector<2xf32>
    %95 = vector.shape_cast %94 : vector<2xf32> to vector<2x1xf32>
    %96 = tpu.reciprocal %95 {approx = true} : vector<2x1xf32> -> vector<2x1xf32>
    %97 = vector.broadcast %96 : vector<2x1xf32> to vector<2x4xf32>
    %98 = arith.mulf %93, %97 : vector<2x4xf32>
    %99 = vector.extract_strided_slice %1 {offsets = [0, 0, 1], sizes = [2, 4, 1], strides = [1, 1, 1]} : vector<2x4x8xf32> to vector<2x4x1xf32>
    %100 = vector.shape_cast %99 : vector<2x4x1xf32> to vector<2x4xf32>
    %101 = arith.mulf %98, %100 : vector<2x4xf32>
    %102 = tpu.concatenate %101, %78 in 1 : vector<2x4xf32>, vector<2x16xf32> -> vector<2x20xf32>
    %cst_30 = arith.constant dense<0.000000e+00> : vector<2x64xf32>
    %103 = tpu.matmul %102, %11, %cst_30 {dimension_numbers = #tpu.dot_dimension_numbers<[1], [0], [0], [1], [0, 0, 1, 1], [], []>} : vector<2x20xf32>, vector<20x64xf32>, vector<2x64xf32> -> vector<2x64xf32>
    %104 = vector.broadcast %12 : vector<1x64xf32> to vector<2x64xf32>
    %105 = arith.addf %103, %104 : vector<2x64xf32>
    %106 = vector.extract_strided_slice %105 {offsets = [0, 0], sizes = [2, 16], strides = [1, 1]} : vector<2x64xf32> to vector<2x16xf32>
    %107 = arith.negf %106 : vector<2x16xf32>
    %108 = math.exp %107 : vector<2x16xf32>
    %cst_31 = arith.constant 1.000000e+00 : f32
    %109 = vector.broadcast %cst_31 : f32 to vector<2x16xf32>
    %110 = arith.addf %109, %108 : vector<2x16xf32>
    %111 = arith.divf %109, %110 : vector<2x16xf32>
    %112 = vector.extract_strided_slice %105 {offsets = [0, 16], sizes = [2, 16], strides = [1, 1]} : vector<2x64xf32> to vector<2x16xf32>
    %113 = arith.negf %112 : vector<2x16xf32>
    %114 = math.exp %113 : vector<2x16xf32>
    %cst_32 = arith.constant 1.000000e+00 : f32
    %115 = vector.broadcast %cst_32 : f32 to vector<2x16xf32>
    %116 = arith.addf %115, %114 : vector<2x16xf32>
    %117 = arith.divf %115, %116 : vector<2x16xf32>
    %118 = vector.extract_strided_slice %105 {offsets = [0, 32], sizes = [2, 16], strides = [1, 1]} : vector<2x64xf32> to vector<2x16xf32>
    %119 = math.tanh %118 : vector<2x16xf32>
    %120 = vector.extract_strided_slice %105 {offsets = [0, 48], sizes = [2, 16], strides = [1, 1]} : vector<2x64xf32> to vector<2x16xf32>
    %121 = arith.negf %120 : vector<2x16xf32>
    %122 = math.exp %121 : vector<2x16xf32>
    %cst_33 = arith.constant 1.000000e+00 : f32
    %123 = vector.broadcast %cst_33 : f32 to vector<2x16xf32>
    %124 = arith.addf %123, %122 : vector<2x16xf32>
    %125 = arith.divf %123, %124 : vector<2x16xf32>
    %126 = arith.mulf %117, %76 : vector<2x16xf32>
    %127 = arith.mulf %111, %119 : vector<2x16xf32>
    %128 = arith.addf %126, %127 : vector<2x16xf32>
    %129 = math.tanh %128 : vector<2x16xf32>
    %130 = arith.mulf %125, %129 : vector<2x16xf32>
    %131 = tpu.concatenate %130, %128 in 1 : vector<2x16xf32>, vector<2x16xf32> -> vector<2x32xf32>
    %cst_34 = arith.constant dense<0.000000e+00> : vector<2x8xf32>
    %132 = tpu.matmul %131, %3, %cst_34 {dimension_numbers = #tpu.dot_dimension_numbers<[1], [0], [0], [1], [0, 0, 1, 1], [], []>} : vector<2x32xf32>, vector<32x8xf32>, vector<2x8xf32> -> vector<2x8xf32>
    %133 = vector.shape_cast %132 : vector<2x8xf32> to vector<2x1x8xf32>
    %134 = vector.broadcast %133 : vector<2x1x8xf32> to vector<2x4x8xf32>
    %135 = arith.addf %24, %134 : vector<2x4x8xf32>
    %136 = math.tanh %135 : vector<2x4x8xf32>
    %137 = vector.shape_cast %5 : vector<1x8xf32> to vector<1x1x8xf32>
    %138 = vector.broadcast %137 : vector<1x1x8xf32> to vector<2x4x8xf32>
    %139 = arith.mulf %136, %138 : vector<2x4x8xf32>
    %cst_35 = arith.constant dense<0.000000e+00> : vector<2x4xf32>
    %140 = vector.multi_reduction <add>, %139, %cst_35 [2] : vector<2x4x8xf32> to vector<2x4xf32>
    %cst_36 = arith.constant dense<0xFF800000> : vector<2xf32>
    %141 = vector.multi_reduction <maximumf>, %140, %cst_36 [1] : vector<2x4xf32> to vector<2xf32>
    %142 = vector.shape_cast %141 : vector<2xf32> to vector<2x1xf32>
    %143 = vector.broadcast %142 : vector<2x1xf32> to vector<2x4xf32>
    %144 = arith.subf %140, %143 : vector<2x4xf32>
    %145 = math.exp %144 : vector<2x4xf32>
    %cst_37 = arith.constant dense<0.000000e+00> : vector<2xf32>
    %146 = vector.multi_reduction <add>, %145, %cst_37 [1] : vector<2x4xf32> to vector<2xf32>
    %147 = vector.shape_cast %146 : vector<2xf32> to vector<2x1xf32>
    %148 = tpu.reciprocal %147 {approx = true} : vector<2x1xf32> -> vector<2x1xf32>
    %149 = vector.broadcast %148 : vector<2x1xf32> to vector<2x4xf32>
    %150 = arith.mulf %145, %149 : vector<2x4xf32>
    %151 = vector.extract_strided_slice %1 {offsets = [0, 0, 2], sizes = [2, 4, 1], strides = [1, 1, 1]} : vector<2x4x8xf32> to vector<2x4x1xf32>
    %152 = vector.shape_cast %151 : vector<2x4x1xf32> to vector<2x4xf32>
    %153 = arith.mulf %150, %152 : vector<2x4xf32>
    %154 = tpu.concatenate %153, %130 in 1 : vector<2x4xf32>, vector<2x16xf32> -> vector<2x20xf32>
    %cst_38 = arith.constant dense<0.000000e+00> : vector<2x64xf32>
    %155 = tpu.matmul %154, %11, %cst_38 {dimension_numbers = #tpu.dot_dimension_numbers<[1], [0], [0], [1], [0, 0, 1, 1], [], []>} : vector<2x20xf32>, vector<20x64xf32>, vector<2x64xf32> -> vector<2x64xf32>
    %156 = vector.broadcast %12 : vector<1x64xf32> to vector<2x64xf32>
    %157 = arith.addf %155, %156 : vector<2x64xf32>
    %158 = vector.extract_strided_slice %157 {offsets = [0, 0], sizes = [2, 16], strides = [1, 1]} : vector<2x64xf32> to vector<2x16xf32>
    %159 = arith.negf %158 : vector<2x16xf32>
    %160 = math.exp %159 : vector<2x16xf32>
    %cst_39 = arith.constant 1.000000e+00 : f32
    %161 = vector.broadcast %cst_39 : f32 to vector<2x16xf32>
    %162 = arith.addf %161, %160 : vector<2x16xf32>
    %163 = arith.divf %161, %162 : vector<2x16xf32>
    %164 = vector.extract_strided_slice %157 {offsets = [0, 16], sizes = [2, 16], strides = [1, 1]} : vector<2x64xf32> to vector<2x16xf32>
    %165 = arith.negf %164 : vector<2x16xf32>
    %166 = math.exp %165 : vector<2x16xf32>
    %cst_40 = arith.constant 1.000000e+00 : f32
    %167 = vector.broadcast %cst_40 : f32 to vector<2x16xf32>
    %168 = arith.addf %167, %166 : vector<2x16xf32>
    %169 = arith.divf %167, %168 : vector<2x16xf32>
    %170 = vector.extract_strided_slice %157 {offsets = [0, 32], sizes = [2, 16], strides = [1, 1]} : vector<2x64xf32> to vector<2x16xf32>
    %171 = math.tanh %170 : vector<2x16xf32>
    %172 = vector.extract_strided_slice %157 {offsets = [0, 48], sizes = [2, 16], strides = [1, 1]} : vector<2x64xf32> to vector<2x16xf32>
    %173 = arith.negf %172 : vector<2x16xf32>
    %174 = math.exp %173 : vector<2x16xf32>
    %cst_41 = arith.constant 1.000000e+00 : f32
    %175 = vector.broadcast %cst_41 : f32 to vector<2x16xf32>
    %176 = arith.addf %175, %174 : vector<2x16xf32>
    %177 = arith.divf %175, %176 : vector<2x16xf32>
    %178 = arith.mulf %169, %128 : vector<2x16xf32>
    %179 = arith.mulf %163, %171 : vector<2x16xf32>
    %180 = arith.addf %178, %179 : vector<2x16xf32>
    %181 = math.tanh %180 : vector<2x16xf32>
    %182 = arith.mulf %177, %181 : vector<2x16xf32>
    %183 = tpu.concatenate %182, %180 in 1 : vector<2x16xf32>, vector<2x16xf32> -> vector<2x32xf32>
    %cst_42 = arith.constant dense<0.000000e+00> : vector<2x8xf32>
    %184 = tpu.matmul %183, %3, %cst_42 {dimension_numbers = #tpu.dot_dimension_numbers<[1], [0], [0], [1], [0, 0, 1, 1], [], []>} : vector<2x32xf32>, vector<32x8xf32>, vector<2x8xf32> -> vector<2x8xf32>
    %185 = vector.shape_cast %184 : vector<2x8xf32> to vector<2x1x8xf32>
    %186 = vector.broadcast %185 : vector<2x1x8xf32> to vector<2x4x8xf32>
    %187 = arith.addf %24, %186 : vector<2x4x8xf32>
    %188 = math.tanh %187 : vector<2x4x8xf32>
    %189 = vector.shape_cast %5 : vector<1x8xf32> to vector<1x1x8xf32>
    %190 = vector.broadcast %189 : vector<1x1x8xf32> to vector<2x4x8xf32>
    %191 = arith.mulf %188, %190 : vector<2x4x8xf32>
    %cst_43 = arith.constant dense<0.000000e+00> : vector<2x4xf32>
    %192 = vector.multi_reduction <add>, %191, %cst_43 [2] : vector<2x4x8xf32> to vector<2x4xf32>
    %cst_44 = arith.constant dense<0xFF800000> : vector<2xf32>
    %193 = vector.multi_reduction <maximumf>, %192, %cst_44 [1] : vector<2x4xf32> to vector<2xf32>
    %194 = vector.shape_cast %193 : vector<2xf32> to vector<2x1xf32>
    %195 = vector.broadcast %194 : vector<2x1xf32> to vector<2x4xf32>
    %196 = arith.subf %192, %195 : vector<2x4xf32>
    %197 = math.exp %196 : vector<2x4xf32>
    %cst_45 = arith.constant dense<0.000000e+00> : vector<2xf32>
    %198 = vector.multi_reduction <add>, %197, %cst_45 [1] : vector<2x4xf32> to vector<2xf32>
    %199 = vector.shape_cast %198 : vector<2xf32> to vector<2x1xf32>
    %200 = tpu.reciprocal %199 {approx = true} : vector<2x1xf32> -> vector<2x1xf32>
    %201 = vector.broadcast %200 : vector<2x1xf32> to vector<2x4xf32>
    %202 = arith.mulf %197, %201 : vector<2x4xf32>
    %203 = vector.extract_strided_slice %1 {offsets = [0, 0, 3], sizes = [2, 4, 1], strides = [1, 1, 1]} : vector<2x4x8xf32> to vector<2x4x1xf32>
    %204 = vector.shape_cast %203 : vector<2x4x1xf32> to vector<2x4xf32>
    %205 = arith.mulf %202, %204 : vector<2x4xf32>
    %206 = tpu.concatenate %205, %182 in 1 : vector<2x4xf32>, vector<2x16xf32> -> vector<2x20xf32>
    %cst_46 = arith.constant dense<0.000000e+00> : vector<2x64xf32>
    %207 = tpu.matmul %206, %11, %cst_46 {dimension_numbers = #tpu.dot_dimension_numbers<[1], [0], [0], [1], [0, 0, 1, 1], [], []>} : vector<2x20xf32>, vector<20x64xf32>, vector<2x64xf32> -> vector<2x64xf32>
    %208 = vector.broadcast %12 : vector<1x64xf32> to vector<2x64xf32>
    %209 = arith.addf %207, %208 : vector<2x64xf32>
    %210 = vector.extract_strided_slice %209 {offsets = [0, 0], sizes = [2, 16], strides = [1, 1]} : vector<2x64xf32> to vector<2x16xf32>
    %211 = arith.negf %210 : vector<2x16xf32>
    %212 = math.exp %211 : vector<2x16xf32>
    %cst_47 = arith.constant 1.000000e+00 : f32
    %213 = vector.broadcast %cst_47 : f32 to vector<2x16xf32>
    %214 = arith.addf %213, %212 : vector<2x16xf32>
    %215 = arith.divf %213, %214 : vector<2x16xf32>
    %216 = vector.extract_strided_slice %209 {offsets = [0, 16], sizes = [2, 16], strides = [1, 1]} : vector<2x64xf32> to vector<2x16xf32>
    %217 = arith.negf %216 : vector<2x16xf32>
    %218 = math.exp %217 : vector<2x16xf32>
    %cst_48 = arith.constant 1.000000e+00 : f32
    %219 = vector.broadcast %cst_48 : f32 to vector<2x16xf32>
    %220 = arith.addf %219, %218 : vector<2x16xf32>
    %221 = arith.divf %219, %220 : vector<2x16xf32>
    %222 = vector.extract_strided_slice %209 {offsets = [0, 32], sizes = [2, 16], strides = [1, 1]} : vector<2x64xf32> to vector<2x16xf32>
    %223 = math.tanh %222 : vector<2x16xf32>
    %224 = vector.extract_strided_slice %209 {offsets = [0, 48], sizes = [2, 16], strides = [1, 1]} : vector<2x64xf32> to vector<2x16xf32>
    %225 = arith.negf %224 : vector<2x16xf32>
    %226 = math.exp %225 : vector<2x16xf32>
    %cst_49 = arith.constant 1.000000e+00 : f32
    %227 = vector.broadcast %cst_49 : f32 to vector<2x16xf32>
    %228 = arith.addf %227, %226 : vector<2x16xf32>
    %229 = arith.divf %227, %228 : vector<2x16xf32>
    %230 = arith.mulf %221, %180 : vector<2x16xf32>
    %231 = arith.mulf %215, %223 : vector<2x16xf32>
    %232 = arith.addf %230, %231 : vector<2x16xf32>
    %233 = math.tanh %232 : vector<2x16xf32>
    %234 = arith.mulf %229, %233 : vector<2x16xf32>
    %235 = tpu.concatenate %234, %232 in 1 : vector<2x16xf32>, vector<2x16xf32> -> vector<2x32xf32>
    %cst_50 = arith.constant dense<0.000000e+00> : vector<2x8xf32>
    %236 = tpu.matmul %235, %3, %cst_50 {dimension_numbers = #tpu.dot_dimension_numbers<[1], [0], [0], [1], [0, 0, 1, 1], [], []>} : vector<2x32xf32>, vector<32x8xf32>, vector<2x8xf32> -> vector<2x8xf32>
    %237 = vector.shape_cast %236 : vector<2x8xf32> to vector<2x1x8xf32>
    %238 = vector.broadcast %237 : vector<2x1x8xf32> to vector<2x4x8xf32>
    %239 = arith.addf %24, %238 : vector<2x4x8xf32>
    %240 = math.tanh %239 : vector<2x4x8xf32>
    %241 = vector.shape_cast %5 : vector<1x8xf32> to vector<1x1x8xf32>
    %242 = vector.broadcast %241 : vector<1x1x8xf32> to vector<2x4x8xf32>
    %243 = arith.mulf %240, %242 : vector<2x4x8xf32>
    %cst_51 = arith.constant dense<0.000000e+00> : vector<2x4xf32>
    %244 = vector.multi_reduction <add>, %243, %cst_51 [2] : vector<2x4x8xf32> to vector<2x4xf32>
    %cst_52 = arith.constant dense<0xFF800000> : vector<2xf32>
    %245 = vector.multi_reduction <maximumf>, %244, %cst_52 [1] : vector<2x4xf32> to vector<2xf32>
    %246 = vector.shape_cast %245 : vector<2xf32> to vector<2x1xf32>
    %247 = vector.broadcast %246 : vector<2x1xf32> to vector<2x4xf32>
    %248 = arith.subf %244, %247 : vector<2x4xf32>
    %249 = math.exp %248 : vector<2x4xf32>
    %cst_53 = arith.constant dense<0.000000e+00> : vector<2xf32>
    %250 = vector.multi_reduction <add>, %249, %cst_53 [1] : vector<2x4xf32> to vector<2xf32>
    %251 = vector.shape_cast %250 : vector<2xf32> to vector<2x1xf32>
    %252 = tpu.reciprocal %251 {approx = true} : vector<2x1xf32> -> vector<2x1xf32>
    %253 = vector.broadcast %252 : vector<2x1xf32> to vector<2x4xf32>
    %254 = arith.mulf %249, %253 : vector<2x4xf32>
    %255 = vector.extract_strided_slice %1 {offsets = [0, 0, 4], sizes = [2, 4, 1], strides = [1, 1, 1]} : vector<2x4x8xf32> to vector<2x4x1xf32>
    %256 = vector.shape_cast %255 : vector<2x4x1xf32> to vector<2x4xf32>
    %257 = arith.mulf %254, %256 : vector<2x4xf32>
    %258 = tpu.concatenate %257, %234 in 1 : vector<2x4xf32>, vector<2x16xf32> -> vector<2x20xf32>
    %cst_54 = arith.constant dense<0.000000e+00> : vector<2x64xf32>
    %259 = tpu.matmul %258, %11, %cst_54 {dimension_numbers = #tpu.dot_dimension_numbers<[1], [0], [0], [1], [0, 0, 1, 1], [], []>} : vector<2x20xf32>, vector<20x64xf32>, vector<2x64xf32> -> vector<2x64xf32>
    %260 = vector.broadcast %12 : vector<1x64xf32> to vector<2x64xf32>
    %261 = arith.addf %259, %260 : vector<2x64xf32>
    %262 = vector.extract_strided_slice %261 {offsets = [0, 0], sizes = [2, 16], strides = [1, 1]} : vector<2x64xf32> to vector<2x16xf32>
    %263 = arith.negf %262 : vector<2x16xf32>
    %264 = math.exp %263 : vector<2x16xf32>
    %cst_55 = arith.constant 1.000000e+00 : f32
    %265 = vector.broadcast %cst_55 : f32 to vector<2x16xf32>
    %266 = arith.addf %265, %264 : vector<2x16xf32>
    %267 = arith.divf %265, %266 : vector<2x16xf32>
    %268 = vector.extract_strided_slice %261 {offsets = [0, 16], sizes = [2, 16], strides = [1, 1]} : vector<2x64xf32> to vector<2x16xf32>
    %269 = arith.negf %268 : vector<2x16xf32>
    %270 = math.exp %269 : vector<2x16xf32>
    %cst_56 = arith.constant 1.000000e+00 : f32
    %271 = vector.broadcast %cst_56 : f32 to vector<2x16xf32>
    %272 = arith.addf %271, %270 : vector<2x16xf32>
    %273 = arith.divf %271, %272 : vector<2x16xf32>
    %274 = vector.extract_strided_slice %261 {offsets = [0, 32], sizes = [2, 16], strides = [1, 1]} : vector<2x64xf32> to vector<2x16xf32>
    %275 = math.tanh %274 : vector<2x16xf32>
    %276 = vector.extract_strided_slice %261 {offsets = [0, 48], sizes = [2, 16], strides = [1, 1]} : vector<2x64xf32> to vector<2x16xf32>
    %277 = arith.negf %276 : vector<2x16xf32>
    %278 = math.exp %277 : vector<2x16xf32>
    %cst_57 = arith.constant 1.000000e+00 : f32
    %279 = vector.broadcast %cst_57 : f32 to vector<2x16xf32>
    %280 = arith.addf %279, %278 : vector<2x16xf32>
    %281 = arith.divf %279, %280 : vector<2x16xf32>
    %282 = arith.mulf %273, %232 : vector<2x16xf32>
    %283 = arith.mulf %267, %275 : vector<2x16xf32>
    %284 = arith.addf %282, %283 : vector<2x16xf32>
    %285 = math.tanh %284 : vector<2x16xf32>
    %286 = arith.mulf %281, %285 : vector<2x16xf32>
    %287 = tpu.concatenate %286, %284 in 1 : vector<2x16xf32>, vector<2x16xf32> -> vector<2x32xf32>
    %cst_58 = arith.constant dense<0.000000e+00> : vector<2x8xf32>
    %288 = tpu.matmul %287, %3, %cst_58 {dimension_numbers = #tpu.dot_dimension_numbers<[1], [0], [0], [1], [0, 0, 1, 1], [], []>} : vector<2x32xf32>, vector<32x8xf32>, vector<2x8xf32> -> vector<2x8xf32>
    %289 = vector.shape_cast %288 : vector<2x8xf32> to vector<2x1x8xf32>
    %290 = vector.broadcast %289 : vector<2x1x8xf32> to vector<2x4x8xf32>
    %291 = arith.addf %24, %290 : vector<2x4x8xf32>
    %292 = math.tanh %291 : vector<2x4x8xf32>
    %293 = vector.shape_cast %5 : vector<1x8xf32> to vector<1x1x8xf32>
    %294 = vector.broadcast %293 : vector<1x1x8xf32> to vector<2x4x8xf32>
    %295 = arith.mulf %292, %294 : vector<2x4x8xf32>
    %cst_59 = arith.constant dense<0.000000e+00> : vector<2x4xf32>
    %296 = vector.multi_reduction <add>, %295, %cst_59 [2] : vector<2x4x8xf32> to vector<2x4xf32>
    %cst_60 = arith.constant dense<0xFF800000> : vector<2xf32>
    %297 = vector.multi_reduction <maximumf>, %296, %cst_60 [1] : vector<2x4xf32> to vector<2xf32>
    %298 = vector.shape_cast %297 : vector<2xf32> to vector<2x1xf32>
    %299 = vector.broadcast %298 : vector<2x1xf32> to vector<2x4xf32>
    %300 = arith.subf %296, %299 : vector<2x4xf32>
    %301 = math.exp %300 : vector<2x4xf32>
    %cst_61 = arith.constant dense<0.000000e+00> : vector<2xf32>
    %302 = vector.multi_reduction <add>, %301, %cst_61 [1] : vector<2x4xf32> to vector<2xf32>
    %303 = vector.shape_cast %302 : vector<2xf32> to vector<2x1xf32>
    %304 = tpu.reciprocal %303 {approx = true} : vector<2x1xf32> -> vector<2x1xf32>
    %305 = vector.broadcast %304 : vector<2x1xf32> to vector<2x4xf32>
    %306 = arith.mulf %301, %305 : vector<2x4xf32>
    %307 = vector.extract_strided_slice %1 {offsets = [0, 0, 5], sizes = [2, 4, 1], strides = [1, 1, 1]} : vector<2x4x8xf32> to vector<2x4x1xf32>
    %308 = vector.shape_cast %307 : vector<2x4x1xf32> to vector<2x4xf32>
    %309 = arith.mulf %306, %308 : vector<2x4xf32>
    %310 = tpu.concatenate %309, %286 in 1 : vector<2x4xf32>, vector<2x16xf32> -> vector<2x20xf32>
    %cst_62 = arith.constant dense<0.000000e+00> : vector<2x64xf32>
    %311 = tpu.matmul %310, %11, %cst_62 {dimension_numbers = #tpu.dot_dimension_numbers<[1], [0], [0], [1], [0, 0, 1, 1], [], []>} : vector<2x20xf32>, vector<20x64xf32>, vector<2x64xf32> -> vector<2x64xf32>
    %312 = vector.broadcast %12 : vector<1x64xf32> to vector<2x64xf32>
    %313 = arith.addf %311, %312 : vector<2x64xf32>
    %314 = vector.extract_strided_slice %313 {offsets = [0, 0], sizes = [2, 16], strides = [1, 1]} : vector<2x64xf32> to vector<2x16xf32>
    %315 = arith.negf %314 : vector<2x16xf32>
    %316 = math.exp %315 : vector<2x16xf32>
    %cst_63 = arith.constant 1.000000e+00 : f32
    %317 = vector.broadcast %cst_63 : f32 to vector<2x16xf32>
    %318 = arith.addf %317, %316 : vector<2x16xf32>
    %319 = arith.divf %317, %318 : vector<2x16xf32>
    %320 = vector.extract_strided_slice %313 {offsets = [0, 16], sizes = [2, 16], strides = [1, 1]} : vector<2x64xf32> to vector<2x16xf32>
    %321 = arith.negf %320 : vector<2x16xf32>
    %322 = math.exp %321 : vector<2x16xf32>
    %cst_64 = arith.constant 1.000000e+00 : f32
    %323 = vector.broadcast %cst_64 : f32 to vector<2x16xf32>
    %324 = arith.addf %323, %322 : vector<2x16xf32>
    %325 = arith.divf %323, %324 : vector<2x16xf32>
    %326 = vector.extract_strided_slice %313 {offsets = [0, 32], sizes = [2, 16], strides = [1, 1]} : vector<2x64xf32> to vector<2x16xf32>
    %327 = math.tanh %326 : vector<2x16xf32>
    %328 = vector.extract_strided_slice %313 {offsets = [0, 48], sizes = [2, 16], strides = [1, 1]} : vector<2x64xf32> to vector<2x16xf32>
    %329 = arith.negf %328 : vector<2x16xf32>
    %330 = math.exp %329 : vector<2x16xf32>
    %cst_65 = arith.constant 1.000000e+00 : f32
    %331 = vector.broadcast %cst_65 : f32 to vector<2x16xf32>
    %332 = arith.addf %331, %330 : vector<2x16xf32>
    %333 = arith.divf %331, %332 : vector<2x16xf32>
    %334 = arith.mulf %325, %284 : vector<2x16xf32>
    %335 = arith.mulf %319, %327 : vector<2x16xf32>
    %336 = arith.addf %334, %335 : vector<2x16xf32>
    %337 = math.tanh %336 : vector<2x16xf32>
    %338 = arith.mulf %333, %337 : vector<2x16xf32>
    %339 = tpu.concatenate %338, %336 in 1 : vector<2x16xf32>, vector<2x16xf32> -> vector<2x32xf32>
    %cst_66 = arith.constant dense<0.000000e+00> : vector<2x8xf32>
    %340 = tpu.matmul %339, %3, %cst_66 {dimension_numbers = #tpu.dot_dimension_numbers<[1], [0], [0], [1], [0, 0, 1, 1], [], []>} : vector<2x32xf32>, vector<32x8xf32>, vector<2x8xf32> -> vector<2x8xf32>
    %341 = vector.shape_cast %340 : vector<2x8xf32> to vector<2x1x8xf32>
    %342 = vector.broadcast %341 : vector<2x1x8xf32> to vector<2x4x8xf32>
    %343 = arith.addf %24, %342 : vector<2x4x8xf32>
    %344 = math.tanh %343 : vector<2x4x8xf32>
    %345 = vector.shape_cast %5 : vector<1x8xf32> to vector<1x1x8xf32>
    %346 = vector.broadcast %345 : vector<1x1x8xf32> to vector<2x4x8xf32>
    %347 = arith.mulf %344, %346 : vector<2x4x8xf32>
    %cst_67 = arith.constant dense<0.000000e+00> : vector<2x4xf32>
    %348 = vector.multi_reduction <add>, %347, %cst_67 [2] : vector<2x4x8xf32> to vector<2x4xf32>
    %cst_68 = arith.constant dense<0xFF800000> : vector<2xf32>
    %349 = vector.multi_reduction <maximumf>, %348, %cst_68 [1] : vector<2x4xf32> to vector<2xf32>
    %350 = vector.shape_cast %349 : vector<2xf32> to vector<2x1xf32>
    %351 = vector.broadcast %350 : vector<2x1xf32> to vector<2x4xf32>
    %352 = arith.subf %348, %351 : vector<2x4xf32>
    %353 = math.exp %352 : vector<2x4xf32>
    %cst_69 = arith.constant dense<0.000000e+00> : vector<2xf32>
    %354 = vector.multi_reduction <add>, %353, %cst_69 [1] : vector<2x4xf32> to vector<2xf32>
    %355 = vector.shape_cast %354 : vector<2xf32> to vector<2x1xf32>
    %356 = tpu.reciprocal %355 {approx = true} : vector<2x1xf32> -> vector<2x1xf32>
    %357 = vector.broadcast %356 : vector<2x1xf32> to vector<2x4xf32>
    %358 = arith.mulf %353, %357 : vector<2x4xf32>
    %359 = vector.extract_strided_slice %1 {offsets = [0, 0, 6], sizes = [2, 4, 1], strides = [1, 1, 1]} : vector<2x4x8xf32> to vector<2x4x1xf32>
    %360 = vector.shape_cast %359 : vector<2x4x1xf32> to vector<2x4xf32>
    %361 = arith.mulf %358, %360 : vector<2x4xf32>
    %362 = tpu.concatenate %361, %338 in 1 : vector<2x4xf32>, vector<2x16xf32> -> vector<2x20xf32>
    %cst_70 = arith.constant dense<0.000000e+00> : vector<2x64xf32>
    %363 = tpu.matmul %362, %11, %cst_70 {dimension_numbers = #tpu.dot_dimension_numbers<[1], [0], [0], [1], [0, 0, 1, 1], [], []>} : vector<2x20xf32>, vector<20x64xf32>, vector<2x64xf32> -> vector<2x64xf32>
    %364 = vector.broadcast %12 : vector<1x64xf32> to vector<2x64xf32>
    %365 = arith.addf %363, %364 : vector<2x64xf32>
    %366 = vector.extract_strided_slice %365 {offsets = [0, 0], sizes = [2, 16], strides = [1, 1]} : vector<2x64xf32> to vector<2x16xf32>
    %367 = arith.negf %366 : vector<2x16xf32>
    %368 = math.exp %367 : vector<2x16xf32>
    %cst_71 = arith.constant 1.000000e+00 : f32
    %369 = vector.broadcast %cst_71 : f32 to vector<2x16xf32>
    %370 = arith.addf %369, %368 : vector<2x16xf32>
    %371 = arith.divf %369, %370 : vector<2x16xf32>
    %372 = vector.extract_strided_slice %365 {offsets = [0, 16], sizes = [2, 16], strides = [1, 1]} : vector<2x64xf32> to vector<2x16xf32>
    %373 = arith.negf %372 : vector<2x16xf32>
    %374 = math.exp %373 : vector<2x16xf32>
    %cst_72 = arith.constant 1.000000e+00 : f32
    %375 = vector.broadcast %cst_72 : f32 to vector<2x16xf32>
    %376 = arith.addf %375, %374 : vector<2x16xf32>
    %377 = arith.divf %375, %376 : vector<2x16xf32>
    %378 = vector.extract_strided_slice %365 {offsets = [0, 32], sizes = [2, 16], strides = [1, 1]} : vector<2x64xf32> to vector<2x16xf32>
    %379 = math.tanh %378 : vector<2x16xf32>
    %380 = vector.extract_strided_slice %365 {offsets = [0, 48], sizes = [2, 16], strides = [1, 1]} : vector<2x64xf32> to vector<2x16xf32>
    %381 = arith.negf %380 : vector<2x16xf32>
    %382 = math.exp %381 : vector<2x16xf32>
    %cst_73 = arith.constant 1.000000e+00 : f32
    %383 = vector.broadcast %cst_73 : f32 to vector<2x16xf32>
    %384 = arith.addf %383, %382 : vector<2x16xf32>
    %385 = arith.divf %383, %384 : vector<2x16xf32>
    %386 = arith.mulf %377, %336 : vector<2x16xf32>
    %387 = arith.mulf %371, %379 : vector<2x16xf32>
    %388 = arith.addf %386, %387 : vector<2x16xf32>
    %389 = math.tanh %388 : vector<2x16xf32>
    %390 = arith.mulf %385, %389 : vector<2x16xf32>
    %391 = tpu.concatenate %390, %388 in 1 : vector<2x16xf32>, vector<2x16xf32> -> vector<2x32xf32>
    %cst_74 = arith.constant dense<0.000000e+00> : vector<2x8xf32>
    %392 = tpu.matmul %391, %3, %cst_74 {dimension_numbers = #tpu.dot_dimension_numbers<[1], [0], [0], [1], [0, 0, 1, 1], [], []>} : vector<2x32xf32>, vector<32x8xf32>, vector<2x8xf32> -> vector<2x8xf32>
    %393 = vector.shape_cast %392 : vector<2x8xf32> to vector<2x1x8xf32>
    %394 = vector.broadcast %393 : vector<2x1x8xf32> to vector<2x4x8xf32>
    %395 = arith.addf %24, %394 : vector<2x4x8xf32>
    %396 = math.tanh %395 : vector<2x4x8xf32>
    %397 = vector.shape_cast %5 : vector<1x8xf32> to vector<1x1x8xf32>
    %398 = vector.broadcast %397 : vector<1x1x8xf32> to vector<2x4x8xf32>
    %399 = arith.mulf %396, %398 : vector<2x4x8xf32>
    %cst_75 = arith.constant dense<0.000000e+00> : vector<2x4xf32>
    %400 = vector.multi_reduction <add>, %399, %cst_75 [2] : vector<2x4x8xf32> to vector<2x4xf32>
    %cst_76 = arith.constant dense<0xFF800000> : vector<2xf32>
    %401 = vector.multi_reduction <maximumf>, %400, %cst_76 [1] : vector<2x4xf32> to vector<2xf32>
    %402 = vector.shape_cast %401 : vector<2xf32> to vector<2x1xf32>
    %403 = vector.broadcast %402 : vector<2x1xf32> to vector<2x4xf32>
    %404 = arith.subf %400, %403 : vector<2x4xf32>
    %405 = math.exp %404 : vector<2x4xf32>
    %cst_77 = arith.constant dense<0.000000e+00> : vector<2xf32>
    %406 = vector.multi_reduction <add>, %405, %cst_77 [1] : vector<2x4xf32> to vector<2xf32>
    %407 = vector.shape_cast %406 : vector<2xf32> to vector<2x1xf32>
    %408 = tpu.reciprocal %407 {approx = true} : vector<2x1xf32> -> vector<2x1xf32>
    %409 = vector.broadcast %408 : vector<2x1xf32> to vector<2x4xf32>
    %410 = arith.mulf %405, %409 : vector<2x4xf32>
    %411 = vector.extract_strided_slice %1 {offsets = [0, 0, 7], sizes = [2, 4, 1], strides = [1, 1, 1]} : vector<2x4x8xf32> to vector<2x4x1xf32>
    %412 = vector.shape_cast %411 : vector<2x4x1xf32> to vector<2x4xf32>
    %413 = arith.mulf %410, %412 : vector<2x4xf32>
    %414 = tpu.concatenate %413, %390 in 1 : vector<2x4xf32>, vector<2x16xf32> -> vector<2x20xf32>
    %cst_78 = arith.constant dense<0.000000e+00> : vector<2x64xf32>
    %415 = tpu.matmul %414, %11, %cst_78 {dimension_numbers = #tpu.dot_dimension_numbers<[1], [0], [0], [1], [0, 0, 1, 1], [], []>} : vector<2x20xf32>, vector<20x64xf32>, vector<2x64xf32> -> vector<2x64xf32>
    %416 = vector.broadcast %12 : vector<1x64xf32> to vector<2x64xf32>
    %417 = arith.addf %415, %416 : vector<2x64xf32>
    %418 = vector.extract_strided_slice %417 {offsets = [0, 0], sizes = [2, 16], strides = [1, 1]} : vector<2x64xf32> to vector<2x16xf32>
    %419 = arith.negf %418 : vector<2x16xf32>
    %420 = math.exp %419 : vector<2x16xf32>
    %cst_79 = arith.constant 1.000000e+00 : f32
    %421 = vector.broadcast %cst_79 : f32 to vector<2x16xf32>
    %422 = arith.addf %421, %420 : vector<2x16xf32>
    %423 = arith.divf %421, %422 : vector<2x16xf32>
    %424 = vector.extract_strided_slice %417 {offsets = [0, 16], sizes = [2, 16], strides = [1, 1]} : vector<2x64xf32> to vector<2x16xf32>
    %425 = arith.negf %424 : vector<2x16xf32>
    %426 = math.exp %425 : vector<2x16xf32>
    %cst_80 = arith.constant 1.000000e+00 : f32
    %427 = vector.broadcast %cst_80 : f32 to vector<2x16xf32>
    %428 = arith.addf %427, %426 : vector<2x16xf32>
    %429 = arith.divf %427, %428 : vector<2x16xf32>
    %430 = vector.extract_strided_slice %417 {offsets = [0, 32], sizes = [2, 16], strides = [1, 1]} : vector<2x64xf32> to vector<2x16xf32>
    %431 = math.tanh %430 : vector<2x16xf32>
    %432 = vector.extract_strided_slice %417 {offsets = [0, 48], sizes = [2, 16], strides = [1, 1]} : vector<2x64xf32> to vector<2x16xf32>
    %433 = arith.negf %432 : vector<2x16xf32>
    %434 = math.exp %433 : vector<2x16xf32>
    %cst_81 = arith.constant 1.000000e+00 : f32
    %435 = vector.broadcast %cst_81 : f32 to vector<2x16xf32>
    %436 = arith.addf %435, %434 : vector<2x16xf32>
    %437 = arith.divf %435, %436 : vector<2x16xf32>
    %438 = arith.mulf %429, %388 : vector<2x16xf32>
    %439 = arith.mulf %423, %431 : vector<2x16xf32>
    %440 = arith.addf %438, %439 : vector<2x16xf32>
    %441 = math.tanh %440 : vector<2x16xf32>
    %442 = arith.mulf %437, %441 : vector<2x16xf32>
    %443 = vector.shape_cast %78 : vector<2x16xf32> to vector<2x1x16xf32>
    %444 = vector.shape_cast %130 : vector<2x16xf32> to vector<2x1x16xf32>
    %445 = vector.shape_cast %182 : vector<2x16xf32> to vector<2x1x16xf32>
    %446 = vector.shape_cast %234 : vector<2x16xf32> to vector<2x1x16xf32>
    %447 = vector.shape_cast %286 : vector<2x16xf32> to vector<2x1x16xf32>
    %448 = vector.shape_cast %338 : vector<2x16xf32> to vector<2x1x16xf32>
    %449 = vector.shape_cast %390 : vector<2x16xf32> to vector<2x1x16xf32>
    %450 = vector.shape_cast %442 : vector<2x16xf32> to vector<2x1x16xf32>
    %451 = tpu.concatenate %443, %444, %445, %446, %447, %448, %449, %450 in 1 : vector<2x1x16xf32>, vector<2x1x16xf32>, vector<2x1x16xf32>, vector<2x1x16xf32>, vector<2x1x16xf32>, vector<2x1x16xf32>, vector<2x1x16xf32>, vector<2x1x16xf32> -> vector<2x8x16xf32>
    %452 = vector.shape_cast %451 : vector<2x8x16xf32> to vector<16x16xf32>
    %cst_82 = arith.constant dense<0.000000e+00> : vector<16x16xf32>
    %453 = tpu.matmul %452, %8, %cst_82 {dimension_numbers = #tpu.dot_dimension_numbers<[1], [0], [0], [1], [0, 0, 1, 1], [], []>} : vector<16x16xf32>, vector<16x16xf32>, vector<16x16xf32> -> vector<16x16xf32>
    %454 = vector.shape_cast %453 : vector<16x16xf32> to vector<2x8x16xf32>
    %cst_83 = arith.constant 0.000000e+00 : f32
    %455 = vector.broadcast %cst_83 : f32 to vector<2x16xf32>
    %cst_84 = arith.constant 0.000000e+00 : f32
    %456 = vector.broadcast %cst_84 : f32 to vector<2x16xf32>
    %457 = tpu.concatenate %455, %456 in 1 : vector<2x16xf32>, vector<2x16xf32> -> vector<2x32xf32>
    %cst_85 = arith.constant dense<0.000000e+00> : vector<2x16xf32>
    %458 = tpu.matmul %457, %7, %cst_85 {dimension_numbers = #tpu.dot_dimension_numbers<[1], [0], [0], [1], [0, 0, 1, 1], [], []>} : vector<2x32xf32>, vector<32x16xf32>, vector<2x16xf32> -> vector<2x16xf32>
    %459 = vector.shape_cast %458 : vector<2x16xf32> to vector<2x1x16xf32>
    %460 = vector.broadcast %459 : vector<2x1x16xf32> to vector<2x8x16xf32>
    %461 = arith.addf %454, %460 : vector<2x8x16xf32>
    %462 = math.tanh %461 : vector<2x8x16xf32>
    %463 = vector.shape_cast %9 : vector<1x16xf32> to vector<1x1x16xf32>
    %464 = vector.broadcast %463 : vector<1x1x16xf32> to vector<2x8x16xf32>
    %465 = arith.mulf %462, %464 : vector<2x8x16xf32>
    %cst_86 = arith.constant dense<0.000000e+00> : vector<2x8xf32>
    %466 = vector.multi_reduction <add>, %465, %cst_86 [2] : vector<2x8x16xf32> to vector<2x8xf32>
    %cst_87 = arith.constant dense<0xFF800000> : vector<2xf32>
    %467 = vector.multi_reduction <maximumf>, %466, %cst_87 [1] : vector<2x8xf32> to vector<2xf32>
    %468 = vector.shape_cast %467 : vector<2xf32> to vector<2x1xf32>
    %469 = vector.broadcast %468 : vector<2x1xf32> to vector<2x8xf32>
    %470 = arith.subf %466, %469 : vector<2x8xf32>
    %471 = math.exp %470 : vector<2x8xf32>
    %cst_88 = arith.constant dense<0.000000e+00> : vector<2xf32>
    %472 = vector.multi_reduction <add>, %471, %cst_88 [1] : vector<2x8xf32> to vector<2xf32>
    %473 = vector.shape_cast %472 : vector<2xf32> to vector<2x1xf32>
    %474 = tpu.reciprocal %473 {approx = true} : vector<2x1xf32> -> vector<2x1xf32>
    %475 = vector.broadcast %474 : vector<2x1xf32> to vector<2x8xf32>
    %476 = arith.mulf %471, %475 : vector<2x8xf32>
    %477 = vector.shape_cast %476 : vector<2x8xf32> to vector<2x8x1xf32>
    %478 = vector.broadcast %477 : vector<2x8x1xf32> to vector<2x8x16xf32>
    %479 = arith.mulf %478, %451 : vector<2x8x16xf32>
    %cst_89 = arith.constant dense<0.000000e+00> : vector<2x16xf32>
    %480 = vector.multi_reduction <add>, %479, %cst_89 [1] : vector<2x8x16xf32> to vector<2x16xf32>
    %481 = vector.extract_strided_slice %0 {offsets = [0, 0], sizes = [2, 1], strides = [1, 1]} : vector<2x8xf32> to vector<2x1xf32>
    %482 = tpu.concatenate %480, %481 in 1 : vector<2x16xf32>, vector<2x1xf32> -> vector<2x17xf32>
    %cst_90 = arith.constant dense<0.000000e+00> : vector<2x1xf32>
    %483 = tpu.matmul %482, %17, %cst_90 {dimension_numbers = #tpu.dot_dimension_numbers<[1], [0], [0], [1], [0, 0, 1, 1], [], []>} : vector<2x17xf32>, vector<17x1xf32>, vector<2x1xf32> -> vector<2x1xf32>
    %484 = vector.broadcast %18 : vector<1x1xf32> to vector<2x1xf32>
    %485 = arith.addf %483, %484 : vector<2x1xf32>
    %486 = tpu.concatenate %485, %455 in 1 : vector<2x1xf32>, vector<2x16xf32> -> vector<2x17xf32>
    %cst_91 = arith.constant dense<0.000000e+00> : vector<2x64xf32>
    %487 = tpu.matmul %486, %14, %cst_91 {dimension_numbers = #tpu.dot_dimension_numbers<[1], [0], [0], [1], [0, 0, 1, 1], [], []>} : vector<2x17xf32>, vector<17x64xf32>, vector<2x64xf32> -> vector<2x64xf32>
    %488 = vector.broadcast %15 : vector<1x64xf32> to vector<2x64xf32>
    %489 = arith.addf %487, %488 : vector<2x64xf32>
    %490 = vector.extract_strided_slice %489 {offsets = [0, 0], sizes = [2, 16], strides = [1, 1]} : vector<2x64xf32> to vector<2x16xf32>
    %491 = arith.negf %490 : vector<2x16xf32>
    %492 = math.exp %491 : vector<2x16xf32>
    %cst_92 = arith.constant 1.000000e+00 : f32
    %493 = vector.broadcast %cst_92 : f32 to vector<2x16xf32>
    %494 = arith.addf %493, %492 : vector<2x16xf32>
    %495 = arith.divf %493, %494 : vector<2x16xf32>
    %496 = vector.extract_strided_slice %489 {offsets = [0, 16], sizes = [2, 16], strides = [1, 1]} : vector<2x64xf32> to vector<2x16xf32>
    %497 = arith.negf %496 : vector<2x16xf32>
    %498 = math.exp %497 : vector<2x16xf32>
    %cst_93 = arith.constant 1.000000e+00 : f32
    %499 = vector.broadcast %cst_93 : f32 to vector<2x16xf32>
    %500 = arith.addf %499, %498 : vector<2x16xf32>
    %501 = arith.divf %499, %500 : vector<2x16xf32>
    %502 = vector.extract_strided_slice %489 {offsets = [0, 32], sizes = [2, 16], strides = [1, 1]} : vector<2x64xf32> to vector<2x16xf32>
    %503 = math.tanh %502 : vector<2x16xf32>
    %504 = vector.extract_strided_slice %489 {offsets = [0, 48], sizes = [2, 16], strides = [1, 1]} : vector<2x64xf32> to vector<2x16xf32>
    %505 = arith.negf %504 : vector<2x16xf32>
    %506 = math.exp %505 : vector<2x16xf32>
    %cst_94 = arith.constant 1.000000e+00 : f32
    %507 = vector.broadcast %cst_94 : f32 to vector<2x16xf32>
    %508 = arith.addf %507, %506 : vector<2x16xf32>
    %509 = arith.divf %507, %508 : vector<2x16xf32>
    %510 = arith.mulf %501, %456 : vector<2x16xf32>
    %511 = arith.mulf %495, %503 : vector<2x16xf32>
    %512 = arith.addf %510, %511 : vector<2x16xf32>
    %513 = math.tanh %512 : vector<2x16xf32>
    %514 = arith.mulf %509, %513 : vector<2x16xf32>
    %515 = tpu.concatenate %514, %512 in 1 : vector<2x16xf32>, vector<2x16xf32> -> vector<2x32xf32>
    %cst_95 = arith.constant dense<0.000000e+00> : vector<2x16xf32>
    %516 = tpu.matmul %515, %7, %cst_95 {dimension_numbers = #tpu.dot_dimension_numbers<[1], [0], [0], [1], [0, 0, 1, 1], [], []>} : vector<2x32xf32>, vector<32x16xf32>, vector<2x16xf32> -> vector<2x16xf32>
    %517 = vector.shape_cast %516 : vector<2x16xf32> to vector<2x1x16xf32>
    %518 = vector.broadcast %517 : vector<2x1x16xf32> to vector<2x8x16xf32>
    %519 = arith.addf %454, %518 : vector<2x8x16xf32>
    %520 = math.tanh %519 : vector<2x8x16xf32>
    %521 = vector.shape_cast %9 : vector<1x16xf32> to vector<1x1x16xf32>
    %522 = vector.broadcast %521 : vector<1x1x16xf32> to vector<2x8x16xf32>
    %523 = arith.mulf %520, %522 : vector<2x8x16xf32>
    %cst_96 = arith.constant dense<0.000000e+00> : vector<2x8xf32>
    %524 = vector.multi_reduction <add>, %523, %cst_96 [2] : vector<2x8x16xf32> to vector<2x8xf32>
    %cst_97 = arith.constant dense<0xFF800000> : vector<2xf32>
    %525 = vector.multi_reduction <maximumf>, %524, %cst_97 [1] : vector<2x8xf32> to vector<2xf32>
    %526 = vector.shape_cast %525 : vector<2xf32> to vector<2x1xf32>
    %527 = vector.broadcast %526 : vector<2x1xf32> to vector<2x8xf32>
    %528 = arith.subf %524, %527 : vector<2x8xf32>
    %529 = math.exp %528 : vector<2x8xf32>
    %cst_98 = arith.constant dense<0.000000e+00> : vector<2xf32>
    %530 = vector.multi_reduction <add>, %529, %cst_98 [1] : vector<2x8xf32> to vector<2xf32>
    %531 = vector.shape_cast %530 : vector<2xf32> to vector<2x1xf32>
    %532 = tpu.reciprocal %531 {approx = true} : vector<2x1xf32> -> vector<2x1xf32>
    %533 = vector.broadcast %532 : vector<2x1xf32> to vector<2x8xf32>
    %534 = arith.mulf %529, %533 : vector<2x8xf32>
    %535 = vector.shape_cast %534 : vector<2x8xf32> to vector<2x8x1xf32>
    %536 = vector.broadcast %535 : vector<2x8x1xf32> to vector<2x8x16xf32>
    %537 = arith.mulf %536, %451 : vector<2x8x16xf32>
    %cst_99 = arith.constant dense<0.000000e+00> : vector<2x16xf32>
    %538 = vector.multi_reduction <add>, %537, %cst_99 [1] : vector<2x8x16xf32> to vector<2x16xf32>
    %539 = vector.extract_strided_slice %0 {offsets = [0, 1], sizes = [2, 1], strides = [1, 1]} : vector<2x8xf32> to vector<2x1xf32>
    %540 = tpu.concatenate %538, %539 in 1 : vector<2x16xf32>, vector<2x1xf32> -> vector<2x17xf32>
    %cst_100 = arith.constant dense<0.000000e+00> : vector<2x1xf32>
    %541 = tpu.matmul %540, %17, %cst_100 {dimension_numbers = #tpu.dot_dimension_numbers<[1], [0], [0], [1], [0, 0, 1, 1], [], []>} : vector<2x17xf32>, vector<17x1xf32>, vector<2x1xf32> -> vector<2x1xf32>
    %542 = vector.broadcast %18 : vector<1x1xf32> to vector<2x1xf32>
    %543 = arith.addf %541, %542 : vector<2x1xf32>
    %544 = tpu.concatenate %543, %514 in 1 : vector<2x1xf32>, vector<2x16xf32> -> vector<2x17xf32>
    %cst_101 = arith.constant dense<0.000000e+00> : vector<2x64xf32>
    %545 = tpu.matmul %544, %14, %cst_101 {dimension_numbers = #tpu.dot_dimension_numbers<[1], [0], [0], [1], [0, 0, 1, 1], [], []>} : vector<2x17xf32>, vector<17x64xf32>, vector<2x64xf32> -> vector<2x64xf32>
    %546 = vector.broadcast %15 : vector<1x64xf32> to vector<2x64xf32>
    %547 = arith.addf %545, %546 : vector<2x64xf32>
    %548 = vector.extract_strided_slice %547 {offsets = [0, 0], sizes = [2, 16], strides = [1, 1]} : vector<2x64xf32> to vector<2x16xf32>
    %549 = arith.negf %548 : vector<2x16xf32>
    %550 = math.exp %549 : vector<2x16xf32>
    %cst_102 = arith.constant 1.000000e+00 : f32
    %551 = vector.broadcast %cst_102 : f32 to vector<2x16xf32>
    %552 = arith.addf %551, %550 : vector<2x16xf32>
    %553 = arith.divf %551, %552 : vector<2x16xf32>
    %554 = vector.extract_strided_slice %547 {offsets = [0, 16], sizes = [2, 16], strides = [1, 1]} : vector<2x64xf32> to vector<2x16xf32>
    %555 = arith.negf %554 : vector<2x16xf32>
    %556 = math.exp %555 : vector<2x16xf32>
    %cst_103 = arith.constant 1.000000e+00 : f32
    %557 = vector.broadcast %cst_103 : f32 to vector<2x16xf32>
    %558 = arith.addf %557, %556 : vector<2x16xf32>
    %559 = arith.divf %557, %558 : vector<2x16xf32>
    %560 = vector.extract_strided_slice %547 {offsets = [0, 32], sizes = [2, 16], strides = [1, 1]} : vector<2x64xf32> to vector<2x16xf32>
    %561 = math.tanh %560 : vector<2x16xf32>
    %562 = vector.extract_strided_slice %547 {offsets = [0, 48], sizes = [2, 16], strides = [1, 1]} : vector<2x64xf32> to vector<2x16xf32>
    %563 = arith.negf %562 : vector<2x16xf32>
    %564 = math.exp %563 : vector<2x16xf32>
    %cst_104 = arith.constant 1.000000e+00 : f32
    %565 = vector.broadcast %cst_104 : f32 to vector<2x16xf32>
    %566 = arith.addf %565, %564 : vector<2x16xf32>
    %567 = arith.divf %565, %566 : vector<2x16xf32>
    %568 = arith.mulf %559, %512 : vector<2x16xf32>
    %569 = arith.mulf %553, %561 : vector<2x16xf32>
    %570 = arith.addf %568, %569 : vector<2x16xf32>
    %571 = math.tanh %570 : vector<2x16xf32>
    %572 = arith.mulf %567, %571 : vector<2x16xf32>
    %573 = tpu.concatenate %572, %570 in 1 : vector<2x16xf32>, vector<2x16xf32> -> vector<2x32xf32>
    %cst_105 = arith.constant dense<0.000000e+00> : vector<2x16xf32>
    %574 = tpu.matmul %573, %7, %cst_105 {dimension_numbers = #tpu.dot_dimension_numbers<[1], [0], [0], [1], [0, 0, 1, 1], [], []>} : vector<2x32xf32>, vector<32x16xf32>, vector<2x16xf32> -> vector<2x16xf32>
    %575 = vector.shape_cast %574 : vector<2x16xf32> to vector<2x1x16xf32>
    %576 = vector.broadcast %575 : vector<2x1x16xf32> to vector<2x8x16xf32>
    %577 = arith.addf %454, %576 : vector<2x8x16xf32>
    %578 = math.tanh %577 : vector<2x8x16xf32>
    %579 = vector.shape_cast %9 : vector<1x16xf32> to vector<1x1x16xf32>
    %580 = vector.broadcast %579 : vector<1x1x16xf32> to vector<2x8x16xf32>
    %581 = arith.mulf %578, %580 : vector<2x8x16xf32>
    %cst_106 = arith.constant dense<0.000000e+00> : vector<2x8xf32>
    %582 = vector.multi_reduction <add>, %581, %cst_106 [2] : vector<2x8x16xf32> to vector<2x8xf32>
    %cst_107 = arith.constant dense<0xFF800000> : vector<2xf32>
    %583 = vector.multi_reduction <maximumf>, %582, %cst_107 [1] : vector<2x8xf32> to vector<2xf32>
    %584 = vector.shape_cast %583 : vector<2xf32> to vector<2x1xf32>
    %585 = vector.broadcast %584 : vector<2x1xf32> to vector<2x8xf32>
    %586 = arith.subf %582, %585 : vector<2x8xf32>
    %587 = math.exp %586 : vector<2x8xf32>
    %cst_108 = arith.constant dense<0.000000e+00> : vector<2xf32>
    %588 = vector.multi_reduction <add>, %587, %cst_108 [1] : vector<2x8xf32> to vector<2xf32>
    %589 = vector.shape_cast %588 : vector<2xf32> to vector<2x1xf32>
    %590 = tpu.reciprocal %589 {approx = true} : vector<2x1xf32> -> vector<2x1xf32>
    %591 = vector.broadcast %590 : vector<2x1xf32> to vector<2x8xf32>
    %592 = arith.mulf %587, %591 : vector<2x8xf32>
    %593 = vector.shape_cast %592 : vector<2x8xf32> to vector<2x8x1xf32>
    %594 = vector.broadcast %593 : vector<2x8x1xf32> to vector<2x8x16xf32>
    %595 = arith.mulf %594, %451 : vector<2x8x16xf32>
    %cst_109 = arith.constant dense<0.000000e+00> : vector<2x16xf32>
    %596 = vector.multi_reduction <add>, %595, %cst_109 [1] : vector<2x8x16xf32> to vector<2x16xf32>
    %597 = vector.extract_strided_slice %0 {offsets = [0, 2], sizes = [2, 1], strides = [1, 1]} : vector<2x8xf32> to vector<2x1xf32>
    %598 = tpu.concatenate %596, %597 in 1 : vector<2x16xf32>, vector<2x1xf32> -> vector<2x17xf32>
    %cst_110 = arith.constant dense<0.000000e+00> : vector<2x1xf32>
    %599 = tpu.matmul %598, %17, %cst_110 {dimension_numbers = #tpu.dot_dimension_numbers<[1], [0], [0], [1], [0, 0, 1, 1], [], []>} : vector<2x17xf32>, vector<17x1xf32>, vector<2x1xf32> -> vector<2x1xf32>
    %600 = vector.broadcast %18 : vector<1x1xf32> to vector<2x1xf32>
    %601 = arith.addf %599, %600 : vector<2x1xf32>
    %602 = tpu.concatenate %601, %572 in 1 : vector<2x1xf32>, vector<2x16xf32> -> vector<2x17xf32>
    %cst_111 = arith.constant dense<0.000000e+00> : vector<2x64xf32>
    %603 = tpu.matmul %602, %14, %cst_111 {dimension_numbers = #tpu.dot_dimension_numbers<[1], [0], [0], [1], [0, 0, 1, 1], [], []>} : vector<2x17xf32>, vector<17x64xf32>, vector<2x64xf32> -> vector<2x64xf32>
    %604 = vector.broadcast %15 : vector<1x64xf32> to vector<2x64xf32>
    %605 = arith.addf %603, %604 : vector<2x64xf32>
    %606 = vector.extract_strided_slice %605 {offsets = [0, 0], sizes = [2, 16], strides = [1, 1]} : vector<2x64xf32> to vector<2x16xf32>
    %607 = arith.negf %606 : vector<2x16xf32>
    %608 = math.exp %607 : vector<2x16xf32>
    %cst_112 = arith.constant 1.000000e+00 : f32
    %609 = vector.broadcast %cst_112 : f32 to vector<2x16xf32>
    %610 = arith.addf %609, %608 : vector<2x16xf32>
    %611 = arith.divf %609, %610 : vector<2x16xf32>
    %612 = vector.extract_strided_slice %605 {offsets = [0, 16], sizes = [2, 16], strides = [1, 1]} : vector<2x64xf32> to vector<2x16xf32>
    %613 = arith.negf %612 : vector<2x16xf32>
    %614 = math.exp %613 : vector<2x16xf32>
    %cst_113 = arith.constant 1.000000e+00 : f32
    %615 = vector.broadcast %cst_113 : f32 to vector<2x16xf32>
    %616 = arith.addf %615, %614 : vector<2x16xf32>
    %617 = arith.divf %615, %616 : vector<2x16xf32>
    %618 = vector.extract_strided_slice %605 {offsets = [0, 32], sizes = [2, 16], strides = [1, 1]} : vector<2x64xf32> to vector<2x16xf32>
    %619 = math.tanh %618 : vector<2x16xf32>
    %620 = vector.extract_strided_slice %605 {offsets = [0, 48], sizes = [2, 16], strides = [1, 1]} : vector<2x64xf32> to vector<2x16xf32>
    %621 = arith.negf %620 : vector<2x16xf32>
    %622 = math.exp %621 : vector<2x16xf32>
    %cst_114 = arith.constant 1.000000e+00 : f32
    %623 = vector.broadcast %cst_114 : f32 to vector<2x16xf32>
    %624 = arith.addf %623, %622 : vector<2x16xf32>
    %625 = arith.divf %623, %624 : vector<2x16xf32>
    %626 = arith.mulf %617, %570 : vector<2x16xf32>
    %627 = arith.mulf %611, %619 : vector<2x16xf32>
    %628 = arith.addf %626, %627 : vector<2x16xf32>
    %629 = math.tanh %628 : vector<2x16xf32>
    %630 = arith.mulf %625, %629 : vector<2x16xf32>
    %631 = tpu.concatenate %630, %628 in 1 : vector<2x16xf32>, vector<2x16xf32> -> vector<2x32xf32>
    %cst_115 = arith.constant dense<0.000000e+00> : vector<2x16xf32>
    %632 = tpu.matmul %631, %7, %cst_115 {dimension_numbers = #tpu.dot_dimension_numbers<[1], [0], [0], [1], [0, 0, 1, 1], [], []>} : vector<2x32xf32>, vector<32x16xf32>, vector<2x16xf32> -> vector<2x16xf32>
    %633 = vector.shape_cast %632 : vector<2x16xf32> to vector<2x1x16xf32>
    %634 = vector.broadcast %633 : vector<2x1x16xf32> to vector<2x8x16xf32>
    %635 = arith.addf %454, %634 : vector<2x8x16xf32>
    %636 = math.tanh %635 : vector<2x8x16xf32>
    %637 = vector.shape_cast %9 : vector<1x16xf32> to vector<1x1x16xf32>
    %638 = vector.broadcast %637 : vector<1x1x16xf32> to vector<2x8x16xf32>
    %639 = arith.mulf %636, %638 : vector<2x8x16xf32>
    %cst_116 = arith.constant dense<0.000000e+00> : vector<2x8xf32>
    %640 = vector.multi_reduction <add>, %639, %cst_116 [2] : vector<2x8x16xf32> to vector<2x8xf32>
    %cst_117 = arith.constant dense<0xFF800000> : vector<2xf32>
    %641 = vector.multi_reduction <maximumf>, %640, %cst_117 [1] : vector<2x8xf32> to vector<2xf32>
    %642 = vector.shape_cast %641 : vector<2xf32> to vector<2x1xf32>
    %643 = vector.broadcast %642 : vector<2x1xf32> to vector<2x8xf32>
    %644 = arith.subf %640, %643 : vector<2x8xf32>
    %645 = math.exp %644 : vector<2x8xf32>
    %cst_118 = arith.constant dense<0.000000e+00> : vector<2xf32>
    %646 = vector.multi_reduction <add>, %645, %cst_118 [1] : vector<2x8xf32> to vector<2xf32>
    %647 = vector.shape_cast %646 : vector<2xf32> to vector<2x1xf32>
    %648 = tpu.reciprocal %647 {approx = true} : vector<2x1xf32> -> vector<2x1xf32>
    %649 = vector.broadcast %648 : vector<2x1xf32> to vector<2x8xf32>
    %650 = arith.mulf %645, %649 : vector<2x8xf32>
    %651 = vector.shape_cast %650 : vector<2x8xf32> to vector<2x8x1xf32>
    %652 = vector.broadcast %651 : vector<2x8x1xf32> to vector<2x8x16xf32>
    %653 = arith.mulf %652, %451 : vector<2x8x16xf32>
    %cst_119 = arith.constant dense<0.000000e+00> : vector<2x16xf32>
    %654 = vector.multi_reduction <add>, %653, %cst_119 [1] : vector<2x8x16xf32> to vector<2x16xf32>
    %655 = vector.extract_strided_slice %0 {offsets = [0, 3], sizes = [2, 1], strides = [1, 1]} : vector<2x8xf32> to vector<2x1xf32>
    %656 = tpu.concatenate %654, %655 in 1 : vector<2x16xf32>, vector<2x1xf32> -> vector<2x17xf32>
    %cst_120 = arith.constant dense<0.000000e+00> : vector<2x1xf32>
    %657 = tpu.matmul %656, %17, %cst_120 {dimension_numbers = #tpu.dot_dimension_numbers<[1], [0], [0], [1], [0, 0, 1, 1], [], []>} : vector<2x17xf32>, vector<17x1xf32>, vector<2x1xf32> -> vector<2x1xf32>
    %658 = vector.broadcast %18 : vector<1x1xf32> to vector<2x1xf32>
    %659 = arith.addf %657, %658 : vector<2x1xf32>
    %660 = tpu.concatenate %659, %630 in 1 : vector<2x1xf32>, vector<2x16xf32> -> vector<2x17xf32>
    %cst_121 = arith.constant dense<0.000000e+00> : vector<2x64xf32>
    %661 = tpu.matmul %660, %14, %cst_121 {dimension_numbers = #tpu.dot_dimension_numbers<[1], [0], [0], [1], [0, 0, 1, 1], [], []>} : vector<2x17xf32>, vector<17x64xf32>, vector<2x64xf32> -> vector<2x64xf32>
    %662 = vector.broadcast %15 : vector<1x64xf32> to vector<2x64xf32>
    %663 = arith.addf %661, %662 : vector<2x64xf32>
    %664 = vector.extract_strided_slice %663 {offsets = [0, 0], sizes = [2, 16], strides = [1, 1]} : vector<2x64xf32> to vector<2x16xf32>
    %665 = arith.negf %664 : vector<2x16xf32>
    %666 = math.exp %665 : vector<2x16xf32>
    %cst_122 = arith.constant 1.000000e+00 : f32
    %667 = vector.broadcast %cst_122 : f32 to vector<2x16xf32>
    %668 = arith.addf %667, %666 : vector<2x16xf32>
    %669 = arith.divf %667, %668 : vector<2x16xf32>
    %670 = vector.extract_strided_slice %663 {offsets = [0, 16], sizes = [2, 16], strides = [1, 1]} : vector<2x64xf32> to vector<2x16xf32>
    %671 = arith.negf %670 : vector<2x16xf32>
    %672 = math.exp %671 : vector<2x16xf32>
    %cst_123 = arith.constant 1.000000e+00 : f32
    %673 = vector.broadcast %cst_123 : f32 to vector<2x16xf32>
    %674 = arith.addf %673, %672 : vector<2x16xf32>
    %675 = arith.divf %673, %674 : vector<2x16xf32>
    %676 = vector.extract_strided_slice %663 {offsets = [0, 32], sizes = [2, 16], strides = [1, 1]} : vector<2x64xf32> to vector<2x16xf32>
    %677 = math.tanh %676 : vector<2x16xf32>
    %678 = vector.extract_strided_slice %663 {offsets = [0, 48], sizes = [2, 16], strides = [1, 1]} : vector<2x64xf32> to vector<2x16xf32>
    %679 = arith.negf %678 : vector<2x16xf32>
    %680 = math.exp %679 : vector<2x16xf32>
    %cst_124 = arith.constant 1.000000e+00 : f32
    %681 = vector.broadcast %cst_124 : f32 to vector<2x16xf32>
    %682 = arith.addf %681, %680 : vector<2x16xf32>
    %683 = arith.divf %681, %682 : vector<2x16xf32>
    %684 = arith.mulf %675, %628 : vector<2x16xf32>
    %685 = arith.mulf %669, %677 : vector<2x16xf32>
    %686 = arith.addf %684, %685 : vector<2x16xf32>
    %687 = math.tanh %686 : vector<2x16xf32>
    %688 = arith.mulf %683, %687 : vector<2x16xf32>
    %689 = tpu.concatenate %688, %686 in 1 : vector<2x16xf32>, vector<2x16xf32> -> vector<2x32xf32>
    %cst_125 = arith.constant dense<0.000000e+00> : vector<2x16xf32>
    %690 = tpu.matmul %689, %7, %cst_125 {dimension_numbers = #tpu.dot_dimension_numbers<[1], [0], [0], [1], [0, 0, 1, 1], [], []>} : vector<2x32xf32>, vector<32x16xf32>, vector<2x16xf32> -> vector<2x16xf32>
    %691 = vector.shape_cast %690 : vector<2x16xf32> to vector<2x1x16xf32>
    %692 = vector.broadcast %691 : vector<2x1x16xf32> to vector<2x8x16xf32>
    %693 = arith.addf %454, %692 : vector<2x8x16xf32>
    %694 = math.tanh %693 : vector<2x8x16xf32>
    %695 = vector.shape_cast %9 : vector<1x16xf32> to vector<1x1x16xf32>
    %696 = vector.broadcast %695 : vector<1x1x16xf32> to vector<2x8x16xf32>
    %697 = arith.mulf %694, %696 : vector<2x8x16xf32>
    %cst_126 = arith.constant dense<0.000000e+00> : vector<2x8xf32>
    %698 = vector.multi_reduction <add>, %697, %cst_126 [2] : vector<2x8x16xf32> to vector<2x8xf32>
    %cst_127 = arith.constant dense<0xFF800000> : vector<2xf32>
    %699 = vector.multi_reduction <maximumf>, %698, %cst_127 [1] : vector<2x8xf32> to vector<2xf32>
    %700 = vector.shape_cast %699 : vector<2xf32> to vector<2x1xf32>
    %701 = vector.broadcast %700 : vector<2x1xf32> to vector<2x8xf32>
    %702 = arith.subf %698, %701 : vector<2x8xf32>
    %703 = math.exp %702 : vector<2x8xf32>
    %cst_128 = arith.constant dense<0.000000e+00> : vector<2xf32>
    %704 = vector.multi_reduction <add>, %703, %cst_128 [1] : vector<2x8xf32> to vector<2xf32>
    %705 = vector.shape_cast %704 : vector<2xf32> to vector<2x1xf32>
    %706 = tpu.reciprocal %705 {approx = true} : vector<2x1xf32> -> vector<2x1xf32>
    %707 = vector.broadcast %706 : vector<2x1xf32> to vector<2x8xf32>
    %708 = arith.mulf %703, %707 : vector<2x8xf32>
    %709 = vector.shape_cast %708 : vector<2x8xf32> to vector<2x8x1xf32>
    %710 = vector.broadcast %709 : vector<2x8x1xf32> to vector<2x8x16xf32>
    %711 = arith.mulf %710, %451 : vector<2x8x16xf32>
    %cst_129 = arith.constant dense<0.000000e+00> : vector<2x16xf32>
    %712 = vector.multi_reduction <add>, %711, %cst_129 [1] : vector<2x8x16xf32> to vector<2x16xf32>
    %713 = vector.extract_strided_slice %0 {offsets = [0, 4], sizes = [2, 1], strides = [1, 1]} : vector<2x8xf32> to vector<2x1xf32>
    %714 = tpu.concatenate %712, %713 in 1 : vector<2x16xf32>, vector<2x1xf32> -> vector<2x17xf32>
    %cst_130 = arith.constant dense<0.000000e+00> : vector<2x1xf32>
    %715 = tpu.matmul %714, %17, %cst_130 {dimension_numbers = #tpu.dot_dimension_numbers<[1], [0], [0], [1], [0, 0, 1, 1], [], []>} : vector<2x17xf32>, vector<17x1xf32>, vector<2x1xf32> -> vector<2x1xf32>
    %716 = vector.broadcast %18 : vector<1x1xf32> to vector<2x1xf32>
    %717 = arith.addf %715, %716 : vector<2x1xf32>
    %718 = tpu.concatenate %717, %688 in 1 : vector<2x1xf32>, vector<2x16xf32> -> vector<2x17xf32>
    %cst_131 = arith.constant dense<0.000000e+00> : vector<2x64xf32>
    %719 = tpu.matmul %718, %14, %cst_131 {dimension_numbers = #tpu.dot_dimension_numbers<[1], [0], [0], [1], [0, 0, 1, 1], [], []>} : vector<2x17xf32>, vector<17x64xf32>, vector<2x64xf32> -> vector<2x64xf32>
    %720 = vector.broadcast %15 : vector<1x64xf32> to vector<2x64xf32>
    %721 = arith.addf %719, %720 : vector<2x64xf32>
    %722 = vector.extract_strided_slice %721 {offsets = [0, 0], sizes = [2, 16], strides = [1, 1]} : vector<2x64xf32> to vector<2x16xf32>
    %723 = arith.negf %722 : vector<2x16xf32>
    %724 = math.exp %723 : vector<2x16xf32>
    %cst_132 = arith.constant 1.000000e+00 : f32
    %725 = vector.broadcast %cst_132 : f32 to vector<2x16xf32>
    %726 = arith.addf %725, %724 : vector<2x16xf32>
    %727 = arith.divf %725, %726 : vector<2x16xf32>
    %728 = vector.extract_strided_slice %721 {offsets = [0, 16], sizes = [2, 16], strides = [1, 1]} : vector<2x64xf32> to vector<2x16xf32>
    %729 = arith.negf %728 : vector<2x16xf32>
    %730 = math.exp %729 : vector<2x16xf32>
    %cst_133 = arith.constant 1.000000e+00 : f32
    %731 = vector.broadcast %cst_133 : f32 to vector<2x16xf32>
    %732 = arith.addf %731, %730 : vector<2x16xf32>
    %733 = arith.divf %731, %732 : vector<2x16xf32>
    %734 = vector.extract_strided_slice %721 {offsets = [0, 32], sizes = [2, 16], strides = [1, 1]} : vector<2x64xf32> to vector<2x16xf32>
    %735 = math.tanh %734 : vector<2x16xf32>
    %736 = vector.extract_strided_slice %721 {offsets = [0, 48], sizes = [2, 16], strides = [1, 1]} : vector<2x64xf32> to vector<2x16xf32>
    %737 = arith.negf %736 : vector<2x16xf32>
    %738 = math.exp %737 : vector<2x16xf32>
    %cst_134 = arith.constant 1.000000e+00 : f32
    %739 = vector.broadcast %cst_134 : f32 to vector<2x16xf32>
    %740 = arith.addf %739, %738 : vector<2x16xf32>
    %741 = arith.divf %739, %740 : vector<2x16xf32>
    %742 = arith.mulf %733, %686 : vector<2x16xf32>
    %743 = arith.mulf %727, %735 : vector<2x16xf32>
    %744 = arith.addf %742, %743 : vector<2x16xf32>
    %745 = math.tanh %744 : vector<2x16xf32>
    %746 = arith.mulf %741, %745 : vector<2x16xf32>
    %747 = tpu.concatenate %746, %744 in 1 : vector<2x16xf32>, vector<2x16xf32> -> vector<2x32xf32>
    %cst_135 = arith.constant dense<0.000000e+00> : vector<2x16xf32>
    %748 = tpu.matmul %747, %7, %cst_135 {dimension_numbers = #tpu.dot_dimension_numbers<[1], [0], [0], [1], [0, 0, 1, 1], [], []>} : vector<2x32xf32>, vector<32x16xf32>, vector<2x16xf32> -> vector<2x16xf32>
    %749 = vector.shape_cast %748 : vector<2x16xf32> to vector<2x1x16xf32>
    %750 = vector.broadcast %749 : vector<2x1x16xf32> to vector<2x8x16xf32>
    %751 = arith.addf %454, %750 : vector<2x8x16xf32>
    %752 = math.tanh %751 : vector<2x8x16xf32>
    %753 = vector.shape_cast %9 : vector<1x16xf32> to vector<1x1x16xf32>
    %754 = vector.broadcast %753 : vector<1x1x16xf32> to vector<2x8x16xf32>
    %755 = arith.mulf %752, %754 : vector<2x8x16xf32>
    %cst_136 = arith.constant dense<0.000000e+00> : vector<2x8xf32>
    %756 = vector.multi_reduction <add>, %755, %cst_136 [2] : vector<2x8x16xf32> to vector<2x8xf32>
    %cst_137 = arith.constant dense<0xFF800000> : vector<2xf32>
    %757 = vector.multi_reduction <maximumf>, %756, %cst_137 [1] : vector<2x8xf32> to vector<2xf32>
    %758 = vector.shape_cast %757 : vector<2xf32> to vector<2x1xf32>
    %759 = vector.broadcast %758 : vector<2x1xf32> to vector<2x8xf32>
    %760 = arith.subf %756, %759 : vector<2x8xf32>
    %761 = math.exp %760 : vector<2x8xf32>
    %cst_138 = arith.constant dense<0.000000e+00> : vector<2xf32>
    %762 = vector.multi_reduction <add>, %761, %cst_138 [1] : vector<2x8xf32> to vector<2xf32>
    %763 = vector.shape_cast %762 : vector<2xf32> to vector<2x1xf32>
    %764 = tpu.reciprocal %763 {approx = true} : vector<2x1xf32> -> vector<2x1xf32>
    %765 = vector.broadcast %764 : vector<2x1xf32> to vector<2x8xf32>
    %766 = arith.mulf %761, %765 : vector<2x8xf32>
    %767 = vector.shape_cast %766 : vector<2x8xf32> to vector<2x8x1xf32>
    %768 = vector.broadcast %767 : vector<2x8x1xf32> to vector<2x8x16xf32>
    %769 = arith.mulf %768, %451 : vector<2x8x16xf32>
    %cst_139 = arith.constant dense<0.000000e+00> : vector<2x16xf32>
    %770 = vector.multi_reduction <add>, %769, %cst_139 [1] : vector<2x8x16xf32> to vector<2x16xf32>
    %771 = vector.extract_strided_slice %0 {offsets = [0, 5], sizes = [2, 1], strides = [1, 1]} : vector<2x8xf32> to vector<2x1xf32>
    %772 = tpu.concatenate %770, %771 in 1 : vector<2x16xf32>, vector<2x1xf32> -> vector<2x17xf32>
    %cst_140 = arith.constant dense<0.000000e+00> : vector<2x1xf32>
    %773 = tpu.matmul %772, %17, %cst_140 {dimension_numbers = #tpu.dot_dimension_numbers<[1], [0], [0], [1], [0, 0, 1, 1], [], []>} : vector<2x17xf32>, vector<17x1xf32>, vector<2x1xf32> -> vector<2x1xf32>
    %774 = vector.broadcast %18 : vector<1x1xf32> to vector<2x1xf32>
    %775 = arith.addf %773, %774 : vector<2x1xf32>
    %776 = tpu.concatenate %775, %746 in 1 : vector<2x1xf32>, vector<2x16xf32> -> vector<2x17xf32>
    %cst_141 = arith.constant dense<0.000000e+00> : vector<2x64xf32>
    %777 = tpu.matmul %776, %14, %cst_141 {dimension_numbers = #tpu.dot_dimension_numbers<[1], [0], [0], [1], [0, 0, 1, 1], [], []>} : vector<2x17xf32>, vector<17x64xf32>, vector<2x64xf32> -> vector<2x64xf32>
    %778 = vector.broadcast %15 : vector<1x64xf32> to vector<2x64xf32>
    %779 = arith.addf %777, %778 : vector<2x64xf32>
    %780 = vector.extract_strided_slice %779 {offsets = [0, 0], sizes = [2, 16], strides = [1, 1]} : vector<2x64xf32> to vector<2x16xf32>
    %781 = arith.negf %780 : vector<2x16xf32>
    %782 = math.exp %781 : vector<2x16xf32>
    %cst_142 = arith.constant 1.000000e+00 : f32
    %783 = vector.broadcast %cst_142 : f32 to vector<2x16xf32>
    %784 = arith.addf %783, %782 : vector<2x16xf32>
    %785 = arith.divf %783, %784 : vector<2x16xf32>
    %786 = vector.extract_strided_slice %779 {offsets = [0, 16], sizes = [2, 16], strides = [1, 1]} : vector<2x64xf32> to vector<2x16xf32>
    %787 = arith.negf %786 : vector<2x16xf32>
    %788 = math.exp %787 : vector<2x16xf32>
    %cst_143 = arith.constant 1.000000e+00 : f32
    %789 = vector.broadcast %cst_143 : f32 to vector<2x16xf32>
    %790 = arith.addf %789, %788 : vector<2x16xf32>
    %791 = arith.divf %789, %790 : vector<2x16xf32>
    %792 = vector.extract_strided_slice %779 {offsets = [0, 32], sizes = [2, 16], strides = [1, 1]} : vector<2x64xf32> to vector<2x16xf32>
    %793 = math.tanh %792 : vector<2x16xf32>
    %794 = vector.extract_strided_slice %779 {offsets = [0, 48], sizes = [2, 16], strides = [1, 1]} : vector<2x64xf32> to vector<2x16xf32>
    %795 = arith.negf %794 : vector<2x16xf32>
    %796 = math.exp %795 : vector<2x16xf32>
    %cst_144 = arith.constant 1.000000e+00 : f32
    %797 = vector.broadcast %cst_144 : f32 to vector<2x16xf32>
    %798 = arith.addf %797, %796 : vector<2x16xf32>
    %799 = arith.divf %797, %798 : vector<2x16xf32>
    %800 = arith.mulf %791, %744 : vector<2x16xf32>
    %801 = arith.mulf %785, %793 : vector<2x16xf32>
    %802 = arith.addf %800, %801 : vector<2x16xf32>
    %803 = math.tanh %802 : vector<2x16xf32>
    %804 = arith.mulf %799, %803 : vector<2x16xf32>
    %805 = tpu.concatenate %804, %802 in 1 : vector<2x16xf32>, vector<2x16xf32> -> vector<2x32xf32>
    %cst_145 = arith.constant dense<0.000000e+00> : vector<2x16xf32>
    %806 = tpu.matmul %805, %7, %cst_145 {dimension_numbers = #tpu.dot_dimension_numbers<[1], [0], [0], [1], [0, 0, 1, 1], [], []>} : vector<2x32xf32>, vector<32x16xf32>, vector<2x16xf32> -> vector<2x16xf32>
    %807 = vector.shape_cast %806 : vector<2x16xf32> to vector<2x1x16xf32>
    %808 = vector.broadcast %807 : vector<2x1x16xf32> to vector<2x8x16xf32>
    %809 = arith.addf %454, %808 : vector<2x8x16xf32>
    %810 = math.tanh %809 : vector<2x8x16xf32>
    %811 = vector.shape_cast %9 : vector<1x16xf32> to vector<1x1x16xf32>
    %812 = vector.broadcast %811 : vector<1x1x16xf32> to vector<2x8x16xf32>
    %813 = arith.mulf %810, %812 : vector<2x8x16xf32>
    %cst_146 = arith.constant dense<0.000000e+00> : vector<2x8xf32>
    %814 = vector.multi_reduction <add>, %813, %cst_146 [2] : vector<2x8x16xf32> to vector<2x8xf32>
    %cst_147 = arith.constant dense<0xFF800000> : vector<2xf32>
    %815 = vector.multi_reduction <maximumf>, %814, %cst_147 [1] : vector<2x8xf32> to vector<2xf32>
    %816 = vector.shape_cast %815 : vector<2xf32> to vector<2x1xf32>
    %817 = vector.broadcast %816 : vector<2x1xf32> to vector<2x8xf32>
    %818 = arith.subf %814, %817 : vector<2x8xf32>
    %819 = math.exp %818 : vector<2x8xf32>
    %cst_148 = arith.constant dense<0.000000e+00> : vector<2xf32>
    %820 = vector.multi_reduction <add>, %819, %cst_148 [1] : vector<2x8xf32> to vector<2xf32>
    %821 = vector.shape_cast %820 : vector<2xf32> to vector<2x1xf32>
    %822 = tpu.reciprocal %821 {approx = true} : vector<2x1xf32> -> vector<2x1xf32>
    %823 = vector.broadcast %822 : vector<2x1xf32> to vector<2x8xf32>
    %824 = arith.mulf %819, %823 : vector<2x8xf32>
    %825 = vector.shape_cast %824 : vector<2x8xf32> to vector<2x8x1xf32>
    %826 = vector.broadcast %825 : vector<2x8x1xf32> to vector<2x8x16xf32>
    %827 = arith.mulf %826, %451 : vector<2x8x16xf32>
    %cst_149 = arith.constant dense<0.000000e+00> : vector<2x16xf32>
    %828 = vector.multi_reduction <add>, %827, %cst_149 [1] : vector<2x8x16xf32> to vector<2x16xf32>
    %829 = vector.extract_strided_slice %0 {offsets = [0, 6], sizes = [2, 1], strides = [1, 1]} : vector<2x8xf32> to vector<2x1xf32>
    %830 = tpu.concatenate %828, %829 in 1 : vector<2x16xf32>, vector<2x1xf32> -> vector<2x17xf32>
    %cst_150 = arith.constant dense<0.000000e+00> : vector<2x1xf32>
    %831 = tpu.matmul %830, %17, %cst_150 {dimension_numbers = #tpu.dot_dimension_numbers<[1], [0], [0], [1], [0, 0, 1, 1], [], []>} : vector<2x17xf32>, vector<17x1xf32>, vector<2x1xf32> -> vector<2x1xf32>
    %832 = vector.broadcast %18 : vector<1x1xf32> to vector<2x1xf32>
    %833 = arith.addf %831, %832 : vector<2x1xf32>
    %834 = tpu.concatenate %833, %804 in 1 : vector<2x1xf32>, vector<2x16xf32> -> vector<2x17xf32>
    %cst_151 = arith.constant dense<0.000000e+00> : vector<2x64xf32>
    %835 = tpu.matmul %834, %14, %cst_151 {dimension_numbers = #tpu.dot_dimension_numbers<[1], [0], [0], [1], [0, 0, 1, 1], [], []>} : vector<2x17xf32>, vector<17x64xf32>, vector<2x64xf32> -> vector<2x64xf32>
    %836 = vector.broadcast %15 : vector<1x64xf32> to vector<2x64xf32>
    %837 = arith.addf %835, %836 : vector<2x64xf32>
    %838 = vector.extract_strided_slice %837 {offsets = [0, 0], sizes = [2, 16], strides = [1, 1]} : vector<2x64xf32> to vector<2x16xf32>
    %839 = arith.negf %838 : vector<2x16xf32>
    %840 = math.exp %839 : vector<2x16xf32>
    %cst_152 = arith.constant 1.000000e+00 : f32
    %841 = vector.broadcast %cst_152 : f32 to vector<2x16xf32>
    %842 = arith.addf %841, %840 : vector<2x16xf32>
    %843 = arith.divf %841, %842 : vector<2x16xf32>
    %844 = vector.extract_strided_slice %837 {offsets = [0, 16], sizes = [2, 16], strides = [1, 1]} : vector<2x64xf32> to vector<2x16xf32>
    %845 = arith.negf %844 : vector<2x16xf32>
    %846 = math.exp %845 : vector<2x16xf32>
    %cst_153 = arith.constant 1.000000e+00 : f32
    %847 = vector.broadcast %cst_153 : f32 to vector<2x16xf32>
    %848 = arith.addf %847, %846 : vector<2x16xf32>
    %849 = arith.divf %847, %848 : vector<2x16xf32>
    %850 = vector.extract_strided_slice %837 {offsets = [0, 32], sizes = [2, 16], strides = [1, 1]} : vector<2x64xf32> to vector<2x16xf32>
    %851 = math.tanh %850 : vector<2x16xf32>
    %852 = vector.extract_strided_slice %837 {offsets = [0, 48], sizes = [2, 16], strides = [1, 1]} : vector<2x64xf32> to vector<2x16xf32>
    %853 = arith.negf %852 : vector<2x16xf32>
    %854 = math.exp %853 : vector<2x16xf32>
    %cst_154 = arith.constant 1.000000e+00 : f32
    %855 = vector.broadcast %cst_154 : f32 to vector<2x16xf32>
    %856 = arith.addf %855, %854 : vector<2x16xf32>
    %857 = arith.divf %855, %856 : vector<2x16xf32>
    %858 = arith.mulf %849, %802 : vector<2x16xf32>
    %859 = arith.mulf %843, %851 : vector<2x16xf32>
    %860 = arith.addf %858, %859 : vector<2x16xf32>
    %861 = math.tanh %860 : vector<2x16xf32>
    %862 = arith.mulf %857, %861 : vector<2x16xf32>
    %863 = tpu.concatenate %862, %860 in 1 : vector<2x16xf32>, vector<2x16xf32> -> vector<2x32xf32>
    %cst_155 = arith.constant dense<0.000000e+00> : vector<2x16xf32>
    %864 = tpu.matmul %863, %7, %cst_155 {dimension_numbers = #tpu.dot_dimension_numbers<[1], [0], [0], [1], [0, 0, 1, 1], [], []>} : vector<2x32xf32>, vector<32x16xf32>, vector<2x16xf32> -> vector<2x16xf32>
    %865 = vector.shape_cast %864 : vector<2x16xf32> to vector<2x1x16xf32>
    %866 = vector.broadcast %865 : vector<2x1x16xf32> to vector<2x8x16xf32>
    %867 = arith.addf %454, %866 : vector<2x8x16xf32>
    %868 = math.tanh %867 : vector<2x8x16xf32>
    %869 = vector.shape_cast %9 : vector<1x16xf32> to vector<1x1x16xf32>
    %870 = vector.broadcast %869 : vector<1x1x16xf32> to vector<2x8x16xf32>
    %871 = arith.mulf %868, %870 : vector<2x8x16xf32>
    %cst_156 = arith.constant dense<0.000000e+00> : vector<2x8xf32>
    %872 = vector.multi_reduction <add>, %871, %cst_156 [2] : vector<2x8x16xf32> to vector<2x8xf32>
    %cst_157 = arith.constant dense<0xFF800000> : vector<2xf32>
    %873 = vector.multi_reduction <maximumf>, %872, %cst_157 [1] : vector<2x8xf32> to vector<2xf32>
    %874 = vector.shape_cast %873 : vector<2xf32> to vector<2x1xf32>
    %875 = vector.broadcast %874 : vector<2x1xf32> to vector<2x8xf32>
    %876 = arith.subf %872, %875 : vector<2x8xf32>
    %877 = math.exp %876 : vector<2x8xf32>
    %cst_158 = arith.constant dense<0.000000e+00> : vector<2xf32>
    %878 = vector.multi_reduction <add>, %877, %cst_158 [1] : vector<2x8xf32> to vector<2xf32>
    %879 = vector.shape_cast %878 : vector<2xf32> to vector<2x1xf32>
    %880 = tpu.reciprocal %879 {approx = true} : vector<2x1xf32> -> vector<2x1xf32>
    %881 = vector.broadcast %880 : vector<2x1xf32> to vector<2x8xf32>
    %882 = arith.mulf %877, %881 : vector<2x8xf32>
    %883 = vector.shape_cast %882 : vector<2x8xf32> to vector<2x8x1xf32>
    %884 = vector.broadcast %883 : vector<2x8x1xf32> to vector<2x8x16xf32>
    %885 = arith.mulf %884, %451 : vector<2x8x16xf32>
    %cst_159 = arith.constant dense<0.000000e+00> : vector<2x16xf32>
    %886 = vector.multi_reduction <add>, %885, %cst_159 [1] : vector<2x8x16xf32> to vector<2x16xf32>
    %887 = vector.extract_strided_slice %0 {offsets = [0, 7], sizes = [2, 1], strides = [1, 1]} : vector<2x8xf32> to vector<2x1xf32>
    %888 = tpu.concatenate %886, %887 in 1 : vector<2x16xf32>, vector<2x1xf32> -> vector<2x17xf32>
    %cst_160 = arith.constant dense<0.000000e+00> : vector<2x1xf32>
    %889 = tpu.matmul %888, %17, %cst_160 {dimension_numbers = #tpu.dot_dimension_numbers<[1], [0], [0], [1], [0, 0, 1, 1], [], []>} : vector<2x17xf32>, vector<17x1xf32>, vector<2x1xf32> -> vector<2x1xf32>
    %890 = vector.broadcast %18 : vector<1x1xf32> to vector<2x1xf32>
    %891 = arith.addf %889, %890 : vector<2x1xf32>
    %892 = tpu.concatenate %891, %862 in 1 : vector<2x1xf32>, vector<2x16xf32> -> vector<2x17xf32>
    %cst_161 = arith.constant dense<0.000000e+00> : vector<2x64xf32>
    %893 = tpu.matmul %892, %14, %cst_161 {dimension_numbers = #tpu.dot_dimension_numbers<[1], [0], [0], [1], [0, 0, 1, 1], [], []>} : vector<2x17xf32>, vector<17x64xf32>, vector<2x64xf32> -> vector<2x64xf32>
    %894 = vector.broadcast %15 : vector<1x64xf32> to vector<2x64xf32>
    %895 = arith.addf %893, %894 : vector<2x64xf32>
    %896 = vector.extract_strided_slice %895 {offsets = [0, 0], sizes = [2, 16], strides = [1, 1]} : vector<2x64xf32> to vector<2x16xf32>
    %897 = arith.negf %896 : vector<2x16xf32>
    %898 = math.exp %897 : vector<2x16xf32>
    %cst_162 = arith.constant 1.000000e+00 : f32
    %899 = vector.broadcast %cst_162 : f32 to vector<2x16xf32>
    %900 = arith.addf %899, %898 : vector<2x16xf32>
    %901 = arith.divf %899, %900 : vector<2x16xf32>
    %902 = vector.extract_strided_slice %895 {offsets = [0, 16], sizes = [2, 16], strides = [1, 1]} : vector<2x64xf32> to vector<2x16xf32>
    %903 = arith.negf %902 : vector<2x16xf32>
    %904 = math.exp %903 : vector<2x16xf32>
    %cst_163 = arith.constant 1.000000e+00 : f32
    %905 = vector.broadcast %cst_163 : f32 to vector<2x16xf32>
    %906 = arith.addf %905, %904 : vector<2x16xf32>
    %907 = arith.divf %905, %906 : vector<2x16xf32>
    %908 = vector.extract_strided_slice %895 {offsets = [0, 32], sizes = [2, 16], strides = [1, 1]} : vector<2x64xf32> to vector<2x16xf32>
    %909 = math.tanh %908 : vector<2x16xf32>
    %910 = vector.extract_strided_slice %895 {offsets = [0, 48], sizes = [2, 16], strides = [1, 1]} : vector<2x64xf32> to vector<2x16xf32>
    %911 = arith.negf %910 : vector<2x16xf32>
    %912 = math.exp %911 : vector<2x16xf32>
    %cst_164 = arith.constant 1.000000e+00 : f32
    %913 = vector.broadcast %cst_164 : f32 to vector<2x16xf32>
    %914 = arith.addf %913, %912 : vector<2x16xf32>
    %915 = arith.divf %913, %914 : vector<2x16xf32>
    %916 = arith.mulf %907, %860 : vector<2x16xf32>
    %917 = arith.mulf %901, %909 : vector<2x16xf32>
    %918 = arith.addf %916, %917 : vector<2x16xf32>
    %919 = math.tanh %918 : vector<2x16xf32>
    %920 = arith.mulf %915, %919 : vector<2x16xf32>
    %cst_165 = arith.constant dense<0.000000e+00> : vector<2x2xf32>
    %921 = tpu.matmul %920, %20, %cst_165 {dimension_numbers = #tpu.dot_dimension_numbers<[1], [0], [0], [1], [0, 0, 1, 1], [], []>} : vector<2x16xf32>, vector<16x2xf32>, vector<2x2xf32> -> vector<2x2xf32>
    %922 = vector.broadcast %21 : vector<1x2xf32> to vector<2x2xf32>
    %923 = arith.addf %921, %922 : vector<2x2xf32>
    %c0_166 = arith.constant 0 : index
    %c0_167 = arith.constant 0 : index
    %924 = vector.load %arg8[%c0_166, %c0_167] : memref<2x2xf32, #tpu.memory_space<vmem>>, vector<2x2xf32>
    tpu.vector_store %arg8[%c0_166, %c0_167], %923 {strides = array<i32>} : memref<2x2xf32, #tpu.memory_space<vmem>>, vector<2x2xf32>,
    return
  }
}

</mosaic_0001>

<llo_original>
// kernel: tpu_custom_call.1
$region0: #{tpu_custom_call.1}
  #allocation0 [shape = 'u32[]', space=smem, size = 0x4, offset = 0x4, fixed_abs, tag = 'smem constant byte address 0x4 - core index']
  #allocation1 [shape = 'u32[72,128]{1,0:T(1,128)}', space=vmem, size = 0x9000, scoped, tag = 'internal scratch']
  %s0 = inlined_call_operand.vmem [shape: f32[2,8], index: 0, kind: input, shape index: {}]
  %s1 = inlined_call_operand.vmem [shape: f32[2,4,8], index: 1, kind: input, shape index: {}]
  %s2 = inlined_call_operand.vmem [shape: f32[41,8], index: 2, kind: input, shape index: {}]
  %s3 = inlined_call_operand.vmem [shape: f32[49,16], index: 3, kind: input, shape index: {}]
  %s4 = inlined_call_operand.vmem [shape: f32[21,64], index: 4, kind: input, shape index: {}]
  %s5 = inlined_call_operand.vmem [shape: f32[18,64], index: 5, kind: input, shape index: {}]
  %s6 = inlined_call_operand.vmem [shape: f32[18,1], index: 6, kind: input, shape index: {}]
  %s7 = inlined_call_operand.vmem [shape: f32[17,2], index: 7, kind: input, shape index: {}]
  %s8 = inlined_call_operand.hbm [shape: f32[2,2], index: 8, kind: output, shape index: {}]
  %s9 = sld [smem:[#allocation0]]
  $region42: #{tpu_custom_call.1} parent=0
    _
  %s11 = ssub.s32 1, %s9
  %s12 = scalar_select 0, %s11, %s9
  $region1: #{tpu_custom_call.1} parent=0
    #allocation2 [shape = 'u8[1024]{0}', space=vmem, size = 0x400, scoped, tag = 'output window, operand 0, single buffered']
    #allocation3 [shape = 's32[1]{0}', space=sflag, size = 0x4, scoped, tag = 'scoped memory for tpu_custom_call.1']
    %13 = vsyncpa [#allocation3], 0
    // Predicated region
    $region2: #{tpu_custom_call.1} parent=1 // pred_check
      _
    $region3: #{tpu_custom_call.1} parent=1 // pred_check_branch
      %15 = sbr.rel (0) target = $region5
    $region4: #{tpu_custom_call.1} parent=1 // pred_region
      _
    $region5: #{tpu_custom_call.1} parent=1 // pred_fallthru
      _
    // Predicated region
    $region6: #{tpu_custom_call.1} parent=1 // pred_check
      _
    $region7: #{tpu_custom_call.1} parent=1 // pred_check_branch
      %17 = sbr.rel (0) target = $region9
    $region8: #{tpu_custom_call.1} parent=1 // pred_region
      _
    $region9: #{tpu_custom_call.1} parent=1 // pred_fallthru
      _
    // Predicated region
    $region10: #{tpu_custom_call.1} parent=1 // pred_check
      _
    $region11: #{tpu_custom_call.1} parent=1 // pred_check_branch
      %19 = sbr.rel (0) target = $region13
    $region12: #{tpu_custom_call.1} parent=1 // pred_region
      _
    $region13: #{tpu_custom_call.1} parent=1 // pred_fallthru
      _
    // Predicated region
    $region14: #{tpu_custom_call.1} parent=1 // pred_check
      _
    $region15: #{tpu_custom_call.1} parent=1 // pred_check_branch
      %21 = sbr.rel (0) target = $region17
    $region16: #{tpu_custom_call.1} parent=1 // pred_region
      _
    $region17: #{tpu_custom_call.1} parent=1 // pred_fallthru
      _
    // Predicated region
    $region18: #{tpu_custom_call.1} parent=1 // pred_check
      _
    $region19: #{tpu_custom_call.1} parent=1 // pred_check_branch
      %23 = sbr.rel (0) target = $region21
    $region20: #{tpu_custom_call.1} parent=1 // pred_region
      _
    $region21: #{tpu_custom_call.1} parent=1 // pred_fallthru
      _
    // Predicated region
    $region22: #{tpu_custom_call.1} parent=1 // pred_check
      _
    $region23: #{tpu_custom_call.1} parent=1 // pred_check_branch
      %25 = sbr.rel (0) target = $region25
    $region24: #{tpu_custom_call.1} parent=1 // pred_region
      _
    $region25: #{tpu_custom_call.1} parent=1 // pred_fallthru
      _
    // Predicated region
    $region26: #{tpu_custom_call.1} parent=1 // pred_check
      _
    $region27: #{tpu_custom_call.1} parent=1 // pred_check_branch
      %27 = sbr.rel (0) target = $region29
    $region28: #{tpu_custom_call.1} parent=1 // pred_region
      _
    $region29: #{tpu_custom_call.1} parent=1 // pred_fallthru
      _
    // Predicated region
    $region30: #{tpu_custom_call.1} parent=1 // pred_check
      _
    $region31: #{tpu_custom_call.1} parent=1 // pred_check_branch
      %29 = sbr.rel (0) target = $region33
    $region32: #{tpu_custom_call.1} parent=1 // pred_region
      _
    $region33: #{tpu_custom_call.1} parent=1 // pred_fallthru
      _
    %v30 = vld [vmem:[%s0] sm:$0x3]
    %v31 = vld [vmem:[%s1] sm:$0xf]
    %v32 = vld [vmem:[%s1 + $0x4] sm:$0xf]
    %v33 = vld [vmem:[%s2] sm:$0xff]
    %v34 = vld [vmem:[%s2 + $0x8] sm:$0xff]
    %v35 = vld [vmem:[%s2 + $0x10] sm:$0xff]
    %v36 = vld [vmem:[%s2 + $0x18] sm:$0xff]
    %v37 = vld [vmem:[%s2 + $0x20] sm:$0xff]
    %v38 = vld [vmem:[%s2 + $0x28] sm:$0x1]
    %v39 = vld [vmem:[%s3] sm:$0xff]
    %v40 = vld [vmem:[%s3 + $0x8] sm:$0xff]
    %v41 = vld [vmem:[%s3 + $0x10] sm:$0xff]
    %v42 = vld [vmem:[%s3 + $0x18] sm:$0xff]
    %v43 = vld [vmem:[%s3 + $0x20] sm:$0xff]
    %v44 = vld [vmem:[%s3 + $0x28] sm:$0xff]
    %v45 = vld [vmem:[%s3 + $0x30] sm:$0x1]
    %v46 = vld [vmem:[%s4] sm:$0xff]
    %v47 = vld [vmem:[%s4 + $0x8] sm:$0xff]
    %v48 = vld [vmem:[%s4 + $0x10] sm:$0x1f]
    %v49 = vld [vmem:[%s5] sm:$0xff]
    %v50 = vld [vmem:[%s5 + $0x8] sm:$0xff]
    %v51 = vld [vmem:[%s5 + $0x10] sm:$0x3]
    %v52 = vld [vmem:[%s6] sm:$0xff]
    %v53 = vld [vmem:[%s6 + $0x8] sm:$0xff]
    %v54 = vld [vmem:[%s6 + $0x10] sm:$0x3]
    %v55 = vld [vmem:[%s7] sm:$0xff]
    %v56 = vld [vmem:[%s7 + $0x8] sm:$0xff]
    %v57 = vld [vmem:[%s7 + $0x10] sm:$0x1]
    %60 = vst [vmem:[#allocation1] ss:$2 sm:$0xff] %v31
    %s61 = scalar_lea.vmem [#allocation1], 1
    %62 = vst [vmem:[%s61] ss:$2 sm:$0xff] %v32
    %v63 = vld.sshfl [vmem:[#allocation1] sm:$0xff pattern:$0x75316420]
    %vm64 = vcmask 64512
    %v65 = vsel %vm64, %v63, 0
    %67 = vmatpush.msra.mxu0 0.0
    %68 = vmatpush.msra.mxu0 0.0
    %69 = vmatpush.msra.mxu0 0.0
    %70 = vmatpush.msra.mxu0 0.0
    %71 = vmatpush.msra.mxu0 0.0
    %72 = vmatpush.msra.mxu0 0.0
    %73 = vmatpush.msra.mxu0 0.0
    %74 = vmatpush.msra.mxu0 0.0
    %75 = vmatpush.msra.mxu0 0.0
    %76 = vmatpush.msra.mxu0 0.0
    %77 = vmatpush.msra.mxu0 0.0
    %78 = vmatpush.msra.mxu0 0.0
    %79 = vmatpush.msra.mxu0 0.0
    %80 = vmatpush.msra.mxu0 0.0
    %81 = vmatpush.msra.mxu0 0.0
    %82 = vmatpush.msra.mxu0 %v37
    %83 = vmatmul.f32.gmra.mxu0 %v65
    %v84 = vpop.f32.mrf.mxu0
    %v85 = vadd.f32 0.0, %v84
    %86 = vdwg.mxu0
    %v88 = vrot.slane %v85, 4
    %vm90 = vcmask 261120
    %v92 = vsel %vm90, 0.0, 0
    %94 = vmatpush.msra.mxu0 0.0
    %95 = vmatpush.msra.mxu0 0.0
    %96 = vmatpush.msra.mxu0 0.0
    %97 = vmatpush.msra.mxu0 0.0
    %98 = vmatpush.msra.mxu0 0.0
    %99 = vmatpush.msra.mxu0 0.0
    %100 = vmatpush.msra.mxu0 0.0
    %101 = vmatpush.msra.mxu0 0.0
    %102 = vmatpush.msra.mxu0 0.0
    %103 = vmatpush.msra.mxu0 0.0
    %104 = vmatpush.msra.mxu0 0.0
    %105 = vmatpush.msra.mxu0 0.0
    %106 = vmatpush.msra.mxu0 %v36
    %107 = vmatpush.msra.mxu0 %v35
    %108 = vmatpush.msra.mxu0 %v34
    %109 = vmatpush.msra.mxu0 %v33
    %110 = vmatmul.f32.gmra.mxu0 %v92
    %v111 = vpop.f32.mrf.mxu0
    %v112 = vadd.f32 0.0, %v111
    %113 = vdwg.mxu0
    %v115 = vrot.slane %v112, 1
    %v116 = vperm.slane %v112, 0
    %v117 = vperm.slane %v115, 0
    %v120 = vadd.f32 %v85, %v116
    %v121 = vadd.f32 %v88, %v117
    %v122 = vtanh.pop %v120
    %v123 = vtanh.pop %v121
    %v124 = vperm.slane %v38, 0
    %v125 = vmul.f32 %v122, %v124
    %v126 = vmul.f32 %v123, %v124
    %vm127 = vcmask 60416
    %v128 = vsel %vm127, %v125, 0.0
    %129 = vadd.xlane.f32.xlu0 %v128
    %v130 = vpop.xlane.xlu0 %129
    %v131 = vsel %vm127, %v126, 0.0
    %132 = vadd.xlane.f32.xlu0 %v131
    %v133 = vpop.xlane.xlu0 %132
    %v136 = vlaneseq
    %v137 = vand.u32 %v136, 127
    %v138 = vperm.slane %v130, %v137
    %v139 = vperm.slane %v133, %v137
    %vm140 = vcmask 1041409
    %v141 = vsel %vm140, %v139, %v138
    %vm143 = vcmask 25600
    %v144 = vsel %vm143, %v141, -inf
    %145 = vmax.xlane.f32.xlu0 %v144
    %v146 = vpop.xlane.xlu0 %145
    %v148 = vperm.slane %v146, 0
    %v149 = vperm.slane %v146, 1
    %v152 = vsub.f32 %v130, %v148
    %v153 = vsub.f32 %v133, %v149
    %v154 = vmul.f32 %v152, 1.442695
    %v155 = vpow.pop %v154
    %v156 = vmul.f32 %v153, 1.442695
    %v157 = vpow.pop %v156
    %160 = vset.pattern.permute.xlu0 0
    %161 = vperm.xlu0 %160, %v155
    %v162 = vpop.permute.xlu0 %161
    %163 = vset.pattern.permute.xlu0 0
    %164 = vperm.xlu0 %163, %v157
    %v165 = vpop.permute.xlu0 %164
    %v166 = vperm.slane %v162, %v137
    %v167 = vperm.slane %v165, %v137
    %v168 = vsel %vm140, %v167, %v166
    %v170 = vsel %vm143, %v168, 0.0
    %171 = vadd.xlane.f32.xlu0 %v170
    %v172 = vpop.xlane.xlu0 %171
    %v173 = vrcp.pop %v172
    %v175 = vperm.slane %v173, 0
    %v176 = vperm.slane %v173, 1
    %v179 = vmul.f32 %v155, %v175
    %v180 = vmul.f32 %v157, %v176
    %v181 = vmul.f32 %v179, %v31
    %v182 = vmul.f32 %v180, %v32
    %185 = vset.pattern.permute.xlu0 0
    %186 = vperm.xlu0 %185, %v181
    %v187 = vpop.permute.xlu0 %186
    %188 = vset.pattern.permute.xlu0 0
    %189 = vperm.xlu0 %188, %v182
    %v190 = vpop.permute.xlu0 %189
    %v191 = vperm.slane %v187, %v137
    %v192 = vperm.slane %v190, %v137
    %v193 = vsel %vm140, %v192, %v191
    %vm195 = vcmask 31744
    %v196 = vsel %vm195, %v193, 0.0
    %v197 = vperm.slane %v48, 4
    %vm198 = vcmask 162816
    %v200 = vsel %vm198, %v196, 0
    %vm202 = vcmask 1043456
    %v204 = vsel %vm202, %v48, 0
    %206 = vmatpush.msra.mxu0 0.0
    %207 = vmatpush.msra.mxu0 0.0
    %208 = vmatpush.msra.mxu0 0.0
    %209 = vmatpush.msra.mxu0 0.0
    %210 = vmatpush.msra.mxu0 0.0
    %211 = vmatpush.msra.mxu0 0.0
    %212 = vmatpush.msra.mxu0 0.0
    %213 = vmatpush.msra.mxu0 0.0
    %214 = vmatpush.msra.mxu0 0.0
    %215 = vmatpush.msra.mxu0 0.0
    %216 = vmatpush.msra.mxu0 0.0
    %217 = vmatpush.msra.mxu0 0.0
    %218 = vmatpush.msra.mxu0 0.0
    %219 = vmatpush.msra.mxu0 %v204
    %220 = vmatpush.msra.mxu0 %v47
    %221 = vmatpush.msra.mxu0 %v46
    %222 = vmatmul.f32.gmra.mxu0 %v200
    %v223 = vpop.f32.mrf.mxu0
    %v224 = vadd.f32 %v197, %v223
    %225 = vdwg.mxu0
    %v226 = vxor.u32 %v224, 2147483648
    %v227 = vmul.f32 %v226, 1.442695
    %v228 = vpow.pop %v227
    %v229 = vadd.f32 %v228, 1.0
    %v230 = vrcp.pop %v229
    %v231 = vmul.f32 %v229, %v230
    %v232 = vsub.f32 1.0, %v231
    %v233 = vmul.f32 %v230, %v232
    %v234 = vadd.f32 %v230, %v233
    %vm235 = vweird.f32 %v229
    %vm236 = vweird.f32 %v230
    %vm237 = vmor %vm235, %vm236
    %v238 = vsel %vm237, %v230, %v234
    %v239 = vand.u32 2147483647, %v229
    %vm240 = vcmp.eq.f32.partialorder %v239, 8.507059e+37
    %v241 = vand.u32 %v229, 2147483648
    %v242 = vor.u32 1.1754944e-38, %v241
    %v243 = vsel %vm240, %v242, %v238
    %v244 = vmul.f32 1.0, %v243
    %v245 = vtanh.pop %v224
    %v246 = vmul.f32 %v244, 0.0
    %248 = vrot.lane.b32.xlu0 %v245, 96
    %v249 = vpop.permute.xlu0 %248
    %v251 = vmul.f32 %v244, %v249
    %253 = vrot.lane.b32.xlu0 %v251, 16
    %v254 = vpop.permute.xlu0 %253
    %v256 = vadd.f32 %v246, %v254
    %v257 = vtanh.pop %v256
    %259 = vrot.lane.b32.xlu0 %v257, 32
    %v260 = vpop.permute.xlu0 %259
    %v262 = vmul.f32 %v244, %v260
    %264 = vrot.lane.b32.xlu0 %v262, 80
    %v265 = vpop.permute.xlu0 %264
    %vm267 = vcmask 130048
    %v268 = vsel %vm267, %v265, %v256
    %v270 = vsel %vm90, %v268, 0
    %272 = vmatpush.msra.mxu0 0.0
    %273 = vmatpush.msra.mxu0 0.0
    %274 = vmatpush.msra.mxu0 0.0
    %275 = vmatpush.msra.mxu0 0.0
    %276 = vmatpush.msra.mxu0 0.0
    %277 = vmatpush.msra.mxu0 0.0
    %278 = vmatpush.msra.mxu0 0.0
    %279 = vmatpush.msra.mxu0 0.0
    %280 = vmatpush.msra.mxu0 0.0
    %281 = vmatpush.msra.mxu0 0.0
    %282 = vmatpush.msra.mxu0 0.0
    %283 = vmatpush.msra.mxu0 0.0
    %284 = vmatpush.msra.mxu0 %v36
    %285 = vmatpush.msra.mxu0 %v35
    %286 = vmatpush.msra.mxu0 %v34
    %287 = vmatpush.msra.mxu0 %v33
    %288 = vmatmul.f32.gmra.mxu0 %v270
    %v289 = vpop.f32.mrf.mxu0
    %v290 = vadd.f32 0.0, %v289
    %291 = vdwg.mxu0
    %v293 = vrot.slane %v290, 1
    %v294 = vperm.slane %v290, 0
    %v295 = vperm.slane %v293, 0
    %v298 = vadd.f32 %v85, %v294
    %v299 = vadd.f32 %v88, %v295
    %v300 = vtanh.pop %v298
    %v301 = vtanh.pop %v299
    %v302 = vmul.f32 %v300, %v124
    %v303 = vmul.f32 %v301, %v124
    %v304 = vsel %vm127, %v302, 0.0
    %305 = vadd.xlane.f32.xlu0 %v304
    %v306 = vpop.xlane.xlu0 %305
    %v307 = vsel %vm127, %v303, 0.0
    %308 = vadd.xlane.f32.xlu0 %v307
    %v309 = vpop.xlane.xlu0 %308
    %v312 = vperm.slane %v306, %v137
    %v313 = vperm.slane %v309, %v137
    %v314 = vsel %vm140, %v313, %v312
    %v316 = vsel %vm143, %v314, -inf
    %317 = vmax.xlane.f32.xlu0 %v316
    %v318 = vpop.xlane.xlu0 %317
    %v320 = vperm.slane %v318, 0
    %v321 = vperm.slane %v318, 1
    %v324 = vsub.f32 %v306, %v320
    %v325 = vsub.f32 %v309, %v321
    %v326 = vmul.f32 %v324, 1.442695
    %v327 = vpow.pop %v326
    %v328 = vmul.f32 %v325, 1.442695
    %v329 = vpow.pop %v328
    %332 = vset.pattern.permute.xlu0 0
    %333 = vperm.xlu0 %332, %v327
    %v334 = vpop.permute.xlu0 %333
    %335 = vset.pattern.permute.xlu0 0
    %336 = vperm.xlu0 %335, %v329
    %v337 = vpop.permute.xlu0 %336
    %v338 = vperm.slane %v334, %v137
    %v339 = vperm.slane %v337, %v137
    %v340 = vsel %vm140, %v339, %v338
    %v342 = vsel %vm143, %v340, 0.0
    %343 = vadd.xlane.f32.xlu0 %v342
    %v344 = vpop.xlane.xlu0 %343
    %v345 = vrcp.pop %v344
    %v347 = vperm.slane %v345, 0
    %v348 = vperm.slane %v345, 1
    %v351 = vmul.f32 %v327, %v347
    %v352 = vmul.f32 %v329, %v348
    %353 = vrot.lane.b32.xlu0 %v31, 127
    %v354 = vpop.permute.xlu0 %353
    %355 = vrot.lane.b32.xlu0 %v32, 127
    %v356 = vpop.permute.xlu0 %355
    %v359 = vmul.f32 %v351, %v354
    %v360 = vmul.f32 %v352, %v356
    %363 = vset.pattern.permute.xlu0 0
    %364 = vperm.xlu0 %363, %v359
    %v365 = vpop.permute.xlu0 %364
    %366 = vset.pattern.permute.xlu0 0
    %367 = vperm.xlu0 %366, %v360
    %v368 = vpop.permute.xlu0 %367
    %v369 = vperm.slane %v365, %v137
    %v370 = vperm.slane %v368, %v137
    %v371 = vsel %vm140, %v370, %v369
    %373 = vrot.lane.b32.xlu0 %v262, 84
    %v374 = vpop.permute.xlu0 %373
    %v376 = vsel %vm195, %v371, %v374
    %v378 = vsel %vm198, %v376, 0
    %380 = vmatpush.msra.mxu0 0.0
    %381 = vmatpush.msra.mxu0 0.0
    %382 = vmatpush.msra.mxu0 0.0
    %383 = vmatpush.msra.mxu0 0.0
    %384 = vmatpush.msra.mxu0 0.0
    %385 = vmatpush.msra.mxu0 0.0
    %386 = vmatpush.msra.mxu0 0.0
    %387 = vmatpush.msra.mxu0 0.0
    %388 = vmatpush.msra.mxu0 0.0
    %389 = vmatpush.msra.mxu0 0.0
    %390 = vmatpush.msra.mxu0 0.0
    %391 = vmatpush.msra.mxu0 0.0
    %392 = vmatpush.msra.mxu0 0.0
    %393 = vmatpush.msra.mxu0 %v204
    %394 = vmatpush.msra.mxu0 %v47
    %395 = vmatpush.msra.mxu0 %v46
    %396 = vmatmul.f32.gmra.mxu0 %v378
    %v397 = vpop.f32.mrf.mxu0
    %v398 = vadd.f32 %v197, %v397
    %399 = vdwg.mxu0
    %v400 = vxor.u32 %v398, 2147483648
    %v401 = vmul.f32 %v400, 1.442695
    %v402 = vpow.pop %v401
    %v403 = vadd.f32 %v402, 1.0
    %v404 = vrcp.pop %v403
    %v405 = vmul.f32 %v403, %v404
    %v406 = vsub.f32 1.0, %v405
    %v407 = vmul.f32 %v404, %v406
    %v408 = vadd.f32 %v404, %v407
    %vm409 = vweird.f32 %v403
    %vm410 = vweird.f32 %v404
    %vm411 = vmor %vm409, %vm410
    %v412 = vsel %vm411, %v404, %v408
    %v413 = vand.u32 2147483647, %v403
    %vm414 = vcmp.eq.f32.partialorder %v413, 8.507059e+37
    %v415 = vand.u32 %v403, 2147483648
    %v416 = vor.u32 1.1754944e-38, %v415
    %v417 = vsel %vm414, %v416, %v412
    %v418 = vmul.f32 1.0, %v417
    %v419 = vtanh.pop %v398
    %v420 = vmul.f32 %v418, %v256
    %422 = vrot.lane.b32.xlu0 %v419, 96
    %v423 = vpop.permute.xlu0 %422
    %v425 = vmul.f32 %v418, %v423
    %427 = vrot.lane.b32.xlu0 %v425, 16
    %v428 = vpop.permute.xlu0 %427
    %v430 = vadd.f32 %v420, %v428
    %v431 = vtanh.pop %v430
    %433 = vrot.lane.b32.xlu0 %v431, 32
    %v434 = vpop.permute.xlu0 %433
    %v436 = vmul.f32 %v418, %v434
    %438 = vrot.lane.b32.xlu0 %v436, 80
    %v439 = vpop.permute.xlu0 %438
    %v441 = vsel %vm267, %v439, %v430
    %v443 = vsel %vm90, %v441, 0
    %445 = vmatpush.msra.mxu0 0.0
    %446 = vmatpush.msra.mxu0 0.0
    %447 = vmatpush.msra.mxu0 0.0
    %448 = vmatpush.msra.mxu0 0.0
    %449 = vmatpush.msra.mxu0 0.0
    %450 = vmatpush.msra.mxu0 0.0
    %451 = vmatpush.msra.mxu0 0.0
    %452 = vmatpush.msra.mxu0 0.0
    %453 = vmatpush.msra.mxu0 0.0
    %454 = vmatpush.msra.mxu0 0.0
    %455 = vmatpush.msra.mxu0 0.0
    %456 = vmatpush.msra.mxu0 0.0
    %457 = vmatpush.msra.mxu0 %v36
    %458 = vmatpush.msra.mxu0 %v35
    %459 = vmatpush.msra.mxu0 %v34
    %460 = vmatpush.msra.mxu0 %v33
    %461 = vmatmul.f32.gmra.mxu0 %v443
    %v462 = vpop.f32.mrf.mxu0
    %v463 = vadd.f32 0.0, %v462
    %464 = vdwg.mxu0
    %v466 = vrot.slane %v463, 1
    %v467 = vperm.slane %v463, 0
    %v468 = vperm.slane %v466, 0
    %v471 = vadd.f32 %v85, %v467
    %v472 = vadd.f32 %v88, %v468
    %v473 = vtanh.pop %v471
    %v474 = vtanh.pop %v472
    %v475 = vmul.f32 %v473, %v124
    %v476 = vmul.f32 %v474, %v124
    %v477 = vsel %vm127, %v475, 0.0
    %478 = vadd.xlane.f32.xlu0 %v477
    %v479 = vpop.xlane.xlu0 %478
    %v480 = vsel %vm127, %v476, 0.0
    %481 = vadd.xlane.f32.xlu0 %v480
    %v482 = vpop.xlane.xlu0 %481
    %v485 = vperm.slane %v479, %v137
    %v486 = vperm.slane %v482, %v137
    %v487 = vsel %vm140, %v486, %v485
    %v489 = vsel %vm143, %v487, -inf
    %490 = vmax.xlane.f32.xlu0 %v489
    %v491 = vpop.xlane.xlu0 %490
    %v493 = vperm.slane %v491, 0
    %v494 = vperm.slane %v491, 1
    %v497 = vsub.f32 %v479, %v493
    %v498 = vsub.f32 %v482, %v494
    %v499 = vmul.f32 %v497, 1.442695
    %v500 = vpow.pop %v499
    %v501 = vmul.f32 %v498, 1.442695
    %v502 = vpow.pop %v501
    %505 = vset.pattern.permute.xlu0 0
    %506 = vperm.xlu0 %505, %v500
    %v507 = vpop.permute.xlu0 %506
    %508 = vset.pattern.permute.xlu0 0
    %509 = vperm.xlu0 %508, %v502
    %v510 = vpop.permute.xlu0 %509
    %v511 = vperm.slane %v507, %v137
    %v512 = vperm.slane %v510, %v137
    %v513 = vsel %vm140, %v512, %v511
    %v515 = vsel %vm143, %v513, 0.0
    %516 = vadd.xlane.f32.xlu0 %v515
    %v517 = vpop.xlane.xlu0 %516
    %v518 = vrcp.pop %v517
    %v520 = vperm.slane %v518, 0
    %v521 = vperm.slane %v518, 1
    %v524 = vmul.f32 %v500, %v520
    %v525 = vmul.f32 %v502, %v521
    %526 = vrot.lane.b32.xlu0 %v31, 126
    %v527 = vpop.permute.xlu0 %526
    %528 = vrot.lane.b32.xlu0 %v32, 126
    %v529 = vpop.permute.xlu0 %528
    %v532 = vmul.f32 %v524, %v527
    %v533 = vmul.f32 %v525, %v529
    %536 = vset.pattern.permute.xlu0 0
    %537 = vperm.xlu0 %536, %v532
    %v538 = vpop.permute.xlu0 %537
    %539 = vset.pattern.permute.xlu0 0
    %540 = vperm.xlu0 %539, %v533
    %v541 = vpop.permute.xlu0 %540
    %v542 = vperm.slane %v538, %v137
    %v543 = vperm.slane %v541, %v137
    %v544 = vsel %vm140, %v543, %v542
    %546 = vrot.lane.b32.xlu0 %v436, 84
    %v547 = vpop.permute.xlu0 %546
    %v549 = vsel %vm195, %v544, %v547
    %v551 = vsel %vm198, %v549, 0
    %553 = vmatpush.msra.mxu0 0.0
    %554 = vmatpush.msra.mxu0 0.0
    %555 = vmatpush.msra.mxu0 0.0
    %556 = vmatpush.msra.mxu0 0.0
    %557 = vmatpush.msra.mxu0 0.0
    %558 = vmatpush.msra.mxu0 0.0
    %559 = vmatpush.msra.mxu0 0.0
    %560 = vmatpush.msra.mxu0 0.0
    %561 = vmatpush.msra.mxu0 0.0
    %562 = vmatpush.msra.mxu0 0.0
    %563 = vmatpush.msra.mxu0 0.0
    %564 = vmatpush.msra.mxu0 0.0
    %565 = vmatpush.msra.mxu0 0.0
    %566 = vmatpush.msra.mxu0 %v204
    %567 = vmatpush.msra.mxu0 %v47
    %568 = vmatpush.msra.mxu0 %v46
    %569 = vmatmul.f32.gmra.mxu0 %v551
    %v570 = vpop.f32.mrf.mxu0
    %v571 = vadd.f32 %v197, %v570
    %572 = vdwg.mxu0
    %v573 = vxor.u32 %v571, 2147483648
    %v574 = vmul.f32 %v573, 1.442695
    %v575 = vpow.pop %v574
    %v576 = vadd.f32 %v575, 1.0
    %v577 = vrcp.pop %v576
    %v578 = vmul.f32 %v576, %v577
    %v579 = vsub.f32 1.0, %v578
    %v580 = vmul.f32 %v577, %v579
    %v581 = vadd.f32 %v577, %v580
    %vm582 = vweird.f32 %v576
    %vm583 = vweird.f32 %v577
    %vm584 = vmor %vm582, %vm583
    %v585 = vsel %vm584, %v577, %v581
    %v586 = vand.u32 2147483647, %v576
    %vm587 = vcmp.eq.f32.partialorder %v586, 8.507059e+37
    %v588 = vand.u32 %v576, 2147483648
    %v589 = vor.u32 1.1754944e-38, %v588
    %v590 = vsel %vm587, %v589, %v585
    %v591 = vmul.f32 1.0, %v590
    %v592 = vtanh.pop %v571
    %v593 = vmul.f32 %v591, %v430
    %595 = vrot.lane.b32.xlu0 %v592, 96
    %v596 = vpop.permute.xlu0 %595
    %v598 = vmul.f32 %v591, %v596
    %600 = vrot.lane.b32.xlu0 %v598, 16
    %v601 = vpop.permute.xlu0 %600
    %v603 = vadd.f32 %v593, %v601
    %v604 = vtanh.pop %v603
    %606 = vrot.lane.b32.xlu0 %v604, 32
    %v607 = vpop.permute.xlu0 %606
    %v609 = vmul.f32 %v591, %v607
    %611 = vrot.lane.b32.xlu0 %v609, 80
    %v612 = vpop.permute.xlu0 %611
    %v614 = vsel %vm267, %v612, %v603
    %v616 = vsel %vm90, %v614, 0
    %618 = vmatpush.msra.mxu0 0.0
    %619 = vmatpush.msra.mxu0 0.0
    %620 = vmatpush.msra.mxu0 0.0
    %621 = vmatpush.msra.mxu0 0.0
    %622 = vmatpush.msra.mxu0 0.0
    %623 = vmatpush.msra.mxu0 0.0
    %624 = vmatpush.msra.mxu0 0.0
    %625 = vmatpush.msra.mxu0 0.0
    %626 = vmatpush.msra.mxu0 0.0
    %627 = vmatpush.msra.mxu0 0.0
    %628 = vmatpush.msra.mxu0 0.0
    %629 = vmatpush.msra.mxu0 0.0
    %630 = vmatpush.msra.mxu0 %v36
    %631 = vmatpush.msra.mxu0 %v35
    %632 = vmatpush.msra.mxu0 %v34
    %633 = vmatpush.msra.mxu0 %v33
    %634 = vmatmul.f32.gmra.mxu0 %v616
    %v635 = vpop.f32.mrf.mxu0
    %v636 = vadd.f32 0.0, %v635
    %637 = vdwg.mxu0
    %v639 = vrot.slane %v636, 1
    %v640 = vperm.slane %v636, 0
    %v641 = vperm.slane %v639, 0
    %v644 = vadd.f32 %v85, %v640
    %v645 = vadd.f32 %v88, %v641
    %v646 = vtanh.pop %v644
    %v647 = vtanh.pop %v645
    %v648 = vmul.f32 %v646, %v124
    %v649 = vmul.f32 %v647, %v124
    %v650 = vsel %vm127, %v648, 0.0
    %651 = vadd.xlane.f32.xlu0 %v650
    %v652 = vpop.xlane.xlu0 %651
    %v653 = vsel %vm127, %v649, 0.0
    %654 = vadd.xlane.f32.xlu0 %v653
    %v655 = vpop.xlane.xlu0 %654
    %v658 = vperm.slane %v652, %v137
    %v659 = vperm.slane %v655, %v137
    %v660 = vsel %vm140, %v659, %v658
    %v662 = vsel %vm143, %v660, -inf
    %663 = vmax.xlane.f32.xlu0 %v662
    %v664 = vpop.xlane.xlu0 %663
    %v666 = vperm.slane %v664, 0
    %v667 = vperm.slane %v664, 1
    %v670 = vsub.f32 %v652, %v666
    %v671 = vsub.f32 %v655, %v667
    %v672 = vmul.f32 %v670, 1.442695
    %v673 = vpow.pop %v672
    %v674 = vmul.f32 %v671, 1.442695
    %v675 = vpow.pop %v674
    %678 = vset.pattern.permute.xlu0 0
    %679 = vperm.xlu0 %678, %v673
    %v680 = vpop.permute.xlu0 %679
    %681 = vset.pattern.permute.xlu0 0
    %682 = vperm.xlu0 %681, %v675
    %v683 = vpop.permute.xlu0 %682
    %v684 = vperm.slane %v680, %v137
    %v685 = vperm.slane %v683, %v137
    %v686 = vsel %vm140, %v685, %v684
    %v688 = vsel %vm143, %v686, 0.0
    %689 = vadd.xlane.f32.xlu0 %v688
    %v690 = vpop.xlane.xlu0 %689
    %v691 = vrcp.pop %v690
    %v693 = vperm.slane %v691, 0
    %v694 = vperm.slane %v691, 1
    %v697 = vmul.f32 %v673, %v693
    %v698 = vmul.f32 %v675, %v694
    %699 = vrot.lane.b32.xlu0 %v31, 125
    %v700 = vpop.permute.xlu0 %699
    %701 = vrot.lane.b32.xlu0 %v32, 125
    %v702 = vpop.permute.xlu0 %701
    %v705 = vmul.f32 %v697, %v700
    %v706 = vmul.f32 %v698, %v702
    %709 = vset.pattern.permute.xlu0 0
    %710 = vperm.xlu0 %709, %v705
    %v711 = vpop.permute.xlu0 %710
    %712 = vset.pattern.permute.xlu0 0
    %713 = vperm.xlu0 %712, %v706
    %v714 = vpop.permute.xlu0 %713
    %v715 = vperm.slane %v711, %v137
    %v716 = vperm.slane %v714, %v137
    %v717 = vsel %vm140, %v716, %v715
    %719 = vrot.lane.b32.xlu0 %v609, 84
    %v720 = vpop.permute.xlu0 %719
    %v722 = vsel %vm195, %v717, %v720
    %v724 = vsel %vm198, %v722, 0
    %726 = vmatpush.msra.mxu0 0.0
    %727 = vmatpush.msra.mxu0 0.0
    %728 = vmatpush.msra.mxu0 0.0
    %729 = vmatpush.msra.mxu0 0.0
    %730 = vmatpush.msra.mxu0 0.0
    %731 = vmatpush.msra.mxu0 0.0
    %732 = vmatpush.msra.mxu0 0.0
    %733 = vmatpush.msra.mxu0 0.0
    %734 = vmatpush.msra.mxu0 0.0
    %735 = vmatpush.msra.mxu0 0.0
    %736 = vmatpush.msra.mxu0 0.0
    %737 = vmatpush.msra.mxu0 0.0
    %738 = vmatpush.msra.mxu0 0.0
    %739 = vmatpush.msra.mxu0 %v204
    %740 = vmatpush.msra.mxu0 %v47
    %741 = vmatpush.msra.mxu0 %v46
    %742 = vmatmul.f32.gmra.mxu0 %v724
    %v743 = vpop.f32.mrf.mxu0
    %v744 = vadd.f32 %v197, %v743
    %745 = vdwg.mxu0
    %v746 = vxor.u32 %v744, 2147483648
    %v747 = vmul.f32 %v746, 1.442695
    %v748 = vpow.pop %v747
    %v749 = vadd.f32 %v748, 1.0
    %v750 = vrcp.pop %v749
    %v751 = vmul.f32 %v749, %v750
    %v752 = vsub.f32 1.0, %v751
    %v753 = vmul.f32 %v750, %v752
    %v754 = vadd.f32 %v750, %v753
    %vm755 = vweird.f32 %v749
    %vm756 = vweird.f32 %v750
    %vm757 = vmor %vm755, %vm756
    %v758 = vsel %vm757, %v750, %v754
    %v759 = vand.u32 2147483647, %v749
    %vm760 = vcmp.eq.f32.partialorder %v759, 8.507059e+37
    %v761 = vand.u32 %v749, 2147483648
    %v762 = vor.u32 1.1754944e-38, %v761
    %v763 = vsel %vm760, %v762, %v758
    %v764 = vmul.f32 1.0, %v763
    %v765 = vtanh.pop %v744
    %v766 = vmul.f32 %v764, %v603
    %768 = vrot.lane.b32.xlu0 %v765, 96
    %v769 = vpop.permute.xlu0 %768
    %v771 = vmul.f32 %v764, %v769
    %773 = vrot.lane.b32.xlu0 %v771, 16
    %v774 = vpop.permute.xlu0 %773
    %v776 = vadd.f32 %v766, %v774
    %v777 = vtanh.pop %v776
    %779 = vrot.lane.b32.xlu0 %v777, 32
    %v780 = vpop.permute.xlu0 %779
    %v782 = vmul.f32 %v764, %v780
    %784 = vrot.lane.b32.xlu0 %v782, 80
    %v785 = vpop.permute.xlu0 %784
    %v787 = vsel %vm267, %v785, %v776
    %v789 = vsel %vm90, %v787, 0
    %791 = vmatpush.msra.mxu0 0.0
    %792 = vmatpush.msra.mxu0 0.0
    %793 = vmatpush.msra.mxu0 0.0
    %794 = vmatpush.msra.mxu0 0.0
    %795 = vmatpush.msra.mxu0 0.0
    %796 = vmatpush.msra.mxu0 0.0
    %797 = vmatpush.msra.mxu0 0.0
    %798 = vmatpush.msra.mxu0 0.0
    %799 = vmatpush.msra.mxu0 0.0
    %800 = vmatpush.msra.mxu0 0.0
    %801 = vmatpush.msra.mxu0 0.0
    %802 = vmatpush.msra.mxu0 0.0
    %803 = vmatpush.msra.mxu0 %v36
    %804 = vmatpush.msra.mxu0 %v35
    %805 = vmatpush.msra.mxu0 %v34
    %806 = vmatpush.msra.mxu0 %v33
    %807 = vmatmul.f32.gmra.mxu0 %v789
    %v808 = vpop.f32.mrf.mxu0
    %v809 = vadd.f32 0.0, %v808
    %810 = vdwg.mxu0
    %v812 = vrot.slane %v809, 1
    %v813 = vperm.slane %v809, 0
    %v814 = vperm.slane %v812, 0
    %v817 = vadd.f32 %v85, %v813
    %v818 = vadd.f32 %v88, %v814
    %v819 = vtanh.pop %v817
    %v820 = vtanh.pop %v818
    %v821 = vmul.f32 %v819, %v124
    %v822 = vmul.f32 %v820, %v124
    %v823 = vsel %vm127, %v821, 0.0
    %824 = vadd.xlane.f32.xlu0 %v823
    %v825 = vpop.xlane.xlu0 %824
    %v826 = vsel %vm127, %v822, 0.0
    %827 = vadd.xlane.f32.xlu0 %v826
    %v828 = vpop.xlane.xlu0 %827
    %v831 = vperm.slane %v825, %v137
    %v832 = vperm.slane %v828, %v137
    %v833 = vsel %vm140, %v832, %v831
    %v835 = vsel %vm143, %v833, -inf
    %836 = vmax.xlane.f32.xlu0 %v835
    %v837 = vpop.xlane.xlu0 %836
    %v839 = vperm.slane %v837, 0
    %v840 = vperm.slane %v837, 1
    %v843 = vsub.f32 %v825, %v839
    %v844 = vsub.f32 %v828, %v840
    %v845 = vmul.f32 %v843, 1.442695
    %v846 = vpow.pop %v845
    %v847 = vmul.f32 %v844, 1.442695
    %v848 = vpow.pop %v847
    %851 = vset.pattern.permute.xlu0 0
    %852 = vperm.xlu0 %851, %v846
    %v853 = vpop.permute.xlu0 %852
    %854 = vset.pattern.permute.xlu0 0
    %855 = vperm.xlu0 %854, %v848
    %v856 = vpop.permute.xlu0 %855
    %v857 = vperm.slane %v853, %v137
    %v858 = vperm.slane %v856, %v137
    %v859 = vsel %vm140, %v858, %v857
    %v861 = vsel %vm143, %v859, 0.0
    %862 = vadd.xlane.f32.xlu0 %v861
    %v863 = vpop.xlane.xlu0 %862
    %v864 = vrcp.pop %v863
    %v866 = vperm.slane %v864, 0
    %v867 = vperm.slane %v864, 1
    %v870 = vmul.f32 %v846, %v866
    %v871 = vmul.f32 %v848, %v867
    %872 = vrot.lane.b32.xlu0 %v31, 124
    %v873 = vpop.permute.xlu0 %872
    %874 = vrot.lane.b32.xlu0 %v32, 124
    %v875 = vpop.permute.xlu0 %874
    %v878 = vmul.f32 %v870, %v873
    %v879 = vmul.f32 %v871, %v875
    %882 = vset.pattern.permute.xlu0 0
    %883 = vperm.xlu0 %882, %v878
    %v884 = vpop.permute.xlu0 %883
    %885 = vset.pattern.permute.xlu0 0
    %886 = vperm.xlu0 %885, %v879
    %v887 = vpop.permute.xlu0 %886
    %v888 = vperm.slane %v884, %v137
    %v889 = vperm.slane %v887, %v137
    %v890 = vsel %vm140, %v889, %v888
    %892 = vrot.lane.b32.xlu0 %v782, 84
    %v893 = vpop.permute.xlu0 %892
    %v895 = vsel %vm195, %v890, %v893
    %v897 = vsel %vm198, %v895, 0
    %899 = vmatpush.msra.mxu0 0.0
    %900 = vmatpush.msra.mxu0 0.0
    %901 = vmatpush.msra.mxu0 0.0
    %902 = vmatpush.msra.mxu0 0.0
    %903 = vmatpush.msra.mxu0 0.0
    %904 = vmatpush.msra.mxu0 0.0
    %905 = vmatpush.msra.mxu0 0.0
    %906 = vmatpush.msra.mxu0 0.0
    %907 = vmatpush.msra.mxu0 0.0
    %908 = vmatpush.msra.mxu0 0.0
    %909 = vmatpush.msra.mxu0 0.0
    %910 = vmatpush.msra.mxu0 0.0
    %911 = vmatpush.msra.mxu0 0.0
    %912 = vmatpush.msra.mxu0 %v204
    %913 = vmatpush.msra.mxu0 %v47
    %914 = vmatpush.msra.mxu0 %v46
    %915 = vmatmul.f32.gmra.mxu0 %v897
    %v916 = vpop.f32.mrf.mxu0
    %v917 = vadd.f32 %v197, %v916
    %918 = vdwg.mxu0
    %v919 = vxor.u32 %v917, 2147483648
    %v920 = vmul.f32 %v919, 1.442695
    %v921 = vpow.pop %v920
    %v922 = vadd.f32 %v921, 1.0
    %v923 = vrcp.pop %v922
    %v924 = vmul.f32 %v922, %v923
    %v925 = vsub.f32 1.0, %v924
    %v926 = vmul.f32 %v923, %v925
    %v927 = vadd.f32 %v923, %v926
    %vm928 = vweird.f32 %v922
    %vm929 = vweird.f32 %v923
    %vm930 = vmor %vm928, %vm929
    %v931 = vsel %vm930, %v923, %v927
    %v932 = vand.u32 2147483647, %v922
    %vm933 = vcmp.eq.f32.partialorder %v932, 8.507059e+37
    %v934 = vand.u32 %v922, 2147483648
    %v935 = vor.u32 1.1754944e-38, %v934
    %v936 = vsel %vm933, %v935, %v931
    %v937 = vmul.f32 1.0, %v936
    %v938 = vtanh.pop %v917
    %v939 = vmul.f32 %v937, %v776
    %941 = vrot.lane.b32.xlu0 %v938, 96
    %v942 = vpop.permute.xlu0 %941
    %v944 = vmul.f32 %v937, %v942
    %946 = vrot.lane.b32.xlu0 %v944, 16
    %v947 = vpop.permute.xlu0 %946
    %v949 = vadd.f32 %v939, %v947
    %v950 = vtanh.pop %v949
    %952 = vrot.lane.b32.xlu0 %v950, 32
    %v953 = vpop.permute.xlu0 %952
    %v955 = vmul.f32 %v937, %v953
    %957 = vrot.lane.b32.xlu0 %v955, 80
    %v958 = vpop.permute.xlu0 %957
    %v960 = vsel %vm267, %v958, %v949
    %v962 = vsel %vm90, %v960, 0
    %964 = vmatpush.msra.mxu0 0.0
    %965 = vmatpush.msra.mxu0 0.0
    %966 = vmatpush.msra.mxu0 0.0
    %967 = vmatpush.msra.mxu0 0.0
    %968 = vmatpush.msra.mxu0 0.0
    %969 = vmatpush.msra.mxu0 0.0
    %970 = vmatpush.msra.mxu0 0.0
    %971 = vmatpush.msra.mxu0 0.0
    %972 = vmatpush.msra.mxu0 0.0
    %973 = vmatpush.msra.mxu0 0.0
    %974 = vmatpush.msra.mxu0 0.0
    %975 = vmatpush.msra.mxu0 0.0
    %976 = vmatpush.msra.mxu0 %v36
    %977 = vmatpush.msra.mxu0 %v35
    %978 = vmatpush.msra.mxu0 %v34
    %979 = vmatpush.msra.mxu0 %v33
    %980 = vmatmul.f32.gmra.mxu0 %v962
    %v981 = vpop.f32.mrf.mxu0
    %v982 = vadd.f32 0.0, %v981
    %983 = vdwg.mxu0
    %v985 = vrot.slane %v982, 1
    %v986 = vperm.slane %v982, 0
    %v987 = vperm.slane %v985, 0
    %v990 = vadd.f32 %v85, %v986
    %v991 = vadd.f32 %v88, %v987
    %v992 = vtanh.pop %v990
    %v993 = vtanh.pop %v991
    %v994 = vmul.f32 %v992, %v124
    %v995 = vmul.f32 %v993, %v124
    %v996 = vsel %vm127, %v994, 0.0
    %997 = vadd.xlane.f32.xlu0 %v996
    %v998 = vpop.xlane.xlu0 %997
    %v999 = vsel %vm127, %v995, 0.0
    %1000 = vadd.xlane.f32.xlu0 %v999
    %v1001 = vpop.xlane.xlu0 %1000
    %v1004 = vperm.slane %v998, %v137
    %v1005 = vperm.slane %v1001, %v137
    %v1006 = vsel %vm140, %v1005, %v1004
    %v1008 = vsel %vm143, %v1006, -inf
    %1009 = vmax.xlane.f32.xlu0 %v1008
    %v1010 = vpop.xlane.xlu0 %1009
    %v1012 = vperm.slane %v1010, 0
    %v1013 = vperm.slane %v1010, 1
    %v1016 = vsub.f32 %v998, %v1012
    %v1017 = vsub.f32 %v1001, %v1013
    %v1018 = vmul.f32 %v1016, 1.442695
    %v1019 = vpow.pop %v1018
    %v1020 = vmul.f32 %v1017, 1.442695
    %v1021 = vpow.pop %v1020
    %1024 = vset.pattern.permute.xlu0 0
    %1025 = vperm.xlu0 %1024, %v1019
    %v1026 = vpop.permute.xlu0 %1025
    %1027 = vset.pattern.permute.xlu0 0
    %1028 = vperm.xlu0 %1027, %v1021
    %v1029 = vpop.permute.xlu0 %1028
    %v1030 = vperm.slane %v1026, %v137
    %v1031 = vperm.slane %v1029, %v137
    %v1032 = vsel %vm140, %v1031, %v1030
    %v1034 = vsel %vm143, %v1032, 0.0
    %1035 = vadd.xlane.f32.xlu0 %v1034
    %v1036 = vpop.xlane.xlu0 %1035
    %v1037 = vrcp.pop %v1036
    %v1039 = vperm.slane %v1037, 0
    %v1040 = vperm.slane %v1037, 1
    %v1043 = vmul.f32 %v1019, %v1039
    %v1044 = vmul.f32 %v1021, %v1040
    %1045 = vrot.lane.b32.xlu0 %v31, 123
    %v1046 = vpop.permute.xlu0 %1045
    %1047 = vrot.lane.b32.xlu0 %v32, 123
    %v1048 = vpop.permute.xlu0 %1047
    %v1051 = vmul.f32 %v1043, %v1046
    %v1052 = vmul.f32 %v1044, %v1048
    %1055 = vset.pattern.permute.xlu0 0
    %1056 = vperm.xlu0 %1055, %v1051
    %v1057 = vpop.permute.xlu0 %1056
    %1058 = vset.pattern.permute.xlu0 0
    %1059 = vperm.xlu0 %1058, %v1052
    %v1060 = vpop.permute.xlu0 %1059
    %v1061 = vperm.slane %v1057, %v137
    %v1062 = vperm.slane %v1060, %v137
    %v1063 = vsel %vm140, %v1062, %v1061
    %1065 = vrot.lane.b32.xlu0 %v955, 84
    %v1066 = vpop.permute.xlu0 %1065
    %v1068 = vsel %vm195, %v1063, %v1066
    %v1070 = vsel %vm198, %v1068, 0
    %1072 = vmatpush.msra.mxu0 0.0
    %1073 = vmatpush.msra.mxu0 0.0
    %1074 = vmatpush.msra.mxu0 0.0
    %1075 = vmatpush.msra.mxu0 0.0
    %1076 = vmatpush.msra.mxu0 0.0
    %1077 = vmatpush.msra.mxu0 0.0
    %1078 = vmatpush.msra.mxu0 0.0
    %1079 = vmatpush.msra.mxu0 0.0
    %1080 = vmatpush.msra.mxu0 0.0
    %1081 = vmatpush.msra.mxu0 0.0
    %1082 = vmatpush.msra.mxu0 0.0
    %1083 = vmatpush.msra.mxu0 0.0
    %1084 = vmatpush.msra.mxu0 0.0
    %1085 = vmatpush.msra.mxu0 %v204
    %1086 = vmatpush.msra.mxu0 %v47
    %1087 = vmatpush.msra.mxu0 %v46
    %1088 = vmatmul.f32.gmra.mxu0 %v1070
    %v1089 = vpop.f32.mrf.mxu0
    %v1090 = vadd.f32 %v197, %v1089
    %1091 = vdwg.mxu0
    %v1092 = vxor.u32 %v1090, 2147483648
    %v1093 = vmul.f32 %v1092, 1.442695
    %v1094 = vpow.pop %v1093
    %v1095 = vadd.f32 %v1094, 1.0
    %v1096 = vrcp.pop %v1095
    %v1097 = vmul.f32 %v1095, %v1096
    %v1098 = vsub.f32 1.0, %v1097
    %v1099 = vmul.f32 %v1096, %v1098
    %v1100 = vadd.f32 %v1096, %v1099
    %vm1101 = vweird.f32 %v1095
    %vm1102 = vweird.f32 %v1096
    %vm1103 = vmor %vm1101, %vm1102
    %v1104 = vsel %vm1103, %v1096, %v1100
    %v1105 = vand.u32 2147483647, %v1095
    %vm1106 = vcmp.eq.f32.partialorder %v1105, 8.507059e+37
    %v1107 = vand.u32 %v1095, 2147483648
    %v1108 = vor.u32 1.1754944e-38, %v1107
    %v1109 = vsel %vm1106, %v1108, %v1104
    %v1110 = vmul.f32 1.0, %v1109
    %v1111 = vtanh.pop %v1090
    %v1112 = vmul.f32 %v1110, %v949
    %1114 = vrot.lane.b32.xlu0 %v1111, 96
    %v1115 = vpop.permute.xlu0 %1114
    %v1117 = vmul.f32 %v1110, %v1115
    %1119 = vrot.lane.b32.xlu0 %v1117, 16
    %v1120 = vpop.permute.xlu0 %1119
    %v1122 = vadd.f32 %v1112, %v1120
    %v1123 = vtanh.pop %v1122
    %1125 = vrot.lane.b32.xlu0 %v1123, 32
    %v1126 = vpop.permute.xlu0 %1125
    %v1128 = vmul.f32 %v1110, %v1126
    %1130 = vrot.lane.b32.xlu0 %v1128, 80
    %v1131 = vpop.permute.xlu0 %1130
    %v1133 = vsel %vm267, %v1131, %v1122
    %v1135 = vsel %vm90, %v1133, 0
    %1137 = vmatpush.msra.mxu0 0.0
    %1138 = vmatpush.msra.mxu0 0.0
    %1139 = vmatpush.msra.mxu0 0.0
    %1140 = vmatpush.msra.mxu0 0.0
    %1141 = vmatpush.msra.mxu0 0.0
    %1142 = vmatpush.msra.mxu0 0.0
    %1143 = vmatpush.msra.mxu0 0.0
    %1144 = vmatpush.msra.mxu0 0.0
    %1145 = vmatpush.msra.mxu0 0.0
    %1146 = vmatpush.msra.mxu0 0.0
    %1147 = vmatpush.msra.mxu0 0.0
    %1148 = vmatpush.msra.mxu0 0.0
    %1149 = vmatpush.msra.mxu0 %v36
    %1150 = vmatpush.msra.mxu0 %v35
    %1151 = vmatpush.msra.mxu0 %v34
    %1152 = vmatpush.msra.mxu0 %v33
    %1153 = vmatmul.f32.gmra.mxu0 %v1135
    %v1154 = vpop.f32.mrf.mxu0
    %v1155 = vadd.f32 0.0, %v1154
    %1156 = vdwg.mxu0
    %v1158 = vrot.slane %v1155, 1
    %v1159 = vperm.slane %v1155, 0
    %v1160 = vperm.slane %v1158, 0
    %v1163 = vadd.f32 %v85, %v1159
    %v1164 = vadd.f32 %v88, %v1160
    %v1165 = vtanh.pop %v1163
    %v1166 = vtanh.pop %v1164
    %v1167 = vmul.f32 %v1165, %v124
    %v1168 = vmul.f32 %v1166, %v124
    %v1169 = vsel %vm127, %v1167, 0.0
    %1170 = vadd.xlane.f32.xlu0 %v1169
    %v1171 = vpop.xlane.xlu0 %1170
    %v1172 = vsel %vm127, %v1168, 0.0
    %1173 = vadd.xlane.f32.xlu0 %v1172
    %v1174 = vpop.xlane.xlu0 %1173
    %v1177 = vperm.slane %v1171, %v137
    %v1178 = vperm.slane %v1174, %v137
    %v1179 = vsel %vm140, %v1178, %v1177
    %v1181 = vsel %vm143, %v1179, -inf
    %1182 = vmax.xlane.f32.xlu0 %v1181
    %v1183 = vpop.xlane.xlu0 %1182
    %v1185 = vperm.slane %v1183, 0
    %v1186 = vperm.slane %v1183, 1
    %v1189 = vsub.f32 %v1171, %v1185
    %v1190 = vsub.f32 %v1174, %v1186
    %v1191 = vmul.f32 %v1189, 1.442695
    %v1192 = vpow.pop %v1191
    %v1193 = vmul.f32 %v1190, 1.442695
    %v1194 = vpow.pop %v1193
    %1197 = vset.pattern.permute.xlu0 0
    %1198 = vperm.xlu0 %1197, %v1192
    %v1199 = vpop.permute.xlu0 %1198
    %1200 = vset.pattern.permute.xlu0 0
    %1201 = vperm.xlu0 %1200, %v1194
    %v1202 = vpop.permute.xlu0 %1201
    %v1203 = vperm.slane %v1199, %v137
    %v1204 = vperm.slane %v1202, %v137
    %v1205 = vsel %vm140, %v1204, %v1203
    %v1207 = vsel %vm143, %v1205, 0.0
    %1208 = vadd.xlane.f32.xlu0 %v1207
    %v1209 = vpop.xlane.xlu0 %1208
    %v1210 = vrcp.pop %v1209
    %v1212 = vperm.slane %v1210, 0
    %v1213 = vperm.slane %v1210, 1
    %v1216 = vmul.f32 %v1192, %v1212
    %v1217 = vmul.f32 %v1194, %v1213
    %1218 = vrot.lane.b32.xlu0 %v31, 122
    %v1219 = vpop.permute.xlu0 %1218
    %1220 = vrot.lane.b32.xlu0 %v32, 122
    %v1221 = vpop.permute.xlu0 %1220
    %v1224 = vmul.f32 %v1216, %v1219
    %v1225 = vmul.f32 %v1217, %v1221
    %1228 = vset.pattern.permute.xlu0 0
    %1229 = vperm.xlu0 %1228, %v1224
    %v1230 = vpop.permute.xlu0 %1229
    %1231 = vset.pattern.permute.xlu0 0
    %1232 = vperm.xlu0 %1231, %v1225
    %v1233 = vpop.permute.xlu0 %1232
    %v1234 = vperm.slane %v1230, %v137
    %v1235 = vperm.slane %v1233, %v137
    %v1236 = vsel %vm140, %v1235, %v1234
    %1238 = vrot.lane.b32.xlu0 %v1128, 84
    %v1239 = vpop.permute.xlu0 %1238
    %v1241 = vsel %vm195, %v1236, %v1239
    %v1243 = vsel %vm198, %v1241, 0
    %1245 = vmatpush.msra.mxu0 0.0
    %1246 = vmatpush.msra.mxu0 0.0
    %1247 = vmatpush.msra.mxu0 0.0
    %1248 = vmatpush.msra.mxu0 0.0
    %1249 = vmatpush.msra.mxu0 0.0
    %1250 = vmatpush.msra.mxu0 0.0
    %1251 = vmatpush.msra.mxu0 0.0
    %1252 = vmatpush.msra.mxu0 0.0
    %1253 = vmatpush.msra.mxu0 0.0
    %1254 = vmatpush.msra.mxu0 0.0
    %1255 = vmatpush.msra.mxu0 0.0
    %1256 = vmatpush.msra.mxu0 0.0
    %1257 = vmatpush.msra.mxu0 0.0
    %1258 = vmatpush.msra.mxu0 %v204
    %1259 = vmatpush.msra.mxu0 %v47
    %1260 = vmatpush.msra.mxu0 %v46
    %1261 = vmatmul.f32.gmra.mxu0 %v1243
    %v1262 = vpop.f32.mrf.mxu0
    %v1263 = vadd.f32 %v197, %v1262
    %1264 = vdwg.mxu0
    %v1265 = vxor.u32 %v1263, 2147483648
    %v1266 = vmul.f32 %v1265, 1.442695
    %v1267 = vpow.pop %v1266
    %v1268 = vadd.f32 %v1267, 1.0
    %v1269 = vrcp.pop %v1268
    %v1270 = vmul.f32 %v1268, %v1269
    %v1271 = vsub.f32 1.0, %v1270
    %v1272 = vmul.f32 %v1269, %v1271
    %v1273 = vadd.f32 %v1269, %v1272
    %vm1274 = vweird.f32 %v1268
    %vm1275 = vweird.f32 %v1269
    %vm1276 = vmor %vm1274, %vm1275
    %v1277 = vsel %vm1276, %v1269, %v1273
    %v1278 = vand.u32 2147483647, %v1268
    %vm1279 = vcmp.eq.f32.partialorder %v1278, 8.507059e+37
    %v1280 = vand.u32 %v1268, 2147483648
    %v1281 = vor.u32 1.1754944e-38, %v1280
    %v1282 = vsel %vm1279, %v1281, %v1277
    %v1283 = vmul.f32 1.0, %v1282
    %v1284 = vtanh.pop %v1263
    %v1285 = vmul.f32 %v1283, %v1122
    %1287 = vrot.lane.b32.xlu0 %v1284, 96
    %v1288 = vpop.permute.xlu0 %1287
    %v1290 = vmul.f32 %v1283, %v1288
    %1292 = vrot.lane.b32.xlu0 %v1290, 16
    %v1293 = vpop.permute.xlu0 %1292
    %v1295 = vadd.f32 %v1285, %v1293
    %v1296 = vtanh.pop %v1295
    %1298 = vrot.lane.b32.xlu0 %v1296, 32
    %v1299 = vpop.permute.xlu0 %1298
    %v1301 = vmul.f32 %v1283, %v1299
    %1303 = vrot.lane.b32.xlu0 %v1301, 80
    %v1304 = vpop.permute.xlu0 %1303
    %v1306 = vsel %vm267, %v1304, %v1295
    %v1308 = vsel %vm90, %v1306, 0
    %1310 = vmatpush.msra.mxu0 0.0
    %1311 = vmatpush.msra.mxu0 0.0
    %1312 = vmatpush.msra.mxu0 0.0
    %1313 = vmatpush.msra.mxu0 0.0
    %1314 = vmatpush.msra.mxu0 0.0
    %1315 = vmatpush.msra.mxu0 0.0
    %1316 = vmatpush.msra.mxu0 0.0
    %1317 = vmatpush.msra.mxu0 0.0
    %1318 = vmatpush.msra.mxu0 0.0
    %1319 = vmatpush.msra.mxu0 0.0
    %1320 = vmatpush.msra.mxu0 0.0
    %1321 = vmatpush.msra.mxu0 0.0
    %1322 = vmatpush.msra.mxu0 %v36
    %1323 = vmatpush.msra.mxu0 %v35
    %1324 = vmatpush.msra.mxu0 %v34
    %1325 = vmatpush.msra.mxu0 %v33
    %1326 = vmatmul.f32.gmra.mxu0 %v1308
    %v1327 = vpop.f32.mrf.mxu0
    %v1328 = vadd.f32 0.0, %v1327
    %1329 = vdwg.mxu0
    %v1331 = vrot.slane %v1328, 1
    %v1332 = vperm.slane %v1328, 0
    %v1333 = vperm.slane %v1331, 0
    %v1336 = vadd.f32 %v85, %v1332
    %v1337 = vadd.f32 %v88, %v1333
    %v1338 = vtanh.pop %v1336
    %v1339 = vtanh.pop %v1337
    %v1340 = vmul.f32 %v1338, %v124
    %v1341 = vmul.f32 %v1339, %v124
    %v1342 = vsel %vm127, %v1340, 0.0
    %1343 = vadd.xlane.f32.xlu0 %v1342
    %v1344 = vpop.xlane.xlu0 %1343
    %v1345 = vsel %vm127, %v1341, 0.0
    %1346 = vadd.xlane.f32.xlu0 %v1345
    %v1347 = vpop.xlane.xlu0 %1346
    %v1350 = vperm.slane %v1344, %v137
    %v1351 = vperm.slane %v1347, %v137
    %v1352 = vsel %vm140, %v1351, %v1350
    %v1354 = vsel %vm143, %v1352, -inf
    %1355 = vmax.xlane.f32.xlu0 %v1354
    %v1356 = vpop.xlane.xlu0 %1355
    %v1358 = vperm.slane %v1356, 0
    %v1359 = vperm.slane %v1356, 1
    %v1362 = vsub.f32 %v1344, %v1358
    %v1363 = vsub.f32 %v1347, %v1359
    %v1364 = vmul.f32 %v1362, 1.442695
    %v1365 = vpow.pop %v1364
    %v1366 = vmul.f32 %v1363, 1.442695
    %v1367 = vpow.pop %v1366
    %1370 = vset.pattern.permute.xlu0 0
    %1371 = vperm.xlu0 %1370, %v1365
    %v1372 = vpop.permute.xlu0 %1371
    %1373 = vset.pattern.permute.xlu0 0
    %1374 = vperm.xlu0 %1373, %v1367
    %v1375 = vpop.permute.xlu0 %1374
    %v1376 = vperm.slane %v1372, %v137
    %v1377 = vperm.slane %v1375, %v137
    %v1378 = vsel %vm140, %v1377, %v1376
    %v1380 = vsel %vm143, %v1378, 0.0
    %1381 = vadd.xlane.f32.xlu0 %v1380
    %v1382 = vpop.xlane.xlu0 %1381
    %v1383 = vrcp.pop %v1382
    %v1385 = vperm.slane %v1383, 0
    %v1386 = vperm.slane %v1383, 1
    %v1389 = vmul.f32 %v1365, %v1385
    %v1390 = vmul.f32 %v1367, %v1386
    %1391 = vrot.lane.b32.xlu0 %v31, 121
    %v1392 = vpop.permute.xlu0 %1391
    %1393 = vrot.lane.b32.xlu0 %v32, 121
    %v1394 = vpop.permute.xlu0 %1393
    %v1397 = vmul.f32 %v1389, %v1392
    %v1398 = vmul.f32 %v1390, %v1394
    %1401 = vset.pattern.permute.xlu0 0
    %1402 = vperm.xlu0 %1401, %v1397
    %v1403 = vpop.permute.xlu0 %1402
    %1404 = vset.pattern.permute.xlu0 0
    %1405 = vperm.xlu0 %1404, %v1398
    %v1406 = vpop.permute.xlu0 %1405
    %v1407 = vperm.slane %v1403, %v137
    %v1408 = vperm.slane %v1406, %v137
    %v1409 = vsel %vm140, %v1408, %v1407
    %1411 = vrot.lane.b32.xlu0 %v1301, 84
    %v1412 = vpop.permute.xlu0 %1411
    %v1414 = vsel %vm195, %v1409, %v1412
    %v1416 = vsel %vm198, %v1414, 0
    %1418 = vmatpush.msra.mxu0 0.0
    %1419 = vmatpush.msra.mxu0 0.0
    %1420 = vmatpush.msra.mxu0 0.0
    %1421 = vmatpush.msra.mxu0 0.0
    %1422 = vmatpush.msra.mxu0 0.0
    %1423 = vmatpush.msra.mxu0 0.0
    %1424 = vmatpush.msra.mxu0 0.0
    %1425 = vmatpush.msra.mxu0 0.0
    %1426 = vmatpush.msra.mxu0 0.0
    %1427 = vmatpush.msra.mxu0 0.0
    %1428 = vmatpush.msra.mxu0 0.0
    %1429 = vmatpush.msra.mxu0 0.0
    %1430 = vmatpush.msra.mxu0 0.0
    %1431 = vmatpush.msra.mxu0 %v204
    %1432 = vmatpush.msra.mxu0 %v47
    %1433 = vmatpush.msra.mxu0 %v46
    %1434 = vmatmul.f32.gmra.mxu0 %v1416
    %v1435 = vpop.f32.mrf.mxu0
    %v1436 = vadd.f32 %v197, %v1435
    %1437 = vdwg.mxu0
    %v1438 = vxor.u32 %v1436, 2147483648
    %v1439 = vmul.f32 %v1438, 1.442695
    %v1440 = vpow.pop %v1439
    %v1441 = vadd.f32 %v1440, 1.0
    %v1442 = vrcp.pop %v1441
    %v1443 = vmul.f32 %v1441, %v1442
    %v1444 = vsub.f32 1.0, %v1443
    %v1445 = vmul.f32 %v1442, %v1444
    %v1446 = vadd.f32 %v1442, %v1445
    %vm1447 = vweird.f32 %v1441
    %vm1448 = vweird.f32 %v1442
    %vm1449 = vmor %vm1447, %vm1448
    %v1450 = vsel %vm1449, %v1442, %v1446
    %v1451 = vand.u32 2147483647, %v1441
    %vm1452 = vcmp.eq.f32.partialorder %v1451, 8.507059e+37
    %v1453 = vand.u32 %v1441, 2147483648
    %v1454 = vor.u32 1.1754944e-38, %v1453
    %v1455 = vsel %vm1452, %v1454, %v1450
    %v1456 = vmul.f32 1.0, %v1455
    %v1457 = vtanh.pop %v1436
    %v1458 = vmul.f32 %v1456, %v1295
    %1460 = vrot.lane.b32.xlu0 %v1457, 96
    %v1461 = vpop.permute.xlu0 %1460
    %v1463 = vmul.f32 %v1456, %v1461
    %1465 = vrot.lane.b32.xlu0 %v1463, 16
    %v1466 = vpop.permute.xlu0 %1465
    %v1468 = vadd.f32 %v1458, %v1466
    %v1469 = vtanh.pop %v1468
    %1471 = vrot.lane.b32.xlu0 %v1469, 32
    %v1472 = vpop.permute.xlu0 %1471
    %v1474 = vmul.f32 %v1456, %v1472
    %v1475 = vrot.slane %v262, 1
    %v1477 = vrot.slane %v436, 1
    %v1478 = vrot.slane %v609, 1
    %v1479 = vrot.slane %v782, 1
    %v1480 = vrot.slane %v955, 1
    %v1481 = vrot.slane %v1128, 1
    %v1482 = vrot.slane %v1301, 1
    %v1484 = vrot.slane %v1474, 1
    %v1485 = vperm.slane %v436, 0
    %v1486 = vperm.slane %v1477, 0
    %v1489 = vperm.slane %v609, 0
    %v1490 = vperm.slane %v1478, 0
    %v1493 = vperm.slane %v782, 0
    %v1494 = vperm.slane %v1479, 0
    %v1497 = vperm.slane %v955, 0
    %v1498 = vperm.slane %v1480, 0
    %v1501 = vperm.slane %v1128, 0
    %v1502 = vperm.slane %v1481, 0
    %v1505 = vperm.slane %v1301, 0
    %v1506 = vperm.slane %v1482, 0
    %v1509 = vperm.slane %v1474, 0
    %v1510 = vperm.slane %v1484, 0
    %vm1513 = vcmask 1040384
    %v1514 = vsel %vm1513, %v262, %v1485
    %v1515 = vsel %vm1513, %v1475, %v1486
    %vm1516 = vcmask 1041408
    %v1517 = vsel %vm1516, %v1514, %v1489
    %v1518 = vsel %vm1516, %v1515, %v1490
    %vm1519 = vcmask 1042432
    %v1520 = vsel %vm1519, %v1517, %v1493
    %v1521 = vsel %vm1519, %v1518, %v1494
    %v1522 = vsel %vm202, %v1520, %v1497
    %v1523 = vsel %vm202, %v1521, %v1498
    %vm1524 = vcmask 1044480
    %v1525 = vsel %vm1524, %v1522, %v1501
    %v1526 = vsel %vm1524, %v1523, %v1502
    %vm1527 = vcmask 1045504
    %v1528 = vsel %vm1527, %v1525, %v1505
    %v1529 = vsel %vm1527, %v1526, %v1506
    %vm1530 = vcmask 1046528
    %v1531 = vsel %vm1530, %v1528, %v1509
    %v1532 = vsel %vm1530, %v1529, %v1510
    %1535 = vrot.lane.b32.xlu0 %v1531, 80
    %v1536 = vpop.permute.xlu0 %1535
    %1537 = vrot.lane.b32.xlu0 %v1532, 80
    %v1538 = vpop.permute.xlu0 %1537
    %v1539 = vsel %vm267, %v1536, 0
    %v1541 = vsel %vm267, %v1538, 0
    %1543 = vmatpush.msra.mxu0 0.0
    %1544 = vmatpush.msra.mxu0 0.0
    %1545 = vmatpush.msra.mxu0 0.0
    %1546 = vmatpush.msra.mxu0 0.0
    %1547 = vmatpush.msra.mxu0 0.0
    %1548 = vmatpush.msra.mxu0 0.0
    %1549 = vmatpush.msra.mxu0 0.0
    %1550 = vmatpush.msra.mxu0 0.0
    %1551 = vmatpush.msra.mxu0 0.0
    %1552 = vmatpush.msra.mxu0 0.0
    %1553 = vmatpush.msra.mxu0 0.0
    %1554 = vmatpush.msra.mxu0 0.0
    %1555 = vmatpush.msra.mxu0 0.0
    %1556 = vmatpush.msra.mxu0 0.0
    %1557 = vmatpush.msra.mxu0 %v44
    %1558 = vmatpush.msra.mxu0 %v43
    %1559 = vmatmul.f32.gmra.mxu0 %v1539
    %v1560 = vpop.f32.mrf.mxu0
    %v1561 = vadd.f32 0.0, %v1560
    %1562 = vmatmul.f32.gmra.mxu0 %v1541
    %v1563 = vpop.f32.mrf.mxu0
    %v1564 = vadd.f32 0.0, %v1563
    %1565 = vdwg.mxu0
    %1566 = vmatpush.msra.mxu0 0.0
    %1567 = vmatpush.msra.mxu0 0.0
    %1568 = vmatpush.msra.mxu0 0.0
    %1569 = vmatpush.msra.mxu0 0.0
    %1570 = vmatpush.msra.mxu0 0.0
    %1571 = vmatpush.msra.mxu0 0.0
    %1572 = vmatpush.msra.mxu0 0.0
    %1573 = vmatpush.msra.mxu0 0.0
    %1574 = vmatpush.msra.mxu0 0.0
    %1575 = vmatpush.msra.mxu0 0.0
    %1576 = vmatpush.msra.mxu0 0.0
    %1577 = vmatpush.msra.mxu0 0.0
    %1578 = vmatpush.msra.mxu0 %v42
    %1579 = vmatpush.msra.mxu0 %v41
    %1580 = vmatpush.msra.mxu0 %v40
    %1581 = vmatpush.msra.mxu0 %v39
    %1582 = vmatmul.f32.gmra.mxu0 %v92
    %v1583 = vpop.f32.mrf.mxu0
    %v1584 = vadd.f32 0.0, %v1583
    %1585 = vdwg.mxu0
    %v1587 = vrot.slane %v1584, 1
    %v1588 = vperm.slane %v1584, 0
    %v1589 = vperm.slane %v1587, 0
    %v1592 = vadd.f32 %v1561, %v1588
    %v1593 = vadd.f32 %v1564, %v1589
    %v1594 = vtanh.pop %v1592
    %v1595 = vtanh.pop %v1593
    %v1596 = vperm.slane %v45, 0
    %v1597 = vmul.f32 %v1594, %v1596
    %v1598 = vmul.f32 %v1595, %v1596
    %v1599 = vsel %vm267, %v1597, 0.0
    %1600 = vadd.xlane.f32.xlu0 %v1599
    %v1601 = vpop.xlane.xlu0 %1600
    %v1602 = vsel %vm267, %v1598, 0.0
    %1603 = vadd.xlane.f32.xlu0 %v1602
    %v1604 = vpop.xlane.xlu0 %1603
    %v1607 = vperm.slane %v1601, %v137
    %v1608 = vperm.slane %v1604, %v137
    %v1609 = vsel %vm140, %v1608, %v1607
    %vm1611 = vcmask 58368
    %v1612 = vsel %vm1611, %v1609, -inf
    %1613 = vmax.xlane.f32.xlu0 %v1612
    %v1614 = vpop.xlane.xlu0 %1613
    %v1616 = vperm.slane %v1614, 0
    %v1617 = vperm.slane %v1614, 1
    %v1620 = vsub.f32 %v1601, %v1616
    %v1621 = vsub.f32 %v1604, %v1617
    %v1622 = vmul.f32 %v1620, 1.442695
    %v1623 = vpow.pop %v1622
    %v1624 = vmul.f32 %v1621, 1.442695
    %v1625 = vpow.pop %v1624
    %1628 = vset.pattern.permute.xlu0 0
    %1629 = vperm.xlu0 %1628, %v1623
    %v1630 = vpop.permute.xlu0 %1629
    %1631 = vset.pattern.permute.xlu0 0
    %1632 = vperm.xlu0 %1631, %v1625
    %v1633 = vpop.permute.xlu0 %1632
    %v1634 = vperm.slane %v1630, %v137
    %v1635 = vperm.slane %v1633, %v137
    %v1636 = vsel %vm140, %v1635, %v1634
    %v1638 = vsel %vm1611, %v1636, 0.0
    %1639 = vadd.xlane.f32.xlu0 %v1638
    %v1640 = vpop.xlane.xlu0 %1639
    %v1641 = vrcp.pop %v1640
    %v1643 = vperm.slane %v1641, 0
    %v1644 = vperm.slane %v1641, 1
    %v1647 = vmul.f32 %v1623, %v1643
    %v1648 = vmul.f32 %v1625, %v1644
    %1650 = vset.pattern.permute.xlu0 0
    %1651 = vperm.xlu0 %1650, %v1647
    %v1652 = vpop.permute.xlu0 %1651
    %1655 = vset.pattern.permute.xlu0 0
    %1656 = vperm.xlu0 %1655, %v1648
    %v1657 = vpop.permute.xlu0 %1656
    %v1659 = vmul.f32 %v1652, %v1531
    %v1660 = vmul.f32 %v1657, %v1532
    %vm1661 = vcmask 523648
    %v1662 = vsel %vm1661, %v1659, 0.0
    %v1663 = vrot.slane %v1662, 4
    %v1664 = vadd.f32 %v1662, %v1663
    %v1665 = vrot.slane %v1664, 2
    %v1666 = vadd.f32 %v1664, %v1665
    %v1667 = vrot.slane %v1666, 1
    %v1668 = vadd.f32 %v1666, %v1667
    %v1669 = vsel %vm1661, %v1660, 0.0
    %v1670 = vrot.slane %v1669, 4
    %v1671 = vadd.f32 %v1669, %v1670
    %v1672 = vrot.slane %v1671, 2
    %v1673 = vadd.f32 %v1671, %v1672
    %v1674 = vrot.slane %v1673, 1
    %v1675 = vadd.f32 %v1673, %v1674
    %v1678 = vsel %vm140, %v1675, %v1668
    %1679 = vrot.lane.b32.xlu0 %v1678, 80
    %v1680 = vpop.permute.xlu0 %1679
    %1683 = vrot.lane.b32.xlu0 %v30, 16
    %v1684 = vpop.permute.xlu0 %1683
    %v1686 = vsel %vm267, %v1680, %v1684
    %v1687 = vperm.slane %v54, 1
    %vm1688 = vcmask 138240
    %v1690 = vsel %vm1688, %v1686, 0
    %v1693 = vsel %vm1513, %v54, 0
    %1695 = vmatpush.msra.mxu0 0.0
    %1696 = vmatpush.msra.mxu0 0.0
    %1697 = vmatpush.msra.mxu0 0.0
    %1698 = vmatpush.msra.mxu0 0.0
    %1699 = vmatpush.msra.mxu0 0.0
    %1700 = vmatpush.msra.mxu0 0.0
    %1701 = vmatpush.msra.mxu0 0.0
    %1702 = vmatpush.msra.mxu0 0.0
    %1703 = vmatpush.msra.mxu0 0.0
    %1704 = vmatpush.msra.mxu0 0.0
    %1705 = vmatpush.msra.mxu0 0.0
    %1706 = vmatpush.msra.mxu0 0.0
    %1707 = vmatpush.msra.mxu0 0.0
    %1708 = vmatpush.msra.mxu0 %v1693
    %1709 = vmatpush.msra.mxu0 %v53
    %1710 = vmatpush.msra.mxu0 %v52
    %1711 = vmatmul.f32.gmra.mxu0 %v1690
    %v1712 = vpop.f32.mrf.mxu0
    %v1713 = vadd.f32 %v1687, %v1712
    %1714 = vdwg.mxu0
    %vm1715 = vcmask 7168
    %v1716 = vsel %vm1715, %v1713, 0.0
    %v1717 = vperm.slane %v51, 1
    %v1719 = vsel %vm1688, %v1716, 0
    %v1722 = vsel %vm1513, %v51, 0
    %1724 = vmatpush.msra.mxu0 0.0
    %1725 = vmatpush.msra.mxu0 0.0
    %1726 = vmatpush.msra.mxu0 0.0
    %1727 = vmatpush.msra.mxu0 0.0
    %1728 = vmatpush.msra.mxu0 0.0
    %1729 = vmatpush.msra.mxu0 0.0
    %1730 = vmatpush.msra.mxu0 0.0
    %1731 = vmatpush.msra.mxu0 0.0
    %1732 = vmatpush.msra.mxu0 0.0
    %1733 = vmatpush.msra.mxu0 0.0
    %1734 = vmatpush.msra.mxu0 0.0
    %1735 = vmatpush.msra.mxu0 0.0
    %1736 = vmatpush.msra.mxu0 0.0
    %1737 = vmatpush.msra.mxu0 %v1722
    %1738 = vmatpush.msra.mxu0 %v50
    %1739 = vmatpush.msra.mxu0 %v49
    %1740 = vmatmul.f32.gmra.mxu0 %v1719
    %v1741 = vpop.f32.mrf.mxu0
    %v1742 = vadd.f32 %v1717, %v1741
    %1743 = vdwg.mxu0
    %v1744 = vxor.u32 %v1742, 2147483648
    %v1745 = vmul.f32 %v1744, 1.442695
    %v1746 = vpow.pop %v1745
    %v1747 = vadd.f32 %v1746, 1.0
    %v1748 = vrcp.pop %v1747
    %v1749 = vmul.f32 %v1747, %v1748
    %v1750 = vsub.f32 1.0, %v1749
    %v1751 = vmul.f32 %v1748, %v1750
    %v1752 = vadd.f32 %v1748, %v1751
    %vm1753 = vweird.f32 %v1747
    %vm1754 = vweird.f32 %v1748
    %vm1755 = vmor %vm1753, %vm1754
    %v1756 = vsel %vm1755, %v1748, %v1752
    %v1757 = vand.u32 2147483647, %v1747
    %vm1758 = vcmp.eq.f32.partialorder %v1757, 8.507059e+37
    %v1759 = vand.u32 %v1747, 2147483648
    %v1760 = vor.u32 1.1754944e-38, %v1759
    %v1761 = vsel %vm1758, %v1760, %v1756
    %v1762 = vmul.f32 1.0, %v1761
    %v1763 = vtanh.pop %v1742
    %v1764 = vmul.f32 %v1762, 0.0
    %1766 = vrot.lane.b32.xlu0 %v1763, 96
    %v1767 = vpop.permute.xlu0 %1766
    %v1769 = vmul.f32 %v1762, %v1767
    %1771 = vrot.lane.b32.xlu0 %v1769, 16
    %v1772 = vpop.permute.xlu0 %1771
    %v1774 = vadd.f32 %v1764, %v1772
    %v1775 = vtanh.pop %v1774
    %1777 = vrot.lane.b32.xlu0 %v1775, 32
    %v1778 = vpop.permute.xlu0 %1777
    %v1780 = vmul.f32 %v1762, %v1778
    %1782 = vrot.lane.b32.xlu0 %v1780, 80
    %v1783 = vpop.permute.xlu0 %1782
    %v1785 = vsel %vm267, %v1783, %v1774
    %v1787 = vsel %vm90, %v1785, 0
    %1789 = vmatpush.msra.mxu0 0.0
    %1790 = vmatpush.msra.mxu0 0.0
    %1791 = vmatpush.msra.mxu0 0.0
    %1792 = vmatpush.msra.mxu0 0.0
    %1793 = vmatpush.msra.mxu0 0.0
    %1794 = vmatpush.msra.mxu0 0.0
    %1795 = vmatpush.msra.mxu0 0.0
    %1796 = vmatpush.msra.mxu0 0.0
    %1797 = vmatpush.msra.mxu0 0.0
    %1798 = vmatpush.msra.mxu0 0.0
    %1799 = vmatpush.msra.mxu0 0.0
    %1800 = vmatpush.msra.mxu0 0.0
    %1801 = vmatpush.msra.mxu0 %v42
    %1802 = vmatpush.msra.mxu0 %v41
    %1803 = vmatpush.msra.mxu0 %v40
    %1804 = vmatpush.msra.mxu0 %v39
    %1805 = vmatmul.f32.gmra.mxu0 %v1787
    %v1806 = vpop.f32.mrf.mxu0
    %v1807 = vadd.f32 0.0, %v1806
    %1808 = vdwg.mxu0
    %v1810 = vrot.slane %v1807, 1
    %v1811 = vperm.slane %v1807, 0
    %v1812 = vperm.slane %v1810, 0
    %v1815 = vadd.f32 %v1561, %v1811
    %v1816 = vadd.f32 %v1564, %v1812
    %v1817 = vtanh.pop %v1815
    %v1818 = vtanh.pop %v1816
    %v1819 = vmul.f32 %v1817, %v1596
    %v1820 = vmul.f32 %v1818, %v1596
    %v1821 = vsel %vm267, %v1819, 0.0
    %1822 = vadd.xlane.f32.xlu0 %v1821
    %v1823 = vpop.xlane.xlu0 %1822
    %v1824 = vsel %vm267, %v1820, 0.0
    %1825 = vadd.xlane.f32.xlu0 %v1824
    %v1826 = vpop.xlane.xlu0 %1825
    %v1829 = vperm.slane %v1823, %v137
    %v1830 = vperm.slane %v1826, %v137
    %v1831 = vsel %vm140, %v1830, %v1829
    %v1833 = vsel %vm1611, %v1831, -inf
    %1834 = vmax.xlane.f32.xlu0 %v1833
    %v1835 = vpop.xlane.xlu0 %1834
    %v1837 = vperm.slane %v1835, 0
    %v1838 = vperm.slane %v1835, 1
    %v1841 = vsub.f32 %v1823, %v1837
    %v1842 = vsub.f32 %v1826, %v1838
    %v1843 = vmul.f32 %v1841, 1.442695
    %v1844 = vpow.pop %v1843
    %v1845 = vmul.f32 %v1842, 1.442695
    %v1846 = vpow.pop %v1845
    %1849 = vset.pattern.permute.xlu0 0
    %1850 = vperm.xlu0 %1849, %v1844
    %v1851 = vpop.permute.xlu0 %1850
    %1852 = vset.pattern.permute.xlu0 0
    %1853 = vperm.xlu0 %1852, %v1846
    %v1854 = vpop.permute.xlu0 %1853
    %v1855 = vperm.slane %v1851, %v137
    %v1856 = vperm.slane %v1854, %v137
    %v1857 = vsel %vm140, %v1856, %v1855
    %v1859 = vsel %vm1611, %v1857, 0.0
    %1860 = vadd.xlane.f32.xlu0 %v1859
    %v1861 = vpop.xlane.xlu0 %1860
    %v1862 = vrcp.pop %v1861
    %v1864 = vperm.slane %v1862, 0
    %v1865 = vperm.slane %v1862, 1
    %v1868 = vmul.f32 %v1844, %v1864
    %v1869 = vmul.f32 %v1846, %v1865
    %1871 = vset.pattern.permute.xlu0 0
    %1872 = vperm.xlu0 %1871, %v1868
    %v1873 = vpop.permute.xlu0 %1872
    %1876 = vset.pattern.permute.xlu0 0
    %1877 = vperm.xlu0 %1876, %v1869
    %v1878 = vpop.permute.xlu0 %1877
    %v1880 = vmul.f32 %v1873, %v1531
    %v1881 = vmul.f32 %v1878, %v1532
    %v1882 = vsel %vm1661, %v1880, 0.0
    %v1883 = vrot.slane %v1882, 4
    %v1884 = vadd.f32 %v1882, %v1883
    %v1885 = vrot.slane %v1884, 2
    %v1886 = vadd.f32 %v1884, %v1885
    %v1887 = vrot.slane %v1886, 1
    %v1888 = vadd.f32 %v1886, %v1887
    %v1889 = vsel %vm1661, %v1881, 0.0
    %v1890 = vrot.slane %v1889, 4
    %v1891 = vadd.f32 %v1889, %v1890
    %v1892 = vrot.slane %v1891, 2
    %v1893 = vadd.f32 %v1891, %v1892
    %v1894 = vrot.slane %v1893, 1
    %v1895 = vadd.f32 %v1893, %v1894
    %v1898 = vsel %vm140, %v1895, %v1888
    %1899 = vrot.lane.b32.xlu0 %v1898, 80
    %v1900 = vpop.permute.xlu0 %1899
    %1902 = vrot.lane.b32.xlu0 %v30, 15
    %v1903 = vpop.permute.xlu0 %1902
    %v1905 = vsel %vm267, %v1900, %v1903
    %v1907 = vsel %vm1688, %v1905, 0
    %1909 = vmatpush.msra.mxu0 0.0
    %1910 = vmatpush.msra.mxu0 0.0
    %1911 = vmatpush.msra.mxu0 0.0
    %1912 = vmatpush.msra.mxu0 0.0
    %1913 = vmatpush.msra.mxu0 0.0
    %1914 = vmatpush.msra.mxu0 0.0
    %1915 = vmatpush.msra.mxu0 0.0
    %1916 = vmatpush.msra.mxu0 0.0
    %1917 = vmatpush.msra.mxu0 0.0
    %1918 = vmatpush.msra.mxu0 0.0
    %1919 = vmatpush.msra.mxu0 0.0
    %1920 = vmatpush.msra.mxu0 0.0
    %1921 = vmatpush.msra.mxu0 0.0
    %1922 = vmatpush.msra.mxu0 %v1693
    %1923 = vmatpush.msra.mxu0 %v53
    %1924 = vmatpush.msra.mxu0 %v52
    %1925 = vmatmul.f32.gmra.mxu0 %v1907
    %v1926 = vpop.f32.mrf.mxu0
    %v1927 = vadd.f32 %v1687, %v1926
    %1928 = vdwg.mxu0
    %1929 = vrot.lane.b32.xlu0 %v1780, 81
    %v1930 = vpop.permute.xlu0 %1929
    %v1932 = vsel %vm1715, %v1927, %v1930
    %v1934 = vsel %vm1688, %v1932, 0
    %1936 = vmatpush.msra.mxu0 0.0
    %1937 = vmatpush.msra.mxu0 0.0
    %1938 = vmatpush.msra.mxu0 0.0
    %1939 = vmatpush.msra.mxu0 0.0
    %1940 = vmatpush.msra.mxu0 0.0
    %1941 = vmatpush.msra.mxu0 0.0
    %1942 = vmatpush.msra.mxu0 0.0
    %1943 = vmatpush.msra.mxu0 0.0
    %1944 = vmatpush.msra.mxu0 0.0
    %1945 = vmatpush.msra.mxu0 0.0
    %1946 = vmatpush.msra.mxu0 0.0
    %1947 = vmatpush.msra.mxu0 0.0
    %1948 = vmatpush.msra.mxu0 0.0
    %1949 = vmatpush.msra.mxu0 %v1722
    %1950 = vmatpush.msra.mxu0 %v50
    %1951 = vmatpush.msra.mxu0 %v49
    %1952 = vmatmul.f32.gmra.mxu0 %v1934
    %v1953 = vpop.f32.mrf.mxu0
    %v1954 = vadd.f32 %v1717, %v1953
    %1955 = vdwg.mxu0
    %v1956 = vxor.u32 %v1954, 2147483648
    %v1957 = vmul.f32 %v1956, 1.442695
    %v1958 = vpow.pop %v1957
    %v1959 = vadd.f32 %v1958, 1.0
    %v1960 = vrcp.pop %v1959
    %v1961 = vmul.f32 %v1959, %v1960
    %v1962 = vsub.f32 1.0, %v1961
    %v1963 = vmul.f32 %v1960, %v1962
    %v1964 = vadd.f32 %v1960, %v1963
    %vm1965 = vweird.f32 %v1959
    %vm1966 = vweird.f32 %v1960
    %vm1967 = vmor %vm1965, %vm1966
    %v1968 = vsel %vm1967, %v1960, %v1964
    %v1969 = vand.u32 2147483647, %v1959
    %vm1970 = vcmp.eq.f32.partialorder %v1969, 8.507059e+37
    %v1971 = vand.u32 %v1959, 2147483648
    %v1972 = vor.u32 1.1754944e-38, %v1971
    %v1973 = vsel %vm1970, %v1972, %v1968
    %v1974 = vmul.f32 1.0, %v1973
    %v1975 = vtanh.pop %v1954
    %v1976 = vmul.f32 %v1974, %v1774
    %1978 = vrot.lane.b32.xlu0 %v1975, 96
    %v1979 = vpop.permute.xlu0 %1978
    %v1981 = vmul.f32 %v1974, %v1979
    %1983 = vrot.lane.b32.xlu0 %v1981, 16
    %v1984 = vpop.permute.xlu0 %1983
    %v1986 = vadd.f32 %v1976, %v1984
    %v1987 = vtanh.pop %v1986
    %1989 = vrot.lane.b32.xlu0 %v1987, 32
    %v1990 = vpop.permute.xlu0 %1989
    %v1992 = vmul.f32 %v1974, %v1990
    %1994 = vrot.lane.b32.xlu0 %v1992, 80
    %v1995 = vpop.permute.xlu0 %1994
    %v1997 = vsel %vm267, %v1995, %v1986
    %v1999 = vsel %vm90, %v1997, 0
    %2001 = vmatpush.msra.mxu0 0.0
    %2002 = vmatpush.msra.mxu0 0.0
    %2003 = vmatpush.msra.mxu0 0.0
    %2004 = vmatpush.msra.mxu0 0.0
    %2005 = vmatpush.msra.mxu0 0.0
    %2006 = vmatpush.msra.mxu0 0.0
    %2007 = vmatpush.msra.mxu0 0.0
    %2008 = vmatpush.msra.mxu0 0.0
    %2009 = vmatpush.msra.mxu0 0.0
    %2010 = vmatpush.msra.mxu0 0.0
    %2011 = vmatpush.msra.mxu0 0.0
    %2012 = vmatpush.msra.mxu0 0.0
    %2013 = vmatpush.msra.mxu0 %v42
    %2014 = vmatpush.msra.mxu0 %v41
    %2015 = vmatpush.msra.mxu0 %v40
    %2016 = vmatpush.msra.mxu0 %v39
    %2017 = vmatmul.f32.gmra.mxu0 %v1999
    %v2018 = vpop.f32.mrf.mxu0
    %v2019 = vadd.f32 0.0, %v2018
    %2020 = vdwg.mxu0
    %v2022 = vrot.slane %v2019, 1
    %v2023 = vperm.slane %v2019, 0
    %v2024 = vperm.slane %v2022, 0
    %v2027 = vadd.f32 %v1561, %v2023
    %v2028 = vadd.f32 %v1564, %v2024
    %v2029 = vtanh.pop %v2027
    %v2030 = vtanh.pop %v2028
    %v2031 = vmul.f32 %v2029, %v1596
    %v2032 = vmul.f32 %v2030, %v1596
    %v2033 = vsel %vm267, %v2031, 0.0
    %2034 = vadd.xlane.f32.xlu0 %v2033
    %v2035 = vpop.xlane.xlu0 %2034
    %v2036 = vsel %vm267, %v2032, 0.0
    %2037 = vadd.xlane.f32.xlu0 %v2036
    %v2038 = vpop.xlane.xlu0 %2037
    %v2041 = vperm.slane %v2035, %v137
    %v2042 = vperm.slane %v2038, %v137
    %v2043 = vsel %vm140, %v2042, %v2041
    %v2045 = vsel %vm1611, %v2043, -inf
    %2046 = vmax.xlane.f32.xlu0 %v2045
    %v2047 = vpop.xlane.xlu0 %2046
    %v2049 = vperm.slane %v2047, 0
    %v2050 = vperm.slane %v2047, 1
    %v2053 = vsub.f32 %v2035, %v2049
    %v2054 = vsub.f32 %v2038, %v2050
    %v2055 = vmul.f32 %v2053, 1.442695
    %v2056 = vpow.pop %v2055
    %v2057 = vmul.f32 %v2054, 1.442695
    %v2058 = vpow.pop %v2057
    %2061 = vset.pattern.permute.xlu0 0
    %2062 = vperm.xlu0 %2061, %v2056
    %v2063 = vpop.permute.xlu0 %2062
    %2064 = vset.pattern.permute.xlu0 0
    %2065 = vperm.xlu0 %2064, %v2058
    %v2066 = vpop.permute.xlu0 %2065
    %v2067 = vperm.slane %v2063, %v137
    %v2068 = vperm.slane %v2066, %v137
    %v2069 = vsel %vm140, %v2068, %v2067
    %v2071 = vsel %vm1611, %v2069, 0.0
    %2072 = vadd.xlane.f32.xlu0 %v2071
    %v2073 = vpop.xlane.xlu0 %2072
    %v2074 = vrcp.pop %v2073
    %v2076 = vperm.slane %v2074, 0
    %v2077 = vperm.slane %v2074, 1
    %v2080 = vmul.f32 %v2056, %v2076
    %v2081 = vmul.f32 %v2058, %v2077
    %2083 = vset.pattern.permute.xlu0 0
    %2084 = vperm.xlu0 %2083, %v2080
    %v2085 = vpop.permute.xlu0 %2084
    %2088 = vset.pattern.permute.xlu0 0
    %2089 = vperm.xlu0 %2088, %v2081
    %v2090 = vpop.permute.xlu0 %2089
    %v2092 = vmul.f32 %v2085, %v1531
    %v2093 = vmul.f32 %v2090, %v1532
    %v2094 = vsel %vm1661, %v2092, 0.0
    %v2095 = vrot.slane %v2094, 4
    %v2096 = vadd.f32 %v2094, %v2095
    %v2097 = vrot.slane %v2096, 2
    %v2098 = vadd.f32 %v2096, %v2097
    %v2099 = vrot.slane %v2098, 1
    %v2100 = vadd.f32 %v2098, %v2099
    %v2101 = vsel %vm1661, %v2093, 0.0
    %v2102 = vrot.slane %v2101, 4
    %v2103 = vadd.f32 %v2101, %v2102
    %v2104 = vrot.slane %v2103, 2
    %v2105 = vadd.f32 %v2103, %v2104
    %v2106 = vrot.slane %v2105, 1
    %v2107 = vadd.f32 %v2105, %v2106
    %v2110 = vsel %vm140, %v2107, %v2100
    %2111 = vrot.lane.b32.xlu0 %v2110, 80
    %v2112 = vpop.permute.xlu0 %2111
    %2114 = vrot.lane.b32.xlu0 %v30, 14
    %v2115 = vpop.permute.xlu0 %2114
    %v2117 = vsel %vm267, %v2112, %v2115
    %v2119 = vsel %vm1688, %v2117, 0
    %2121 = vmatpush.msra.mxu0 0.0
    %2122 = vmatpush.msra.mxu0 0.0
    %2123 = vmatpush.msra.mxu0 0.0
    %2124 = vmatpush.msra.mxu0 0.0
    %2125 = vmatpush.msra.mxu0 0.0
    %2126 = vmatpush.msra.mxu0 0.0
    %2127 = vmatpush.msra.mxu0 0.0
    %2128 = vmatpush.msra.mxu0 0.0
    %2129 = vmatpush.msra.mxu0 0.0
    %2130 = vmatpush.msra.mxu0 0.0
    %2131 = vmatpush.msra.mxu0 0.0
    %2132 = vmatpush.msra.mxu0 0.0
    %2133 = vmatpush.msra.mxu0 0.0
    %2134 = vmatpush.msra.mxu0 %v1693
    %2135 = vmatpush.msra.mxu0 %v53
    %2136 = vmatpush.msra.mxu0 %v52
    %2137 = vmatmul.f32.gmra.mxu0 %v2119
    %v2138 = vpop.f32.mrf.mxu0
    %v2139 = vadd.f32 %v1687, %v2138
    %2140 = vdwg.mxu0
    %2141 = vrot.lane.b32.xlu0 %v1992, 81
    %v2142 = vpop.permute.xlu0 %2141
    %v2144 = vsel %vm1715, %v2139, %v2142
    %v2146 = vsel %vm1688, %v2144, 0
    %2148 = vmatpush.msra.mxu0 0.0
    %2149 = vmatpush.msra.mxu0 0.0
    %2150 = vmatpush.msra.mxu0 0.0
    %2151 = vmatpush.msra.mxu0 0.0
    %2152 = vmatpush.msra.mxu0 0.0
    %2153 = vmatpush.msra.mxu0 0.0
    %2154 = vmatpush.msra.mxu0 0.0
    %2155 = vmatpush.msra.mxu0 0.0
    %2156 = vmatpush.msra.mxu0 0.0
    %2157 = vmatpush.msra.mxu0 0.0
    %2158 = vmatpush.msra.mxu0 0.0
    %2159 = vmatpush.msra.mxu0 0.0
    %2160 = vmatpush.msra.mxu0 0.0
    %2161 = vmatpush.msra.mxu0 %v1722
    %2162 = vmatpush.msra.mxu0 %v50
    %2163 = vmatpush.msra.mxu0 %v49
    %2164 = vmatmul.f32.gmra.mxu0 %v2146
    %v2165 = vpop.f32.mrf.mxu0
    %v2166 = vadd.f32 %v1717, %v2165
    %2167 = vdwg.mxu0
    %v2168 = vxor.u32 %v2166, 2147483648
    %v2169 = vmul.f32 %v2168, 1.442695
    %v2170 = vpow.pop %v2169
    %v2171 = vadd.f32 %v2170, 1.0
    %v2172 = vrcp.pop %v2171
    %v2173 = vmul.f32 %v2171, %v2172
    %v2174 = vsub.f32 1.0, %v2173
    %v2175 = vmul.f32 %v2172, %v2174
    %v2176 = vadd.f32 %v2172, %v2175
    %vm2177 = vweird.f32 %v2171
    %vm2178 = vweird.f32 %v2172
    %vm2179 = vmor %vm2177, %vm2178
    %v2180 = vsel %vm2179, %v2172, %v2176
    %v2181 = vand.u32 2147483647, %v2171
    %vm2182 = vcmp.eq.f32.partialorder %v2181, 8.507059e+37
    %v2183 = vand.u32 %v2171, 2147483648
    %v2184 = vor.u32 1.1754944e-38, %v2183
    %v2185 = vsel %vm2182, %v2184, %v2180
    %v2186 = vmul.f32 1.0, %v2185
    %v2187 = vtanh.pop %v2166
    %v2188 = vmul.f32 %v2186, %v1986
    %2190 = vrot.lane.b32.xlu0 %v2187, 96
    %v2191 = vpop.permute.xlu0 %2190
    %v2193 = vmul.f32 %v2186, %v2191
    %2195 = vrot.lane.b32.xlu0 %v2193, 16
    %v2196 = vpop.permute.xlu0 %2195
    %v2198 = vadd.f32 %v2188, %v2196
    %v2199 = vtanh.pop %v2198
    %2201 = vrot.lane.b32.xlu0 %v2199, 32
    %v2202 = vpop.permute.xlu0 %2201
    %v2204 = vmul.f32 %v2186, %v2202
    %2206 = vrot.lane.b32.xlu0 %v2204, 80
    %v2207 = vpop.permute.xlu0 %2206
    %v2209 = vsel %vm267, %v2207, %v2198
    %v2211 = vsel %vm90, %v2209, 0
    %2213 = vmatpush.msra.mxu0 0.0
    %2214 = vmatpush.msra.mxu0 0.0
    %2215 = vmatpush.msra.mxu0 0.0
    %2216 = vmatpush.msra.mxu0 0.0
    %2217 = vmatpush.msra.mxu0 0.0
    %2218 = vmatpush.msra.mxu0 0.0
    %2219 = vmatpush.msra.mxu0 0.0
    %2220 = vmatpush.msra.mxu0 0.0
    %2221 = vmatpush.msra.mxu0 0.0
    %2222 = vmatpush.msra.mxu0 0.0
    %2223 = vmatpush.msra.mxu0 0.0
    %2224 = vmatpush.msra.mxu0 0.0
    %2225 = vmatpush.msra.mxu0 %v42
    %2226 = vmatpush.msra.mxu0 %v41
    %2227 = vmatpush.msra.mxu0 %v40
    %2228 = vmatpush.msra.mxu0 %v39
    %2229 = vmatmul.f32.gmra.mxu0 %v2211
    %v2230 = vpop.f32.mrf.mxu0
    %v2231 = vadd.f32 0.0, %v2230
    %2232 = vdwg.mxu0
    %v2234 = vrot.slane %v2231, 1
    %v2235 = vperm.slane %v2231, 0
    %v2236 = vperm.slane %v2234, 0
    %v2239 = vadd.f32 %v1561, %v2235
    %v2240 = vadd.f32 %v1564, %v2236
    %v2241 = vtanh.pop %v2239
    %v2242 = vtanh.pop %v2240
    %v2243 = vmul.f32 %v2241, %v1596
    %v2244 = vmul.f32 %v2242, %v1596
    %v2245 = vsel %vm267, %v2243, 0.0
    %2246 = vadd.xlane.f32.xlu0 %v2245
    %v2247 = vpop.xlane.xlu0 %2246
    %v2248 = vsel %vm267, %v2244, 0.0
    %2249 = vadd.xlane.f32.xlu0 %v2248
    %v2250 = vpop.xlane.xlu0 %2249
    %v2253 = vperm.slane %v2247, %v137
    %v2254 = vperm.slane %v2250, %v137
    %v2255 = vsel %vm140, %v2254, %v2253
    %v2257 = vsel %vm1611, %v2255, -inf
    %2258 = vmax.xlane.f32.xlu0 %v2257
    %v2259 = vpop.xlane.xlu0 %2258
    %v2261 = vperm.slane %v2259, 0
    %v2262 = vperm.slane %v2259, 1
    %v2265 = vsub.f32 %v2247, %v2261
    %v2266 = vsub.f32 %v2250, %v2262
    %v2267 = vmul.f32 %v2265, 1.442695
    %v2268 = vpow.pop %v2267
    %v2269 = vmul.f32 %v2266, 1.442695
    %v2270 = vpow.pop %v2269
    %2273 = vset.pattern.permute.xlu0 0
    %2274 = vperm.xlu0 %2273, %v2268
    %v2275 = vpop.permute.xlu0 %2274
    %2276 = vset.pattern.permute.xlu0 0
    %2277 = vperm.xlu0 %2276, %v2270
    %v2278 = vpop.permute.xlu0 %2277
    %v2279 = vperm.slane %v2275, %v137
    %v2280 = vperm.slane %v2278, %v137
    %v2281 = vsel %vm140, %v2280, %v2279
    %v2283 = vsel %vm1611, %v2281, 0.0
    %2284 = vadd.xlane.f32.xlu0 %v2283
    %v2285 = vpop.xlane.xlu0 %2284
    %v2286 = vrcp.pop %v2285
    %v2288 = vperm.slane %v2286, 0
    %v2289 = vperm.slane %v2286, 1
    %v2292 = vmul.f32 %v2268, %v2288
    %v2293 = vmul.f32 %v2270, %v2289
    %2295 = vset.pattern.permute.xlu0 0
    %2296 = vperm.xlu0 %2295, %v2292
    %v2297 = vpop.permute.xlu0 %2296
    %2300 = vset.pattern.permute.xlu0 0
    %2301 = vperm.xlu0 %2300, %v2293
    %v2302 = vpop.permute.xlu0 %2301
    %v2304 = vmul.f32 %v2297, %v1531
    %v2305 = vmul.f32 %v2302, %v1532
    %v2306 = vsel %vm1661, %v2304, 0.0
    %v2307 = vrot.slane %v2306, 4
    %v2308 = vadd.f32 %v2306, %v2307
    %v2309 = vrot.slane %v2308, 2
    %v2310 = vadd.f32 %v2308, %v2309
    %v2311 = vrot.slane %v2310, 1
    %v2312 = vadd.f32 %v2310, %v2311
    %v2313 = vsel %vm1661, %v2305, 0.0
    %v2314 = vrot.slane %v2313, 4
    %v2315 = vadd.f32 %v2313, %v2314
    %v2316 = vrot.slane %v2315, 2
    %v2317 = vadd.f32 %v2315, %v2316
    %v2318 = vrot.slane %v2317, 1
    %v2319 = vadd.f32 %v2317, %v2318
    %v2322 = vsel %vm140, %v2319, %v2312
    %2323 = vrot.lane.b32.xlu0 %v2322, 80
    %v2324 = vpop.permute.xlu0 %2323
    %2326 = vrot.lane.b32.xlu0 %v30, 13
    %v2327 = vpop.permute.xlu0 %2326
    %v2329 = vsel %vm267, %v2324, %v2327
    %v2331 = vsel %vm1688, %v2329, 0
    %2333 = vmatpush.msra.mxu0 0.0
    %2334 = vmatpush.msra.mxu0 0.0
    %2335 = vmatpush.msra.mxu0 0.0
    %2336 = vmatpush.msra.mxu0 0.0
    %2337 = vmatpush.msra.mxu0 0.0
    %2338 = vmatpush.msra.mxu0 0.0
    %2339 = vmatpush.msra.mxu0 0.0
    %2340 = vmatpush.msra.mxu0 0.0
    %2341 = vmatpush.msra.mxu0 0.0
    %2342 = vmatpush.msra.mxu0 0.0
    %2343 = vmatpush.msra.mxu0 0.0
    %2344 = vmatpush.msra.mxu0 0.0
    %2345 = vmatpush.msra.mxu0 0.0
    %2346 = vmatpush.msra.mxu0 %v1693
    %2347 = vmatpush.msra.mxu0 %v53
    %2348 = vmatpush.msra.mxu0 %v52
    %2349 = vmatmul.f32.gmra.mxu0 %v2331
    %v2350 = vpop.f32.mrf.mxu0
    %v2351 = vadd.f32 %v1687, %v2350
    %2352 = vdwg.mxu0
    %2353 = vrot.lane.b32.xlu0 %v2204, 81
    %v2354 = vpop.permute.xlu0 %2353
    %v2356 = vsel %vm1715, %v2351, %v2354
    %v2358 = vsel %vm1688, %v2356, 0
    %2360 = vmatpush.msra.mxu0 0.0
    %2361 = vmatpush.msra.mxu0 0.0
    %2362 = vmatpush.msra.mxu0 0.0
    %2363 = vmatpush.msra.mxu0 0.0
    %2364 = vmatpush.msra.mxu0 0.0
    %2365 = vmatpush.msra.mxu0 0.0
    %2366 = vmatpush.msra.mxu0 0.0
    %2367 = vmatpush.msra.mxu0 0.0
    %2368 = vmatpush.msra.mxu0 0.0
    %2369 = vmatpush.msra.mxu0 0.0
    %2370 = vmatpush.msra.mxu0 0.0
    %2371 = vmatpush.msra.mxu0 0.0
    %2372 = vmatpush.msra.mxu0 0.0
    %2373 = vmatpush.msra.mxu0 %v1722
    %2374 = vmatpush.msra.mxu0 %v50
    %2375 = vmatpush.msra.mxu0 %v49
    %2376 = vmatmul.f32.gmra.mxu0 %v2358
    %v2377 = vpop.f32.mrf.mxu0
    %v2378 = vadd.f32 %v1717, %v2377
    %2379 = vdwg.mxu0
    %v2380 = vxor.u32 %v2378, 2147483648
    %v2381 = vmul.f32 %v2380, 1.442695
    %v2382 = vpow.pop %v2381
    %v2383 = vadd.f32 %v2382, 1.0
    %v2384 = vrcp.pop %v2383
    %v2385 = vmul.f32 %v2383, %v2384
    %v2386 = vsub.f32 1.0, %v2385
    %v2387 = vmul.f32 %v2384, %v2386
    %v2388 = vadd.f32 %v2384, %v2387
    %vm2389 = vweird.f32 %v2383
    %vm2390 = vweird.f32 %v2384
    %vm2391 = vmor %vm2389, %vm2390
    %v2392 = vsel %vm2391, %v2384, %v2388
    %v2393 = vand.u32 2147483647, %v2383
    %vm2394 = vcmp.eq.f32.partialorder %v2393, 8.507059e+37
    %v2395 = vand.u32 %v2383, 2147483648
    %v2396 = vor.u32 1.1754944e-38, %v2395
    %v2397 = vsel %vm2394, %v2396, %v2392
    %v2398 = vmul.f32 1.0, %v2397
    %v2399 = vtanh.pop %v2378
    %v2400 = vmul.f32 %v2398, %v2198
    %2402 = vrot.lane.b32.xlu0 %v2399, 96
    %v2403 = vpop.permute.xlu0 %2402
    %v2405 = vmul.f32 %v2398, %v2403
    %2407 = vrot.lane.b32.xlu0 %v2405, 16
    %v2408 = vpop.permute.xlu0 %2407
    %v2410 = vadd.f32 %v2400, %v2408
    %v2411 = vtanh.pop %v2410
    %2413 = vrot.lane.b32.xlu0 %v2411, 32
    %v2414 = vpop.permute.xlu0 %2413
    %v2416 = vmul.f32 %v2398, %v2414
    %2418 = vrot.lane.b32.xlu0 %v2416, 80
    %v2419 = vpop.permute.xlu0 %2418
    %v2421 = vsel %vm267, %v2419, %v2410
    %v2423 = vsel %vm90, %v2421, 0
    %2425 = vmatpush.msra.mxu0 0.0
    %2426 = vmatpush.msra.mxu0 0.0
    %2427 = vmatpush.msra.mxu0 0.0
    %2428 = vmatpush.msra.mxu0 0.0
    %2429 = vmatpush.msra.mxu0 0.0
    %2430 = vmatpush.msra.mxu0 0.0
    %2431 = vmatpush.msra.mxu0 0.0
    %2432 = vmatpush.msra.mxu0 0.0
    %2433 = vmatpush.msra.mxu0 0.0
    %2434 = vmatpush.msra.mxu0 0.0
    %2435 = vmatpush.msra.mxu0 0.0
    %2436 = vmatpush.msra.mxu0 0.0
    %2437 = vmatpush.msra.mxu0 %v42
    %2438 = vmatpush.msra.mxu0 %v41
    %2439 = vmatpush.msra.mxu0 %v40
    %2440 = vmatpush.msra.mxu0 %v39
    %2441 = vmatmul.f32.gmra.mxu0 %v2423
    %v2442 = vpop.f32.mrf.mxu0
    %v2443 = vadd.f32 0.0, %v2442
    %2444 = vdwg.mxu0
    %v2446 = vrot.slane %v2443, 1
    %v2447 = vperm.slane %v2443, 0
    %v2448 = vperm.slane %v2446, 0
    %v2451 = vadd.f32 %v1561, %v2447
    %v2452 = vadd.f32 %v1564, %v2448
    %v2453 = vtanh.pop %v2451
    %v2454 = vtanh.pop %v2452
    %v2455 = vmul.f32 %v2453, %v1596
    %v2456 = vmul.f32 %v2454, %v1596
    %v2457 = vsel %vm267, %v2455, 0.0
    %2458 = vadd.xlane.f32.xlu0 %v2457
    %v2459 = vpop.xlane.xlu0 %2458
    %v2460 = vsel %vm267, %v2456, 0.0
    %2461 = vadd.xlane.f32.xlu0 %v2460
    %v2462 = vpop.xlane.xlu0 %2461
    %v2465 = vperm.slane %v2459, %v137
    %v2466 = vperm.slane %v2462, %v137
    %v2467 = vsel %vm140, %v2466, %v2465
    %v2469 = vsel %vm1611, %v2467, -inf
    %2470 = vmax.xlane.f32.xlu0 %v2469
    %v2471 = vpop.xlane.xlu0 %2470
    %v2473 = vperm.slane %v2471, 0
    %v2474 = vperm.slane %v2471, 1
    %v2477 = vsub.f32 %v2459, %v2473
    %v2478 = vsub.f32 %v2462, %v2474
    %v2479 = vmul.f32 %v2477, 1.442695
    %v2480 = vpow.pop %v2479
    %v2481 = vmul.f32 %v2478, 1.442695
    %v2482 = vpow.pop %v2481
    %2485 = vset.pattern.permute.xlu0 0
    %2486 = vperm.xlu0 %2485, %v2480
    %v2487 = vpop.permute.xlu0 %2486
    %2488 = vset.pattern.permute.xlu0 0
    %2489 = vperm.xlu0 %2488, %v2482
    %v2490 = vpop.permute.xlu0 %2489
    %v2491 = vperm.slane %v2487, %v137
    %v2492 = vperm.slane %v2490, %v137
    %v2493 = vsel %vm140, %v2492, %v2491
    %v2495 = vsel %vm1611, %v2493, 0.0
    %2496 = vadd.xlane.f32.xlu0 %v2495
    %v2497 = vpop.xlane.xlu0 %2496
    %v2498 = vrcp.pop %v2497
    %v2500 = vperm.slane %v2498, 0
    %v2501 = vperm.slane %v2498, 1
    %v2504 = vmul.f32 %v2480, %v2500
    %v2505 = vmul.f32 %v2482, %v2501
    %2507 = vset.pattern.permute.xlu0 0
    %2508 = vperm.xlu0 %2507, %v2504
    %v2509 = vpop.permute.xlu0 %2508
    %2512 = vset.pattern.permute.xlu0 0
    %2513 = vperm.xlu0 %2512, %v2505
    %v2514 = vpop.permute.xlu0 %2513
    %v2516 = vmul.f32 %v2509, %v1531
    %v2517 = vmul.f32 %v2514, %v1532
    %v2518 = vsel %vm1661, %v2516, 0.0
    %v2519 = vrot.slane %v2518, 4
    %v2520 = vadd.f32 %v2518, %v2519
    %v2521 = vrot.slane %v2520, 2
    %v2522 = vadd.f32 %v2520, %v2521
    %v2523 = vrot.slane %v2522, 1
    %v2524 = vadd.f32 %v2522, %v2523
    %v2525 = vsel %vm1661, %v2517, 0.0
    %v2526 = vrot.slane %v2525, 4
    %v2527 = vadd.f32 %v2525, %v2526
    %v2528 = vrot.slane %v2527, 2
    %v2529 = vadd.f32 %v2527, %v2528
    %v2530 = vrot.slane %v2529, 1
    %v2531 = vadd.f32 %v2529, %v2530
    %v2534 = vsel %vm140, %v2531, %v2524
    %2535 = vrot.lane.b32.xlu0 %v2534, 80
    %v2536 = vpop.permute.xlu0 %2535
    %2538 = vrot.lane.b32.xlu0 %v30, 12
    %v2539 = vpop.permute.xlu0 %2538
    %v2541 = vsel %vm267, %v2536, %v2539
    %v2543 = vsel %vm1688, %v2541, 0
    %2545 = vmatpush.msra.mxu0 0.0
    %2546 = vmatpush.msra.mxu0 0.0
    %2547 = vmatpush.msra.mxu0 0.0
    %2548 = vmatpush.msra.mxu0 0.0
    %2549 = vmatpush.msra.mxu0 0.0
    %2550 = vmatpush.msra.mxu0 0.0
    %2551 = vmatpush.msra.mxu0 0.0
    %2552 = vmatpush.msra.mxu0 0.0
    %2553 = vmatpush.msra.mxu0 0.0
    %2554 = vmatpush.msra.mxu0 0.0
    %2555 = vmatpush.msra.mxu0 0.0
    %2556 = vmatpush.msra.mxu0 0.0
    %2557 = vmatpush.msra.mxu0 0.0
    %2558 = vmatpush.msra.mxu0 %v1693
    %2559 = vmatpush.msra.mxu0 %v53
    %2560 = vmatpush.msra.mxu0 %v52
    %2561 = vmatmul.f32.gmra.mxu0 %v2543
    %v2562 = vpop.f32.mrf.mxu0
    %v2563 = vadd.f32 %v1687, %v2562
    %2564 = vdwg.mxu0
    %2565 = vrot.lane.b32.xlu0 %v2416, 81
    %v2566 = vpop.permute.xlu0 %2565
    %v2568 = vsel %vm1715, %v2563, %v2566
    %v2570 = vsel %vm1688, %v2568, 0
    %2572 = vmatpush.msra.mxu0 0.0
    %2573 = vmatpush.msra.mxu0 0.0
    %2574 = vmatpush.msra.mxu0 0.0
    %2575 = vmatpush.msra.mxu0 0.0
    %2576 = vmatpush.msra.mxu0 0.0
    %2577 = vmatpush.msra.mxu0 0.0
    %2578 = vmatpush.msra.mxu0 0.0
    %2579 = vmatpush.msra.mxu0 0.0
    %2580 = vmatpush.msra.mxu0 0.0
    %2581 = vmatpush.msra.mxu0 0.0
    %2582 = vmatpush.msra.mxu0 0.0
    %2583 = vmatpush.msra.mxu0 0.0
    %2584 = vmatpush.msra.mxu0 0.0
    %2585 = vmatpush.msra.mxu0 %v1722
    %2586 = vmatpush.msra.mxu0 %v50
    %2587 = vmatpush.msra.mxu0 %v49
    %2588 = vmatmul.f32.gmra.mxu0 %v2570
    %v2589 = vpop.f32.mrf.mxu0
    %v2590 = vadd.f32 %v1717, %v2589
    %2591 = vdwg.mxu0
    %v2592 = vxor.u32 %v2590, 2147483648
    %v2593 = vmul.f32 %v2592, 1.442695
    %v2594 = vpow.pop %v2593
    %v2595 = vadd.f32 %v2594, 1.0
    %v2596 = vrcp.pop %v2595
    %v2597 = vmul.f32 %v2595, %v2596
    %v2598 = vsub.f32 1.0, %v2597
    %v2599 = vmul.f32 %v2596, %v2598
    %v2600 = vadd.f32 %v2596, %v2599
    %vm2601 = vweird.f32 %v2595
    %vm2602 = vweird.f32 %v2596
    %vm2603 = vmor %vm2601, %vm2602
    %v2604 = vsel %vm2603, %v2596, %v2600
    %v2605 = vand.u32 2147483647, %v2595
    %vm2606 = vcmp.eq.f32.partialorder %v2605, 8.507059e+37
    %v2607 = vand.u32 %v2595, 2147483648
    %v2608 = vor.u32 1.1754944e-38, %v2607
    %v2609 = vsel %vm2606, %v2608, %v2604
    %v2610 = vmul.f32 1.0, %v2609
    %v2611 = vtanh.pop %v2590
    %v2612 = vmul.f32 %v2610, %v2410
    %2614 = vrot.lane.b32.xlu0 %v2611, 96
    %v2615 = vpop.permute.xlu0 %2614
    %v2617 = vmul.f32 %v2610, %v2615
    %2619 = vrot.lane.b32.xlu0 %v2617, 16
    %v2620 = vpop.permute.xlu0 %2619
    %v2622 = vadd.f32 %v2612, %v2620
    %v2623 = vtanh.pop %v2622
    %2625 = vrot.lane.b32.xlu0 %v2623, 32
    %v2626 = vpop.permute.xlu0 %2625
    %v2628 = vmul.f32 %v2610, %v2626
    %2630 = vrot.lane.b32.xlu0 %v2628, 80
    %v2631 = vpop.permute.xlu0 %2630
    %v2633 = vsel %vm267, %v2631, %v2622
    %v2635 = vsel %vm90, %v2633, 0
    %2637 = vmatpush.msra.mxu0 0.0
    %2638 = vmatpush.msra.mxu0 0.0
    %2639 = vmatpush.msra.mxu0 0.0
    %2640 = vmatpush.msra.mxu0 0.0
    %2641 = vmatpush.msra.mxu0 0.0
    %2642 = vmatpush.msra.mxu0 0.0
    %2643 = vmatpush.msra.mxu0 0.0
    %2644 = vmatpush.msra.mxu0 0.0
    %2645 = vmatpush.msra.mxu0 0.0
    %2646 = vmatpush.msra.mxu0 0.0
    %2647 = vmatpush.msra.mxu0 0.0
    %2648 = vmatpush.msra.mxu0 0.0
    %2649 = vmatpush.msra.mxu0 %v42
    %2650 = vmatpush.msra.mxu0 %v41
    %2651 = vmatpush.msra.mxu0 %v40
    %2652 = vmatpush.msra.mxu0 %v39
    %2653 = vmatmul.f32.gmra.mxu0 %v2635
    %v2654 = vpop.f32.mrf.mxu0
    %v2655 = vadd.f32 0.0, %v2654
    %2656 = vdwg.mxu0
    %v2658 = vrot.slane %v2655, 1
    %v2659 = vperm.slane %v2655, 0
    %v2660 = vperm.slane %v2658, 0
    %v2663 = vadd.f32 %v1561, %v2659
    %v2664 = vadd.f32 %v1564, %v2660
    %v2665 = vtanh.pop %v2663
    %v2666 = vtanh.pop %v2664
    %v2667 = vmul.f32 %v2665, %v1596
    %v2668 = vmul.f32 %v2666, %v1596
    %v2669 = vsel %vm267, %v2667, 0.0
    %2670 = vadd.xlane.f32.xlu0 %v2669
    %v2671 = vpop.xlane.xlu0 %2670
    %v2672 = vsel %vm267, %v2668, 0.0
    %2673 = vadd.xlane.f32.xlu0 %v2672
    %v2674 = vpop.xlane.xlu0 %2673
    %v2677 = vperm.slane %v2671, %v137
    %v2678 = vperm.slane %v2674, %v137
    %v2679 = vsel %vm140, %v2678, %v2677
    %v2681 = vsel %vm1611, %v2679, -inf
    %2682 = vmax.xlane.f32.xlu0 %v2681
    %v2683 = vpop.xlane.xlu0 %2682
    %v2685 = vperm.slane %v2683, 0
    %v2686 = vperm.slane %v2683, 1
    %v2689 = vsub.f32 %v2671, %v2685
    %v2690 = vsub.f32 %v2674, %v2686
    %v2691 = vmul.f32 %v2689, 1.442695
    %v2692 = vpow.pop %v2691
    %v2693 = vmul.f32 %v2690, 1.442695
    %v2694 = vpow.pop %v2693
    %2697 = vset.pattern.permute.xlu0 0
    %2698 = vperm.xlu0 %2697, %v2692
    %v2699 = vpop.permute.xlu0 %2698
    %2700 = vset.pattern.permute.xlu0 0
    %2701 = vperm.xlu0 %2700, %v2694
    %v2702 = vpop.permute.xlu0 %2701
    %v2703 = vperm.slane %v2699, %v137
    %v2704 = vperm.slane %v2702, %v137
    %v2705 = vsel %vm140, %v2704, %v2703
    %v2707 = vsel %vm1611, %v2705, 0.0
    %2708 = vadd.xlane.f32.xlu0 %v2707
    %v2709 = vpop.xlane.xlu0 %2708
    %v2710 = vrcp.pop %v2709
    %v2712 = vperm.slane %v2710, 0
    %v2713 = vperm.slane %v2710, 1
    %v2716 = vmul.f32 %v2692, %v2712
    %v2717 = vmul.f32 %v2694, %v2713
    %2719 = vset.pattern.permute.xlu0 0
    %2720 = vperm.xlu0 %2719, %v2716
    %v2721 = vpop.permute.xlu0 %2720
    %2724 = vset.pattern.permute.xlu0 0
    %2725 = vperm.xlu0 %2724, %v2717
    %v2726 = vpop.permute.xlu0 %2725
    %v2728 = vmul.f32 %v2721, %v1531
    %v2729 = vmul.f32 %v2726, %v1532
    %v2730 = vsel %vm1661, %v2728, 0.0
    %v2731 = vrot.slane %v2730, 4
    %v2732 = vadd.f32 %v2730, %v2731
    %v2733 = vrot.slane %v2732, 2
    %v2734 = vadd.f32 %v2732, %v2733
    %v2735 = vrot.slane %v2734, 1
    %v2736 = vadd.f32 %v2734, %v2735
    %v2737 = vsel %vm1661, %v2729, 0.0
    %v2738 = vrot.slane %v2737, 4
    %v2739 = vadd.f32 %v2737, %v2738
    %v2740 = vrot.slane %v2739, 2
    %v2741 = vadd.f32 %v2739, %v2740
    %v2742 = vrot.slane %v2741, 1
    %v2743 = vadd.f32 %v2741, %v2742
    %v2746 = vsel %vm140, %v2743, %v2736
    %2747 = vrot.lane.b32.xlu0 %v2746, 80
    %v2748 = vpop.permute.xlu0 %2747
    %2750 = vrot.lane.b32.xlu0 %v30, 11
    %v2751 = vpop.permute.xlu0 %2750
    %v2753 = vsel %vm267, %v2748, %v2751
    %v2755 = vsel %vm1688, %v2753, 0
    %2757 = vmatpush.msra.mxu0 0.0
    %2758 = vmatpush.msra.mxu0 0.0
    %2759 = vmatpush.msra.mxu0 0.0
    %2760 = vmatpush.msra.mxu0 0.0
    %2761 = vmatpush.msra.mxu0 0.0
    %2762 = vmatpush.msra.mxu0 0.0
    %2763 = vmatpush.msra.mxu0 0.0
    %2764 = vmatpush.msra.mxu0 0.0
    %2765 = vmatpush.msra.mxu0 0.0
    %2766 = vmatpush.msra.mxu0 0.0
    %2767 = vmatpush.msra.mxu0 0.0
    %2768 = vmatpush.msra.mxu0 0.0
    %2769 = vmatpush.msra.mxu0 0.0
    %2770 = vmatpush.msra.mxu0 %v1693
    %2771 = vmatpush.msra.mxu0 %v53
    %2772 = vmatpush.msra.mxu0 %v52
    %2773 = vmatmul.f32.gmra.mxu0 %v2755
    %v2774 = vpop.f32.mrf.mxu0
    %v2775 = vadd.f32 %v1687, %v2774
    %2776 = vdwg.mxu0
    %2777 = vrot.lane.b32.xlu0 %v2628, 81
    %v2778 = vpop.permute.xlu0 %2777
    %v2780 = vsel %vm1715, %v2775, %v2778
    %v2782 = vsel %vm1688, %v2780, 0
    %2784 = vmatpush.msra.mxu0 0.0
    %2785 = vmatpush.msra.mxu0 0.0
    %2786 = vmatpush.msra.mxu0 0.0
    %2787 = vmatpush.msra.mxu0 0.0
    %2788 = vmatpush.msra.mxu0 0.0
    %2789 = vmatpush.msra.mxu0 0.0
    %2790 = vmatpush.msra.mxu0 0.0
    %2791 = vmatpush.msra.mxu0 0.0
    %2792 = vmatpush.msra.mxu0 0.0
    %2793 = vmatpush.msra.mxu0 0.0
    %2794 = vmatpush.msra.mxu0 0.0
    %2795 = vmatpush.msra.mxu0 0.0
    %2796 = vmatpush.msra.mxu0 0.0
    %2797 = vmatpush.msra.mxu0 %v1722
    %2798 = vmatpush.msra.mxu0 %v50
    %2799 = vmatpush.msra.mxu0 %v49
    %2800 = vmatmul.f32.gmra.mxu0 %v2782
    %v2801 = vpop.f32.mrf.mxu0
    %v2802 = vadd.f32 %v1717, %v2801
    %2803 = vdwg.mxu0
    %v2804 = vxor.u32 %v2802, 2147483648
    %v2805 = vmul.f32 %v2804, 1.442695
    %v2806 = vpow.pop %v2805
    %v2807 = vadd.f32 %v2806, 1.0
    %v2808 = vrcp.pop %v2807
    %v2809 = vmul.f32 %v2807, %v2808
    %v2810 = vsub.f32 1.0, %v2809
    %v2811 = vmul.f32 %v2808, %v2810
    %v2812 = vadd.f32 %v2808, %v2811
    %vm2813 = vweird.f32 %v2807
    %vm2814 = vweird.f32 %v2808
    %vm2815 = vmor %vm2813, %vm2814
    %v2816 = vsel %vm2815, %v2808, %v2812
    %v2817 = vand.u32 2147483647, %v2807
    %vm2818 = vcmp.eq.f32.partialorder %v2817, 8.507059e+37
    %v2819 = vand.u32 %v2807, 2147483648
    %v2820 = vor.u32 1.1754944e-38, %v2819
    %v2821 = vsel %vm2818, %v2820, %v2816
    %v2822 = vmul.f32 1.0, %v2821
    %v2823 = vtanh.pop %v2802
    %v2824 = vmul.f32 %v2822, %v2622
    %2826 = vrot.lane.b32.xlu0 %v2823, 96
    %v2827 = vpop.permute.xlu0 %2826
    %v2829 = vmul.f32 %v2822, %v2827
    %2831 = vrot.lane.b32.xlu0 %v2829, 16
    %v2832 = vpop.permute.xlu0 %2831
    %v2834 = vadd.f32 %v2824, %v2832
    %v2835 = vtanh.pop %v2834
    %2837 = vrot.lane.b32.xlu0 %v2835, 32
    %v2838 = vpop.permute.xlu0 %2837
    %v2840 = vmul.f32 %v2822, %v2838
    %2842 = vrot.lane.b32.xlu0 %v2840, 80
    %v2843 = vpop.permute.xlu0 %2842
    %v2845 = vsel %vm267, %v2843, %v2834
    %v2847 = vsel %vm90, %v2845, 0
    %2849 = vmatpush.msra.mxu0 0.0
    %2850 = vmatpush.msra.mxu0 0.0
    %2851 = vmatpush.msra.mxu0 0.0
    %2852 = vmatpush.msra.mxu0 0.0
    %2853 = vmatpush.msra.mxu0 0.0
    %2854 = vmatpush.msra.mxu0 0.0
    %2855 = vmatpush.msra.mxu0 0.0
    %2856 = vmatpush.msra.mxu0 0.0
    %2857 = vmatpush.msra.mxu0 0.0
    %2858 = vmatpush.msra.mxu0 0.0
    %2859 = vmatpush.msra.mxu0 0.0
    %2860 = vmatpush.msra.mxu0 0.0
    %2861 = vmatpush.msra.mxu0 %v42
    %2862 = vmatpush.msra.mxu0 %v41
    %2863 = vmatpush.msra.mxu0 %v40
    %2864 = vmatpush.msra.mxu0 %v39
    %2865 = vmatmul.f32.gmra.mxu0 %v2847
    %v2866 = vpop.f32.mrf.mxu0
    %v2867 = vadd.f32 0.0, %v2866
    %2868 = vdwg.mxu0
    %v2870 = vrot.slane %v2867, 1
    %v2871 = vperm.slane %v2867, 0
    %v2872 = vperm.slane %v2870, 0
    %v2875 = vadd.f32 %v1561, %v2871
    %v2876 = vadd.f32 %v1564, %v2872
    %v2877 = vtanh.pop %v2875
    %v2878 = vtanh.pop %v2876
    %v2879 = vmul.f32 %v2877, %v1596
    %v2880 = vmul.f32 %v2878, %v1596
    %v2881 = vsel %vm267, %v2879, 0.0
    %2882 = vadd.xlane.f32.xlu0 %v2881
    %v2883 = vpop.xlane.xlu0 %2882
    %v2884 = vsel %vm267, %v2880, 0.0
    %2885 = vadd.xlane.f32.xlu0 %v2884
    %v2886 = vpop.xlane.xlu0 %2885
    %v2889 = vperm.slane %v2883, %v137
    %v2890 = vperm.slane %v2886, %v137
    %v2891 = vsel %vm140, %v2890, %v2889
    %v2893 = vsel %vm1611, %v2891, -inf
    %2894 = vmax.xlane.f32.xlu0 %v2893
    %v2895 = vpop.xlane.xlu0 %2894
    %v2897 = vperm.slane %v2895, 0
    %v2898 = vperm.slane %v2895, 1
    %v2901 = vsub.f32 %v2883, %v2897
    %v2902 = vsub.f32 %v2886, %v2898
    %v2903 = vmul.f32 %v2901, 1.442695
    %v2904 = vpow.pop %v2903
    %v2905 = vmul.f32 %v2902, 1.442695
    %v2906 = vpow.pop %v2905
    %2909 = vset.pattern.permute.xlu0 0
    %2910 = vperm.xlu0 %2909, %v2904
    %v2911 = vpop.permute.xlu0 %2910
    %2912 = vset.pattern.permute.xlu0 0
    %2913 = vperm.xlu0 %2912, %v2906
    %v2914 = vpop.permute.xlu0 %2913
    %v2915 = vperm.slane %v2911, %v137
    %v2916 = vperm.slane %v2914, %v137
    %v2917 = vsel %vm140, %v2916, %v2915
    %v2919 = vsel %vm1611, %v2917, 0.0
    %2920 = vadd.xlane.f32.xlu0 %v2919
    %v2921 = vpop.xlane.xlu0 %2920
    %v2922 = vrcp.pop %v2921
    %v2924 = vperm.slane %v2922, 0
    %v2925 = vperm.slane %v2922, 1
    %v2928 = vmul.f32 %v2904, %v2924
    %v2929 = vmul.f32 %v2906, %v2925
    %2931 = vset.pattern.permute.xlu0 0
    %2932 = vperm.xlu0 %2931, %v2928
    %v2933 = vpop.permute.xlu0 %2932
    %2936 = vset.pattern.permute.xlu0 0
    %2937 = vperm.xlu0 %2936, %v2929
    %v2938 = vpop.permute.xlu0 %2937
    %v2940 = vmul.f32 %v2933, %v1531
    %v2941 = vmul.f32 %v2938, %v1532
    %v2942 = vsel %vm1661, %v2940, 0.0
    %v2943 = vrot.slane %v2942, 4
    %v2944 = vadd.f32 %v2942, %v2943
    %v2945 = vrot.slane %v2944, 2
    %v2946 = vadd.f32 %v2944, %v2945
    %v2947 = vrot.slane %v2946, 1
    %v2948 = vadd.f32 %v2946, %v2947
    %v2949 = vsel %vm1661, %v2941, 0.0
    %v2950 = vrot.slane %v2949, 4
    %v2951 = vadd.f32 %v2949, %v2950
    %v2952 = vrot.slane %v2951, 2
    %v2953 = vadd.f32 %v2951, %v2952
    %v2954 = vrot.slane %v2953, 1
    %v2955 = vadd.f32 %v2953, %v2954
    %v2958 = vsel %vm140, %v2955, %v2948
    %2959 = vrot.lane.b32.xlu0 %v2958, 80
    %v2960 = vpop.permute.xlu0 %2959
    %2962 = vrot.lane.b32.xlu0 %v30, 10
    %v2963 = vpop.permute.xlu0 %2962
    %v2965 = vsel %vm267, %v2960, %v2963
    %v2967 = vsel %vm1688, %v2965, 0
    %2969 = vmatpush.msra.mxu0 0.0
    %2970 = vmatpush.msra.mxu0 0.0
    %2971 = vmatpush.msra.mxu0 0.0
    %2972 = vmatpush.msra.mxu0 0.0
    %2973 = vmatpush.msra.mxu0 0.0
    %2974 = vmatpush.msra.mxu0 0.0
    %2975 = vmatpush.msra.mxu0 0.0
    %2976 = vmatpush.msra.mxu0 0.0
    %2977 = vmatpush.msra.mxu0 0.0
    %2978 = vmatpush.msra.mxu0 0.0
    %2979 = vmatpush.msra.mxu0 0.0
    %2980 = vmatpush.msra.mxu0 0.0
    %2981 = vmatpush.msra.mxu0 0.0
    %2982 = vmatpush.msra.mxu0 %v1693
    %2983 = vmatpush.msra.mxu0 %v53
    %2984 = vmatpush.msra.mxu0 %v52
    %2985 = vmatmul.f32.gmra.mxu0 %v2967
    %v2986 = vpop.f32.mrf.mxu0
    %v2987 = vadd.f32 %v1687, %v2986
    %2988 = vdwg.mxu0
    %2989 = vrot.lane.b32.xlu0 %v2840, 81
    %v2990 = vpop.permute.xlu0 %2989
    %v2992 = vsel %vm1715, %v2987, %v2990
    %v2994 = vsel %vm1688, %v2992, 0
    %2996 = vmatpush.msra.mxu0 0.0
    %2997 = vmatpush.msra.mxu0 0.0
    %2998 = vmatpush.msra.mxu0 0.0
    %2999 = vmatpush.msra.mxu0 0.0
    %3000 = vmatpush.msra.mxu0 0.0
    %3001 = vmatpush.msra.mxu0 0.0
    %3002 = vmatpush.msra.mxu0 0.0
    %3003 = vmatpush.msra.mxu0 0.0
    %3004 = vmatpush.msra.mxu0 0.0
    %3005 = vmatpush.msra.mxu0 0.0
    %3006 = vmatpush.msra.mxu0 0.0
    %3007 = vmatpush.msra.mxu0 0.0
    %3008 = vmatpush.msra.mxu0 0.0
    %3009 = vmatpush.msra.mxu0 %v1722
    %3010 = vmatpush.msra.mxu0 %v50
    %3011 = vmatpush.msra.mxu0 %v49
    %3012 = vmatmul.f32.gmra.mxu0 %v2994
    %v3013 = vpop.f32.mrf.mxu0
    %v3014 = vadd.f32 %v1717, %v3013
    %3015 = vdwg.mxu0
    %v3016 = vxor.u32 %v3014, 2147483648
    %v3017 = vmul.f32 %v3016, 1.442695
    %v3018 = vpow.pop %v3017
    %v3019 = vadd.f32 %v3018, 1.0
    %v3020 = vrcp.pop %v3019
    %v3021 = vmul.f32 %v3019, %v3020
    %v3022 = vsub.f32 1.0, %v3021
    %v3023 = vmul.f32 %v3020, %v3022
    %v3024 = vadd.f32 %v3020, %v3023
    %vm3025 = vweird.f32 %v3019
    %vm3026 = vweird.f32 %v3020
    %vm3027 = vmor %vm3025, %vm3026
    %v3028 = vsel %vm3027, %v3020, %v3024
    %v3029 = vand.u32 2147483647, %v3019
    %vm3030 = vcmp.eq.f32.partialorder %v3029, 8.507059e+37
    %v3031 = vand.u32 %v3019, 2147483648
    %v3032 = vor.u32 1.1754944e-38, %v3031
    %v3033 = vsel %vm3030, %v3032, %v3028
    %v3034 = vmul.f32 1.0, %v3033
    %v3035 = vtanh.pop %v3014
    %v3036 = vmul.f32 %v3034, %v2834
    %3038 = vrot.lane.b32.xlu0 %v3035, 96
    %v3039 = vpop.permute.xlu0 %3038
    %v3041 = vmul.f32 %v3034, %v3039
    %3043 = vrot.lane.b32.xlu0 %v3041, 16
    %v3044 = vpop.permute.xlu0 %3043
    %v3046 = vadd.f32 %v3036, %v3044
    %v3047 = vtanh.pop %v3046
    %3049 = vrot.lane.b32.xlu0 %v3047, 32
    %v3050 = vpop.permute.xlu0 %3049
    %v3052 = vmul.f32 %v3034, %v3050
    %3054 = vrot.lane.b32.xlu0 %v3052, 80
    %v3055 = vpop.permute.xlu0 %3054
    %v3057 = vsel %vm267, %v3055, %v3046
    %v3059 = vsel %vm90, %v3057, 0
    %3061 = vmatpush.msra.mxu0 0.0
    %3062 = vmatpush.msra.mxu0 0.0
    %3063 = vmatpush.msra.mxu0 0.0
    %3064 = vmatpush.msra.mxu0 0.0
    %3065 = vmatpush.msra.mxu0 0.0
    %3066 = vmatpush.msra.mxu0 0.0
    %3067 = vmatpush.msra.mxu0 0.0
    %3068 = vmatpush.msra.mxu0 0.0
    %3069 = vmatpush.msra.mxu0 0.0
    %3070 = vmatpush.msra.mxu0 0.0
    %3071 = vmatpush.msra.mxu0 0.0
    %3072 = vmatpush.msra.mxu0 0.0
    %3073 = vmatpush.msra.mxu0 %v42
    %3074 = vmatpush.msra.mxu0 %v41
    %3075 = vmatpush.msra.mxu0 %v40
    %3076 = vmatpush.msra.mxu0 %v39
    %3077 = vmatmul.f32.gmra.mxu0 %v3059
    %v3078 = vpop.f32.mrf.mxu0
    %v3079 = vadd.f32 0.0, %v3078
    %3080 = vdwg.mxu0
    %v3082 = vrot.slane %v3079, 1
    %v3083 = vperm.slane %v3079, 0
    %v3084 = vperm.slane %v3082, 0
    %v3087 = vadd.f32 %v1561, %v3083
    %v3088 = vadd.f32 %v1564, %v3084
    %v3089 = vtanh.pop %v3087
    %v3090 = vtanh.pop %v3088
    %v3091 = vmul.f32 %v3089, %v1596
    %v3092 = vmul.f32 %v3090, %v1596
    %v3093 = vsel %vm267, %v3091, 0.0
    %3094 = vadd.xlane.f32.xlu0 %v3093
    %v3095 = vpop.xlane.xlu0 %3094
    %v3096 = vsel %vm267, %v3092, 0.0
    %3097 = vadd.xlane.f32.xlu0 %v3096
    %v3098 = vpop.xlane.xlu0 %3097
    %v3101 = vperm.slane %v3095, %v137
    %v3102 = vperm.slane %v3098, %v137
    %v3103 = vsel %vm140, %v3102, %v3101
    %v3105 = vsel %vm1611, %v3103, -inf
    %3106 = vmax.xlane.f32.xlu0 %v3105
    %v3107 = vpop.xlane.xlu0 %3106
    %v3109 = vperm.slane %v3107, 0
    %v3110 = vperm.slane %v3107, 1
    %v3113 = vsub.f32 %v3095, %v3109
    %v3114 = vsub.f32 %v3098, %v3110
    %v3115 = vmul.f32 %v3113, 1.442695
    %v3116 = vpow.pop %v3115
    %v3117 = vmul.f32 %v3114, 1.442695
    %v3118 = vpow.pop %v3117
    %3121 = vset.pattern.permute.xlu0 0
    %3122 = vperm.xlu0 %3121, %v3116
    %v3123 = vpop.permute.xlu0 %3122
    %3124 = vset.pattern.permute.xlu0 0
    %3125 = vperm.xlu0 %3124, %v3118
    %v3126 = vpop.permute.xlu0 %3125
    %v3127 = vperm.slane %v3123, %v137
    %v3128 = vperm.slane %v3126, %v137
    %v3129 = vsel %vm140, %v3128, %v3127
    %v3131 = vsel %vm1611, %v3129, 0.0
    %3132 = vadd.xlane.f32.xlu0 %v3131
    %v3133 = vpop.xlane.xlu0 %3132
    %v3134 = vrcp.pop %v3133
    %v3136 = vperm.slane %v3134, 0
    %v3137 = vperm.slane %v3134, 1
    %v3140 = vmul.f32 %v3116, %v3136
    %v3141 = vmul.f32 %v3118, %v3137
    %3143 = vset.pattern.permute.xlu0 0
    %3144 = vperm.xlu0 %3143, %v3140
    %v3145 = vpop.permute.xlu0 %3144
    %3148 = vset.pattern.permute.xlu0 0
    %3149 = vperm.xlu0 %3148, %v3141
    %v3150 = vpop.permute.xlu0 %3149
    %v3152 = vmul.f32 %v3145, %v1531
    %v3153 = vmul.f32 %v3150, %v1532
    %v3154 = vsel %vm1661, %v3152, 0.0
    %v3155 = vrot.slane %v3154, 4
    %v3156 = vadd.f32 %v3154, %v3155
    %v3157 = vrot.slane %v3156, 2
    %v3158 = vadd.f32 %v3156, %v3157
    %v3159 = vrot.slane %v3158, 1
    %v3160 = vadd.f32 %v3158, %v3159
    %v3161 = vsel %vm1661, %v3153, 0.0
    %v3162 = vrot.slane %v3161, 4
    %v3163 = vadd.f32 %v3161, %v3162
    %v3164 = vrot.slane %v3163, 2
    %v3165 = vadd.f32 %v3163, %v3164
    %v3166 = vrot.slane %v3165, 1
    %v3167 = vadd.f32 %v3165, %v3166
    %v3170 = vsel %vm140, %v3167, %v3160
    %3171 = vrot.lane.b32.xlu0 %v3170, 80
    %v3172 = vpop.permute.xlu0 %3171
    %3174 = vrot.lane.b32.xlu0 %v30, 9
    %v3175 = vpop.permute.xlu0 %3174
    %v3177 = vsel %vm267, %v3172, %v3175
    %v3179 = vsel %vm1688, %v3177, 0
    %3181 = vmatpush.msra.mxu0 0.0
    %3182 = vmatpush.msra.mxu0 0.0
    %3183 = vmatpush.msra.mxu0 0.0
    %3184 = vmatpush.msra.mxu0 0.0
    %3185 = vmatpush.msra.mxu0 0.0
    %3186 = vmatpush.msra.mxu0 0.0
    %3187 = vmatpush.msra.mxu0 0.0
    %3188 = vmatpush.msra.mxu0 0.0
    %3189 = vmatpush.msra.mxu0 0.0
    %3190 = vmatpush.msra.mxu0 0.0
    %3191 = vmatpush.msra.mxu0 0.0
    %3192 = vmatpush.msra.mxu0 0.0
    %3193 = vmatpush.msra.mxu0 0.0
    %3194 = vmatpush.msra.mxu0 %v1693
    %3195 = vmatpush.msra.mxu0 %v53
    %3196 = vmatpush.msra.mxu0 %v52
    %3197 = vmatmul.f32.gmra.mxu0 %v3179
    %v3198 = vpop.f32.mrf.mxu0
    %v3199 = vadd.f32 %v1687, %v3198
    %3200 = vdwg.mxu0
    %3201 = vrot.lane.b32.xlu0 %v3052, 81
    %v3202 = vpop.permute.xlu0 %3201
    %v3204 = vsel %vm1715, %v3199, %v3202
    %v3206 = vsel %vm1688, %v3204, 0
    %3208 = vmatpush.msra.mxu0 0.0
    %3209 = vmatpush.msra.mxu0 0.0
    %3210 = vmatpush.msra.mxu0 0.0
    %3211 = vmatpush.msra.mxu0 0.0
    %3212 = vmatpush.msra.mxu0 0.0
    %3213 = vmatpush.msra.mxu0 0.0
    %3214 = vmatpush.msra.mxu0 0.0
    %3215 = vmatpush.msra.mxu0 0.0
    %3216 = vmatpush.msra.mxu0 0.0
    %3217 = vmatpush.msra.mxu0 0.0
    %3218 = vmatpush.msra.mxu0 0.0
    %3219 = vmatpush.msra.mxu0 0.0
    %3220 = vmatpush.msra.mxu0 0.0
    %3221 = vmatpush.msra.mxu0 %v1722
    %3222 = vmatpush.msra.mxu0 %v50
    %3223 = vmatpush.msra.mxu0 %v49
    %3224 = vmatmul.f32.gmra.mxu0 %v3206
    %v3225 = vpop.f32.mrf.mxu0
    %v3226 = vadd.f32 %v1717, %v3225
    %3227 = vdwg.mxu0
    %v3228 = vxor.u32 %v3226, 2147483648
    %v3229 = vmul.f32 %v3228, 1.442695
    %v3230 = vpow.pop %v3229
    %v3231 = vadd.f32 %v3230, 1.0
    %v3232 = vrcp.pop %v3231
    %v3233 = vmul.f32 %v3231, %v3232
    %v3234 = vsub.f32 1.0, %v3233
    %v3235 = vmul.f32 %v3232, %v3234
    %v3236 = vadd.f32 %v3232, %v3235
    %vm3237 = vweird.f32 %v3231
    %vm3238 = vweird.f32 %v3232
    %vm3239 = vmor %vm3237, %vm3238
    %v3240 = vsel %vm3239, %v3232, %v3236
    %v3241 = vand.u32 2147483647, %v3231
    %vm3242 = vcmp.eq.f32.partialorder %v3241, 8.507059e+37
    %v3243 = vand.u32 %v3231, 2147483648
    %v3244 = vor.u32 1.1754944e-38, %v3243
    %v3245 = vsel %vm3242, %v3244, %v3240
    %v3246 = vmul.f32 1.0, %v3245
    %v3247 = vtanh.pop %v3226
    %v3248 = vmul.f32 %v3246, %v3046
    %3250 = vrot.lane.b32.xlu0 %v3247, 96
    %v3251 = vpop.permute.xlu0 %3250
    %v3253 = vmul.f32 %v3246, %v3251
    %3255 = vrot.lane.b32.xlu0 %v3253, 16
    %v3256 = vpop.permute.xlu0 %3255
    %v3258 = vadd.f32 %v3248, %v3256
    %v3259 = vtanh.pop %v3258
    %3261 = vrot.lane.b32.xlu0 %v3259, 32
    %v3262 = vpop.permute.xlu0 %3261
    %v3264 = vmul.f32 %v3246, %v3262
    %v3265 = vperm.slane %v57, 0
    %3267 = vrot.lane.b32.xlu0 %v3264, 80
    %v3268 = vpop.permute.xlu0 %3267
    %v3269 = vsel %vm267, %v3268, 0
    %3271 = vmatpush.msra.mxu0 0.0
    %3272 = vmatpush.msra.mxu0 0.0
    %3273 = vmatpush.msra.mxu0 0.0
    %3274 = vmatpush.msra.mxu0 0.0
    %3275 = vmatpush.msra.mxu0 0.0
    %3276 = vmatpush.msra.mxu0 0.0
    %3277 = vmatpush.msra.mxu0 0.0
    %3278 = vmatpush.msra.mxu0 0.0
    %3279 = vmatpush.msra.mxu0 0.0
    %3280 = vmatpush.msra.mxu0 0.0
    %3281 = vmatpush.msra.mxu0 0.0
    %3282 = vmatpush.msra.mxu0 0.0
    %3283 = vmatpush.msra.mxu0 0.0
    %3284 = vmatpush.msra.mxu0 0.0
    %3285 = vmatpush.msra.mxu0 %v56
    %3286 = vmatpush.msra.mxu0 %v55
    %3287 = vmatmul.f32.gmra.mxu0 %v3269
    %v3288 = vpop.f32.mrf.mxu0
    %v3289 = vadd.f32 %v3265, %v3288
    %3290 = vdwg.mxu0
    %vm3291 = vcmask 9216
    %3292 = vst.msk [vmem:[#allocation2] sm:$0x3] %vm3291, %v3289
    // Predicated region
    $region34: #{tpu_custom_call.1} parent=1 // pred_check
      _
    $region35: #{tpu_custom_call.1} parent=1 // pred_check_branch
      %3294 = sbr.rel (0) target = $region37
    $region36: #{tpu_custom_call.1} parent=1 // pred_region
      %3296 = vsyncadd [#allocation3], 0
      %s3298 = sshll.u32 [#allocation2], 4
      %s3299 = int_to_ptr.vmem [resolvable:$true] %s3298
      %s3300 = sshll.u32 %s8, 4
      %s3301 = int_to_ptr.hbm [resolvable:$true] %s3300
      %3303 = dma.vmem_to_hbm [thread:$0]  %s3299, 32, %s3301, [#allocation3]
    $region37: #{tpu_custom_call.1} parent=1 // pred_fallthru
      _
    // Predicated region
    $region38: #{tpu_custom_call.1} parent=1 // pred_check
      _
    $region39: #{tpu_custom_call.1} parent=1 // pred_check_branch
      %3305 = sbr.rel (0) target = $region41
    $region40: #{tpu_custom_call.1} parent=1 // pred_region
      %3307 = dma.done [#allocation3], 32
    $region41: #{tpu_custom_call.1} parent=1 // pred_fallthru
      _
    %3308 = vsyncpa [#allocation3], 1

</llo_original>
